<compile_context>
chip_gen: v6e
topology: v6e:2x2x1
jax: 0.10.0
libtpu: 0.0.40
codegen_flags: <defaults>
</compile_context>

<pallas_src>
import math

import jax
import jax.numpy as jnp
from jax import lax
from jax.experimental import pallas as pl
from jax.experimental.pallas import tpu as pltpu

# ---- small, forward-consistent config ----
BATCH      = 2
SEQ        = 8                       # power of two (used for the CLS-row mask)
ROWS       = BATCH * SEQ             # 16 rows, batch folded into the block
HIDDEN     = 128
NUM_HEADS  = 4
HEAD_DIM   = HIDDEN // NUM_HEADS
FFN        = 256
NUM_LAYERS = 2
VOCAB      = 128
TYPE_VOCAB = 2
MAX_POS    = SEQ
NUM_LABELS = 3
LOGIT_PAD  = 128                     # lane-dense classifier width (pad of 125)
LN_EPS     = 1e-12
ATTN_SCALE = 1.0 / math.sqrt(HEAD_DIM)

ROWS_LOG2 = int(math.log2(ROWS))
HEAD_LOG2 = int(math.log2(HEAD_DIM))
SEQ_LOG2  = int(math.log2(SEQ))

# rows of the per-layer f32 parameter slab (L, 9, HIDDEN)
BQ, BK, BV, BO, LN1G, LN1B, B2, LN2G, LN2B = range(9)


# ---------------- in-kernel helpers ----------------
def _layer_norm(x, g, b):
    mu = jnp.mean(x, axis=-1, keepdims=True)
    var = jnp.mean(jnp.square(x - mu), axis=-1, keepdims=True)
    return (x - mu) * lax.rsqrt(var + LN_EPS) * g + b


def _gelu(x):
    # TODO(synk): HF BERT uses erf GELU; tanh approximation differs at ~1e-3.
    c = 0.7978845608028654  # sqrt(2/pi)
    return 0.5 * x * (1.0 + jnp.tanh(c * (x + 0.044715 * x * x * x)))


# ---------------- fused forward kernel ----------------
def fused_forward_kernel(
        emb_ref, mask_ref, labels_ref, misc_ref,
        wqkv_ref, slab_ref, wo_ref, w1_ref, b1_ref, w2_ref, clsw_ref,
        seq_ref, logits_ref, loss_ref):
    # ---- one-time constants (hoisted out of the layer loop) ----
    # head selector (NUM_HEADS*ROWS, HIDDEN): row r belongs to head r>>log2(ROWS),
    # column c belongs to head c>>log2(HEAD_DIM).
    r_i = lax.broadcasted_iota(jnp.int32, (NUM_HEADS * ROWS, HIDDEN), 0)
    c_i = lax.broadcasted_iota(jnp.int32, (NUM_HEADS * ROWS, HIDDEN), 1)
    head_sel = jnp.right_shift(r_i, ROWS_LOG2) == jnp.right_shift(c_i, HEAD_LOG2)
    head_sel_bf = head_sel.astype(jnp.bfloat16)     # 0/1 operand for denom matmul
    zero_bd = jnp.zeros((NUM_HEADS * ROWS, HIDDEN), jnp.bfloat16)

    # embeddings (summed outside) -> embedding LayerNorm
    x = _layer_norm(emb_ref[...], misc_ref[0:1, :], misc_ref[1:2, :])   # (ROWS, H) f32
    mask_bias = mask_ref[...]                        # (ROWS, NUM_HEADS*ROWS) additive

    for l in range(NUM_LAYERS):          # static unroll; all weights VMEM-resident
        xb = x.astype(jnp.bfloat16)
        # fused Q|K|V projection: one (ROWS,H) x (H,3H) matmul.
        # ATTN_SCALE is pre-folded into the Q columns / bias at init.
        qkv = jnp.dot(xb, wqkv_ref[l], preferred_element_type=jnp.float32)  # (ROWS, 3H)
        qb = (qkv[:, :HIDDEN]              + slab_ref[l, BQ:BQ + 1, :]).astype(jnp.bfloat16)
        kb = (qkv[:, HIDDEN:2 * HIDDEN]    + slab_ref[l, BK:BK + 1, :]).astype(jnp.bfloat16)
        vb = (qkv[:, 2 * HIDDEN:3 * HIDDEN] + slab_ref[l, BV:BV + 1, :]).astype(jnp.bfloat16)

        # block-diagonal K / V: head h occupies rows [h*ROWS, (h+1)*ROWS) and
        # cols [h*HEAD_DIM, (h+1)*HEAD_DIM).  Built with a sublane tile + select
        # (no transposes); lets all heads share one scores / context matmul.
        ktile = jnp.concatenate([kb] * NUM_HEADS, axis=0)    # (4*ROWS, H) bf16
        vtile = jnp.concatenate([vb] * NUM_HEADS, axis=0)
        kbd = jnp.where(head_sel, ktile, zero_bd)
        vbd = jnp.where(head_sel, vtile, zero_bd)

        # all-head scores in one matmul, contracting on the hidden dim of both
        # operands (no explicit K transpose): (ROWS,H) x (4*ROWS,H)^T -> (ROWS, 4*ROWS)
        s = lax.dot_general(qb, kbd, (((1,), (1,)), ((), ())),
                            preferred_element_type=jnp.float32)
        s = s + mask_bias
        # global per-row max is a valid stability shift (constant within each
        # head's 16-column block); per-head denominators are computed below.
        s = s - jnp.max(s, axis=-1, keepdims=True)
        p = jnp.exp(s)                                         # (ROWS, 4*ROWS) f32
        pb = p.astype(jnp.bfloat16)

        # unnormalized context for all heads, already head-concatenated: (ROWS, H)
        ctx = jnp.dot(pb, vbd, preferred_element_type=jnp.float32)
        # per-head softmax denominators broadcast to the matching 32-lane block
        denom = jnp.dot(pb, head_sel_bf, preferred_element_type=jnp.float32)
        ctx = ctx * pl.reciprocal(denom, approx=True)

        attn = jnp.dot(ctx.astype(jnp.bfloat16), wo_ref[l],
                       preferred_element_type=jnp.float32) + slab_ref[l, BO:BO + 1, :]
        x1 = _layer_norm(x + attn,
                         slab_ref[l, LN1G:LN1G + 1, :], slab_ref[l, LN1B:LN1B + 1, :])

        h1 = _gelu(jnp.dot(x1.astype(jnp.bfloat16), w1_ref[l],
                           preferred_element_type=jnp.float32) + b1_ref[l])
        ffn = jnp.dot(h1.astype(jnp.bfloat16), w2_ref[l],
                      preferred_element_type=jnp.float32) + slab_ref[l, B2:B2 + 1, :]
        x = _layer_norm(x1 + ffn,
                        slab_ref[l, LN2G:LN2G + 1, :], slab_ref[l, LN2B:LN2B + 1, :])

    seq_ref[...] = x                                           # sequence_output

    # classifier applied to every row (lane-dense 128-wide output); only the
    # [CLS] rows (row % SEQ == 0) feed the loss / returned logits.
    # TODO(synk): nn.Dropout(classifier_dropout) is identity here (eval mode).
    logits = jnp.dot(x.astype(jnp.bfloat16), clsw_ref[...],
                     preferred_element_type=jnp.float32) + misc_ref[2:3, :]
    logits_ref[...] = logits

    # cross-entropy (mean over batch), stable log-softmax over the real labels.
    # TODO(synk): divides by BATCH; PyTorch CE mean divides by non-ignored count
    # (differs only if ignore_index / -100 labels are ever used).
    lane = lax.broadcasted_iota(jnp.int32, (ROWS, LOGIT_PAD), 1)
    valid = lane < NUM_LABELS
    lm = jnp.where(valid, logits, jnp.float32(-1e30))
    m = jnp.max(lm, axis=-1, keepdims=True)
    lse = m + jnp.log(jnp.sum(jnp.exp(lm - m), axis=-1, keepdims=True))   # (ROWS, 1)

    row = lax.broadcasted_iota(jnp.int32, (ROWS, 1), 0)
    label_row = jnp.zeros((ROWS, 1), jnp.int32)
    for b in range(BATCH):                                     # labels from SMEM scalars
        label_row = jnp.where(jnp.right_shift(row, SEQ_LOG2) == b,
                              labels_ref[b], label_row)
    one_hot = lane == label_row
    label_logit = jnp.sum(jnp.where(one_hot, logits, 0.0), axis=-1, keepdims=True)

    # SEQ is a power of two, so row % SEQ == row & (SEQ - 1)
    is_cls = (jnp.bitwise_and(row, SEQ - 1) == 0).astype(jnp.float32)
    loss = jnp.sum((lse - label_logit) * is_cls) * jnp.float32(1.0 / BATCH)
    loss_ref[0, 0] = loss                                      # scalar SMEM output


# ---------------- wrapper ----------------
def _full_spec(shape):
    nd = len(shape)
    return pl.BlockSpec(tuple(shape), lambda i, _nd=nd: (0,) * _nd)


def fused_forward(emb, mask64, labels, p):
    in_arrays = [emb, mask64, labels, p["misc"],
                 p["wqkv"], p["slab"], p["wo"], p["w1"], p["b1"], p["w2"], p["cls_w"]]
    smem_spec = pl.BlockSpec(memory_space=pltpu.MemorySpace.SMEM)
    in_specs = [
        _full_spec(emb.shape),
        _full_spec(mask64.shape),
        smem_spec,                          # labels: SMEM scalars
        _full_spec(p["misc"].shape),
        _full_spec(p["wqkv"].shape),
        _full_spec(p["slab"].shape),
        _full_spec(p["wo"].shape),
        _full_spec(p["w1"].shape),
        _full_spec(p["b1"].shape),
        _full_spec(p["w2"].shape),
        _full_spec(p["cls_w"].shape),
    ]
    out_shape = (jax.ShapeDtypeStruct((ROWS, HIDDEN), jnp.float32),
                 jax.ShapeDtypeStruct((ROWS, LOGIT_PAD), jnp.float32),
                 jax.ShapeDtypeStruct((1, 1), jnp.float32))
    out_specs = (_full_spec((ROWS, HIDDEN)),
                 _full_spec((ROWS, LOGIT_PAD)),
                 smem_spec)                 # loss: scalar in SMEM
    return pl.pallas_call(
        fused_forward_kernel,
        out_shape=out_shape,
        grid=(1,),
        in_specs=in_specs,
        out_specs=out_specs,
        compiler_params=pltpu.CompilerParams(
            # single grid step; at B=2 sharding across v7x's 2 TCs is a net loss
            dimension_semantics=("arbitrary",)),
    )(*in_arrays)


# ---------------- deterministic parameter init (synthetic, no checkpoint) ----------------
def init_params(key):
    keys = jax.random.split(key, 4 + NUM_LAYERS)

    def normal(k, shape, std=0.02):
        return std * jax.random.normal(k, shape, jnp.float32)

    params = {
        "word_emb": normal(keys[0], (VOCAB, HIDDEN)),
        "pos_emb":  normal(keys[1], (MAX_POS, HIDDEN)),
        "type_emb": normal(keys[2], (TYPE_VOCAB, HIDDEN)),
    }

    wqkv, wo, w1, w2, slab = [], [], [], [], []
    for l in range(NUM_LAYERS):
        lk = jax.random.split(keys[3 + l], 6)
        # fold the 1/sqrt(head_dim) attention scale into the Q projection
        wq = normal(lk[0], (HIDDEN, HIDDEN)) * ATTN_SCALE
        wk = normal(lk[1], (HIDDEN, HIDDEN))
        wv = normal(lk[2], (HIDDEN, HIDDEN))
        wqkv.append(jnp.concatenate([wq, wk, wv], axis=1))
        wo.append(normal(lk[3], (HIDDEN, HIDDEN)))
        w1.append(normal(lk[4], (HIDDEN, FFN)))
        w2.append(normal(lk[5], (FFN, HIDDEN)))
        slab.append(jnp.stack([
            jnp.zeros((HIDDEN,), jnp.float32) * ATTN_SCALE,   # BQ (scale-folded)
            jnp.zeros((HIDDEN,), jnp.float32),                # BK
            jnp.zeros((HIDDEN,), jnp.float32),                # BV
            jnp.zeros((HIDDEN,), jnp.float32),                # BO
            jnp.ones((HIDDEN,), jnp.float32),                 # LN1 gamma
            jnp.zeros((HIDDEN,), jnp.float32),                # LN1 beta
            jnp.zeros((HIDDEN,), jnp.float32),                # B2
            jnp.ones((HIDDEN,), jnp.float32),                 # LN2 gamma
            jnp.zeros((HIDDEN,), jnp.float32),                # LN2 beta
        ]))

    # matmul weights stored bf16 (MXU-native); biases / LN params stay f32.
    params["wqkv"] = jnp.stack(wqkv).astype(jnp.bfloat16)      # (L, H, 3H)
    params["wo"]   = jnp.stack(wo).astype(jnp.bfloat16)        # (L, H, H)
    params["w1"]   = jnp.stack(w1).astype(jnp.bfloat16)        # (L, H, F)
    params["w2"]   = jnp.stack(w2).astype(jnp.bfloat16)        # (L, F, H)
    params["slab"] = jnp.stack(slab)                           # (L, 9, H) f32
    params["b1"]   = jnp.zeros((NUM_LAYERS, 1, FFN), jnp.float32)

    # classifier: xavier_uniform_ weight, bias filled with 0.01 (init_weights()),
    # lane-padded to 128 so the classifier matmul / store stays lane-dense.
    limit = math.sqrt(6.0 / (HIDDEN + NUM_LABELS))
    cls_w = jax.random.uniform(keys[3 + NUM_LAYERS], (HIDDEN, NUM_LABELS),
                               jnp.float32, -limit, limit)
    params["cls_w"] = jnp.pad(cls_w, ((0, 0), (0, LOGIT_PAD - NUM_LABELS))
                              ).astype(jnp.bfloat16)           # (H, 128)
    cls_b = jnp.pad(jnp.full((NUM_LABELS,), 0.01, jnp.float32),
                    (0, LOGIT_PAD - NUM_LABELS))               # (128,)
    # misc slab: [emb LN gamma, emb LN beta, classifier bias]  (3, 128) f32
    params["misc"] = jnp.stack([jnp.ones((HIDDEN,), jnp.float32),
                                jnp.zeros((HIDDEN,), jnp.float32),
                                cls_b])
    return params


# ---------------- full forward (mirrors VIMedNLIModel.forward) ----------------
def vimed_nli_forward(params, input_ids, attention_mask, token_type_ids, labels):
    # glue: embedding-table gathers are data-dependent -> plain JAX
    word_e = jnp.take(params["word_emb"], input_ids, axis=0)        # (B, S, H)
    type_e = jnp.take(params["type_emb"], token_type_ids, axis=0)   # (B, S, H)
    pos_e  = params["pos_emb"][:SEQ][None, :, :]                    # (1, S, H)
    emb = (word_e + type_e + pos_e).reshape(ROWS, HIDDEN)

    # block-diagonal additive attention bias: same batch item AND key unmasked;
    # pre-tiled across heads to match the head-batched (ROWS, 4*ROWS) scores.
    key_valid = attention_mask.astype(jnp.float32).reshape(ROWS)
    bid = jnp.repeat(jnp.arange(BATCH, dtype=jnp.int32), SEQ)
    allow = (bid[:, None] == bid[None, :]).astype(jnp.float32) * key_valid[None, :]
    mask_bias = (1.0 - allow) * jnp.float32(-1e9)                   # (ROWS, ROWS)
    mask64 = jnp.tile(mask_bias, (1, NUM_HEADS))                    # (ROWS, 4*ROWS)

    labels_i32 = labels.astype(jnp.int32)                           # (B,) -> SMEM

    seq_out, logits_all, loss = fused_forward(emb, mask64, labels_i32, params)

    sequence_output = seq_out.reshape(BATCH, SEQ, HIDDEN)           # outputs[0]
    logits = logits_all.reshape(BATCH, SEQ, LOGIT_PAD)[:, 0, :NUM_LABELS]
    return loss[0, 0], logits, sequence_output


if __name__ == "__main__":
    key = jax.random.PRNGKey(0)
    pkey, ikey, tkey, lkey = jax.random.split(key, 4)
    params = init_params(pkey)

    input_ids = jax.random.randint(ikey, (BATCH, SEQ), 0, VOCAB, dtype=jnp.int32)
    attention_mask = jnp.array([[1] * SEQ, [1] * (SEQ - 2) + [0, 0]], dtype=jnp.int32)
    token_type_ids = jax.random.randint(tkey, (BATCH, SEQ), 0, TYPE_VOCAB, dtype=jnp.int32)
    labels = jax.random.randint(lkey, (BATCH,), 0, NUM_LABELS, dtype=jnp.int32)

    loss, logits, seq_out = vimed_nli_forward(params, input_ids, attention_mask,
                                              token_type_ids, labels)
    jax.block_until_ready((loss, logits, seq_out))
    print("KERNEL_OK")
</pallas_src>

<mosaic_0001>
module attributes {stable_mosaic.version = 11 : i64} {
  func.func @fused_forward_kernel(%arg0: i32, %arg1: memref<16x128xf32, #tpu.memory_space<vmem>>, %arg2: memref<16x64xf32, #tpu.memory_space<vmem>>, %arg3: memref<2xi32, #tpu.memory_space<smem>>, %arg4: memref<3x128xf32, #tpu.memory_space<vmem>>, %arg5: memref<2x128x384xbf16, #tpu.memory_space<vmem>>, %arg6: memref<2x9x128xf32, #tpu.memory_space<vmem>>, %arg7: memref<2x128x128xbf16, #tpu.memory_space<vmem>>, %arg8: memref<2x128x256xbf16, #tpu.memory_space<vmem>>, %arg9: memref<2x1x256xf32, #tpu.memory_space<vmem>>, %arg10: memref<2x256x128xbf16, #tpu.memory_space<vmem>>, %arg11: memref<128x128xbf16, #tpu.memory_space<vmem>>, %arg12: memref<16x128xf32, #tpu.memory_space<vmem>>, %arg13: memref<16x128xf32, #tpu.memory_space<vmem>>, %arg14: memref<1x1xf32, #tpu.memory_space<smem>>) attributes {dimension_semantics = [#tpu.dimension_semantics<arbitrary>], iteration_bounds = array<i64: 1>, scalar_prefetch = 0 : i64, scratch_operands = 0 : i64, tpu.core_type = #tpu.core_type<tc>, window_params = [{pipeline_mode = #tpu.pipeline_mode<synchronous>, transform_indices = @transform_0, window_bounds = array<i64: 16, 128>}, {pipeline_mode = #tpu.pipeline_mode<synchronous>, transform_indices = @transform_1, window_bounds = array<i64: 16, 64>}, {transform_indices = @transform_2, window_bounds = array<i64: 2>}, {pipeline_mode = #tpu.pipeline_mode<synchronous>, transform_indices = @transform_3, window_bounds = array<i64: 3, 128>}, {pipeline_mode = #tpu.pipeline_mode<synchronous>, transform_indices = @transform_4, window_bounds = array<i64: 2, 128, 384>}, {pipeline_mode = #tpu.pipeline_mode<synchronous>, transform_indices = @transform_5, window_bounds = array<i64: 2, 9, 128>}, {pipeline_mode = #tpu.pipeline_mode<synchronous>, transform_indices = @transform_6, window_bounds = array<i64: 2, 128, 128>}, {pipeline_mode = #tpu.pipeline_mode<synchronous>, transform_indices = @transform_7, window_bounds = array<i64: 2, 128, 256>}, {pipeline_mode = #tpu.pipeline_mode<synchronous>, transform_indices = @transform_8, window_bounds = array<i64: 2, 1, 256>}, {pipeline_mode = #tpu.pipeline_mode<synchronous>, transform_indices = @transform_9, window_bounds = array<i64: 2, 256, 128>}, {pipeline_mode = #tpu.pipeline_mode<synchronous>, transform_indices = @transform_10, window_bounds = array<i64: 128, 128>}, {pipeline_mode = #tpu.pipeline_mode<synchronous>, transform_indices = @transform_11, window_bounds = array<i64: 16, 128>}, {pipeline_mode = #tpu.pipeline_mode<synchronous>, transform_indices = @transform_12, window_bounds = array<i64: 16, 128>}, {transform_indices = @transform_13, window_bounds = array<i64: 1, 1>}]} {
    %0 = tpu.iota {dimensions = array<i32: 0>} : vector<64x128xi32>
    %1 = tpu.iota {dimensions = array<i32: 1>} : vector<64x128xi32>
    %c4_i32 = arith.constant 4 : i32
    %2 = vector.broadcast %c4_i32 : i32 to vector<64x128xi32>
    %3 = arith.shrsi %0, %2 : vector<64x128xi32>
    %c5_i32 = arith.constant 5 : i32
    %4 = vector.broadcast %c5_i32 : i32 to vector<64x128xi32>
    %5 = arith.shrsi %1, %4 : vector<64x128xi32>
    %6 = arith.cmpi eq, %3, %5 : vector<64x128xi32>
    %7 = arith.extui %6 : vector<64x128xi1> to vector<64x128xi32>
    %8 = arith.sitofp %7 : vector<64x128xi32> to vector<64x128xf32>
    %9 = arith.truncf %8 : vector<64x128xf32> to vector<64x128xbf16>
    %cst = arith.constant 0.000000e+00 : bf16
    %10 = vector.broadcast %cst : bf16 to vector<64x128xbf16>
    %c0 = arith.constant 0 : index
    %c0_0 = arith.constant 0 : index
    %11 = vector.load %arg1[%c0, %c0_0] : memref<16x128xf32, #tpu.memory_space<vmem>>, vector<16x128xf32>
    %c0_1 = arith.constant 0 : index
    %c0_2 = arith.constant 0 : index
    %12 = vector.load %arg4[%c0_1, %c0_2] : memref<3x128xf32, #tpu.memory_space<vmem>>, vector<1x128xf32>
    %c1 = arith.constant 1 : index
    %c0_3 = arith.constant 0 : index
    %13 = vector.load %arg4[%c1, %c0_3] : memref<3x128xf32, #tpu.memory_space<vmem>>, vector<1x128xf32>
    %cst_4 = arith.constant dense<0.000000e+00> : vector<16xf32>
    %14 = vector.multi_reduction <add>, %11, %cst_4 [1] : vector<16x128xf32> to vector<16xf32>
    %15 = vector.shape_cast %14 : vector<16xf32> to vector<16x1xf32>
    %cst_5 = arith.constant 1.280000e+02 : f32
    %16 = vector.broadcast %cst_5 : f32 to vector<16x1xf32>
    %17 = arith.divf %15, %16 : vector<16x1xf32>
    %18 = vector.broadcast %17 : vector<16x1xf32> to vector<16x128xf32>
    %19 = arith.subf %11, %18 : vector<16x128xf32>
    %20 = arith.mulf %19, %19 : vector<16x128xf32>
    %cst_6 = arith.constant dense<0.000000e+00> : vector<16xf32>
    %21 = vector.multi_reduction <add>, %20, %cst_6 [1] : vector<16x128xf32> to vector<16xf32>
    %22 = vector.shape_cast %21 : vector<16xf32> to vector<16x1xf32>
    %cst_7 = arith.constant 1.280000e+02 : f32
    %23 = vector.broadcast %cst_7 : f32 to vector<16x1xf32>
    %24 = arith.divf %22, %23 : vector<16x1xf32>
    %25 = vector.broadcast %17 : vector<16x1xf32> to vector<16x128xf32>
    %26 = arith.subf %11, %25 : vector<16x128xf32>
    %cst_8 = arith.constant 9.99999996E-13 : f32
    %27 = vector.broadcast %cst_8 : f32 to vector<16x1xf32>
    %28 = arith.addf %24, %27 : vector<16x1xf32>
    %29 = math.rsqrt %28 : vector<16x1xf32>
    %30 = vector.broadcast %29 : vector<16x1xf32> to vector<16x128xf32>
    %31 = arith.mulf %26, %30 : vector<16x128xf32>
    %32 = vector.broadcast %12 : vector<1x128xf32> to vector<16x128xf32>
    %33 = arith.mulf %31, %32 : vector<16x128xf32>
    %34 = vector.broadcast %13 : vector<1x128xf32> to vector<16x128xf32>
    %35 = arith.addf %33, %34 : vector<16x128xf32>
    %c0_9 = arith.constant 0 : index
    %c0_10 = arith.constant 0 : index
    %36 = vector.load %arg2[%c0_9, %c0_10] : memref<16x64xf32, #tpu.memory_space<vmem>>, vector<16x64xf32>
    %37 = arith.truncf %35 : vector<16x128xf32> to vector<16x128xbf16>
    %c0_11 = arith.constant 0 : index
    %c0_12 = arith.constant 0 : index
    %c0_13 = arith.constant 0 : index
    %38 = vector.load %arg5[%c0_11, %c0_12, %c0_13] : memref<2x128x384xbf16, #tpu.memory_space<vmem>>, vector<1x128x384xbf16>
    %39 = vector.shape_cast %38 : vector<1x128x384xbf16> to vector<128x384xbf16>
    %cst_14 = arith.constant dense<0.000000e+00> : vector<16x384xf32>
    %40 = tpu.matmul %37, %39, %cst_14 {dimension_numbers = #tpu.dot_dimension_numbers<[1], [0], [0], [1], [0, 0, 1, 1], [], []>} : vector<16x128xbf16>, vector<128x384xbf16>, vector<16x384xf32> -> vector<16x384xf32>
    %41 = vector.extract_strided_slice %40 {offsets = [0, 0], sizes = [16, 128], strides = [1, 1]} : vector<16x384xf32> to vector<16x128xf32>
    %c0_15 = arith.constant 0 : index
    %c0_16 = arith.constant 0 : index
    %c0_17 = arith.constant 0 : index
    %42 = vector.load %arg6[%c0_15, %c0_16, %c0_17] : memref<2x9x128xf32, #tpu.memory_space<vmem>>, vector<1x1x128xf32>
    %43 = vector.shape_cast %42 : vector<1x1x128xf32> to vector<1x128xf32>
    %44 = vector.broadcast %43 : vector<1x128xf32> to vector<16x128xf32>
    %45 = arith.addf %41, %44 : vector<16x128xf32>
    %46 = arith.truncf %45 : vector<16x128xf32> to vector<16x128xbf16>
    %47 = vector.extract_strided_slice %40 {offsets = [0, 128], sizes = [16, 128], strides = [1, 1]} : vector<16x384xf32> to vector<16x128xf32>
    %c0_18 = arith.constant 0 : index
    %c1_19 = arith.constant 1 : index
    %c0_20 = arith.constant 0 : index
    %48 = vector.load %arg6[%c0_18, %c1_19, %c0_20] : memref<2x9x128xf32, #tpu.memory_space<vmem>>, vector<1x1x128xf32>
    %49 = vector.shape_cast %48 : vector<1x1x128xf32> to vector<1x128xf32>
    %50 = vector.broadcast %49 : vector<1x128xf32> to vector<16x128xf32>
    %51 = arith.addf %47, %50 : vector<16x128xf32>
    %52 = arith.truncf %51 : vector<16x128xf32> to vector<16x128xbf16>
    %53 = vector.extract_strided_slice %40 {offsets = [0, 256], sizes = [16, 128], strides = [1, 1]} : vector<16x384xf32> to vector<16x128xf32>
    %c0_21 = arith.constant 0 : index
    %c2 = arith.constant 2 : index
    %c0_22 = arith.constant 0 : index
    %54 = vector.load %arg6[%c0_21, %c2, %c0_22] : memref<2x9x128xf32, #tpu.memory_space<vmem>>, vector<1x1x128xf32>
    %55 = vector.shape_cast %54 : vector<1x1x128xf32> to vector<1x128xf32>
    %56 = vector.broadcast %55 : vector<1x128xf32> to vector<16x128xf32>
    %57 = arith.addf %53, %56 : vector<16x128xf32>
    %58 = arith.truncf %57 : vector<16x128xf32> to vector<16x128xbf16>
    %59 = tpu.concatenate %52, %52, %52, %52 in 0 : vector<16x128xbf16>, vector<16x128xbf16>, vector<16x128xbf16>, vector<16x128xbf16> -> vector<64x128xbf16>
    %60 = tpu.concatenate %58, %58, %58, %58 in 0 : vector<16x128xbf16>, vector<16x128xbf16>, vector<16x128xbf16>, vector<16x128xbf16> -> vector<64x128xbf16>
    %61 = arith.select %6, %59, %10 : vector<64x128xi1>, vector<64x128xbf16>
    %62 = arith.select %6, %60, %10 : vector<64x128xi1>, vector<64x128xbf16>
    %cst_23 = arith.constant dense<0.000000e+00> : vector<16x64xf32>
    %63 = tpu.matmul %46, %61, %cst_23 {dimension_numbers = #tpu.dot_dimension_numbers<[1], [1], [0], [0], [0, 0, 1, 0], [], []>} : vector<16x128xbf16>, vector<64x128xbf16>, vector<16x64xf32> -> vector<16x64xf32>
    %64 = arith.addf %63, %36 : vector<16x64xf32>
    %cst_24 = arith.constant dense<0xFF800000> : vector<16xf32>
    %65 = vector.multi_reduction <maximumf>, %64, %cst_24 [1] : vector<16x64xf32> to vector<16xf32>
    %66 = vector.shape_cast %65 : vector<16xf32> to vector<16x1xf32>
    %67 = vector.broadcast %66 : vector<16x1xf32> to vector<16x64xf32>
    %68 = arith.subf %64, %67 : vector<16x64xf32>
    %69 = math.exp %68 : vector<16x64xf32>
    %70 = arith.truncf %69 : vector<16x64xf32> to vector<16x64xbf16>
    %cst_25 = arith.constant dense<0.000000e+00> : vector<16x128xf32>
    %71 = tpu.matmul %70, %62, %cst_25 {dimension_numbers = #tpu.dot_dimension_numbers<[1], [0], [0], [1], [0, 0, 1, 1], [], []>} : vector<16x64xbf16>, vector<64x128xbf16>, vector<16x128xf32> -> vector<16x128xf32>
    %cst_26 = arith.constant dense<0.000000e+00> : vector<16x128xf32>
    %72 = tpu.matmul %70, %9, %cst_26 {dimension_numbers = #tpu.dot_dimension_numbers<[1], [0], [0], [1], [0, 0, 1, 1], [], []>} : vector<16x64xbf16>, vector<64x128xbf16>, vector<16x128xf32> -> vector<16x128xf32>
    %73 = tpu.reciprocal %72 {approx = true} : vector<16x128xf32> -> vector<16x128xf32>
    %74 = arith.mulf %71, %73 : vector<16x128xf32>
    %75 = arith.truncf %74 : vector<16x128xf32> to vector<16x128xbf16>
    %c0_27 = arith.constant 0 : index
    %c0_28 = arith.constant 0 : index
    %c0_29 = arith.constant 0 : index
    %76 = vector.load %arg7[%c0_27, %c0_28, %c0_29] : memref<2x128x128xbf16, #tpu.memory_space<vmem>>, vector<1x128x128xbf16>
    %77 = vector.shape_cast %76 : vector<1x128x128xbf16> to vector<128x128xbf16>
    %cst_30 = arith.constant dense<0.000000e+00> : vector<16x128xf32>
    %78 = tpu.matmul %75, %77, %cst_30 {dimension_numbers = #tpu.dot_dimension_numbers<[1], [0], [0], [1], [0, 0, 1, 1], [], []>} : vector<16x128xbf16>, vector<128x128xbf16>, vector<16x128xf32> -> vector<16x128xf32>
    %c0_31 = arith.constant 0 : index
    %c3 = arith.constant 3 : index
    %c0_32 = arith.constant 0 : index
    %79 = vector.load %arg6[%c0_31, %c3, %c0_32] : memref<2x9x128xf32, #tpu.memory_space<vmem>>, vector<1x1x128xf32>
    %80 = vector.shape_cast %79 : vector<1x1x128xf32> to vector<1x128xf32>
    %81 = vector.broadcast %80 : vector<1x128xf32> to vector<16x128xf32>
    %82 = arith.addf %78, %81 : vector<16x128xf32>
    %83 = arith.addf %35, %82 : vector<16x128xf32>
    %c0_33 = arith.constant 0 : index
    %c4 = arith.constant 4 : index
    %c0_34 = arith.constant 0 : index
    %84 = vector.load %arg6[%c0_33, %c4, %c0_34] : memref<2x9x128xf32, #tpu.memory_space<vmem>>, vector<1x1x128xf32>
    %85 = vector.shape_cast %84 : vector<1x1x128xf32> to vector<1x128xf32>
    %c0_35 = arith.constant 0 : index
    %c5 = arith.constant 5 : index
    %c0_36 = arith.constant 0 : index
    %86 = vector.load %arg6[%c0_35, %c5, %c0_36] : memref<2x9x128xf32, #tpu.memory_space<vmem>>, vector<1x1x128xf32>
    %87 = vector.shape_cast %86 : vector<1x1x128xf32> to vector<1x128xf32>
    %cst_37 = arith.constant dense<0.000000e+00> : vector<16xf32>
    %88 = vector.multi_reduction <add>, %83, %cst_37 [1] : vector<16x128xf32> to vector<16xf32>
    %89 = vector.shape_cast %88 : vector<16xf32> to vector<16x1xf32>
    %cst_38 = arith.constant 1.280000e+02 : f32
    %90 = vector.broadcast %cst_38 : f32 to vector<16x1xf32>
    %91 = arith.divf %89, %90 : vector<16x1xf32>
    %92 = vector.broadcast %91 : vector<16x1xf32> to vector<16x128xf32>
    %93 = arith.subf %83, %92 : vector<16x128xf32>
    %94 = arith.mulf %93, %93 : vector<16x128xf32>
    %cst_39 = arith.constant dense<0.000000e+00> : vector<16xf32>
    %95 = vector.multi_reduction <add>, %94, %cst_39 [1] : vector<16x128xf32> to vector<16xf32>
    %96 = vector.shape_cast %95 : vector<16xf32> to vector<16x1xf32>
    %cst_40 = arith.constant 1.280000e+02 : f32
    %97 = vector.broadcast %cst_40 : f32 to vector<16x1xf32>
    %98 = arith.divf %96, %97 : vector<16x1xf32>
    %99 = vector.broadcast %91 : vector<16x1xf32> to vector<16x128xf32>
    %100 = arith.subf %83, %99 : vector<16x128xf32>
    %cst_41 = arith.constant 9.99999996E-13 : f32
    %101 = vector.broadcast %cst_41 : f32 to vector<16x1xf32>
    %102 = arith.addf %98, %101 : vector<16x1xf32>
    %103 = math.rsqrt %102 : vector<16x1xf32>
    %104 = vector.broadcast %103 : vector<16x1xf32> to vector<16x128xf32>
    %105 = arith.mulf %100, %104 : vector<16x128xf32>
    %106 = vector.broadcast %85 : vector<1x128xf32> to vector<16x128xf32>
    %107 = arith.mulf %105, %106 : vector<16x128xf32>
    %108 = vector.broadcast %87 : vector<1x128xf32> to vector<16x128xf32>
    %109 = arith.addf %107, %108 : vector<16x128xf32>
    %110 = arith.truncf %109 : vector<16x128xf32> to vector<16x128xbf16>
    %c0_42 = arith.constant 0 : index
    %c0_43 = arith.constant 0 : index
    %c0_44 = arith.constant 0 : index
    %111 = vector.load %arg8[%c0_42, %c0_43, %c0_44] : memref<2x128x256xbf16, #tpu.memory_space<vmem>>, vector<1x128x256xbf16>
    %112 = vector.shape_cast %111 : vector<1x128x256xbf16> to vector<128x256xbf16>
    %cst_45 = arith.constant dense<0.000000e+00> : vector<16x256xf32>
    %113 = tpu.matmul %110, %112, %cst_45 {dimension_numbers = #tpu.dot_dimension_numbers<[1], [0], [0], [1], [0, 0, 1, 1], [], []>} : vector<16x128xbf16>, vector<128x256xbf16>, vector<16x256xf32> -> vector<16x256xf32>
    %c0_46 = arith.constant 0 : index
    %c0_47 = arith.constant 0 : index
    %c0_48 = arith.constant 0 : index
    %114 = vector.load %arg9[%c0_46, %c0_47, %c0_48] : memref<2x1x256xf32, #tpu.memory_space<vmem>>, vector<1x1x256xf32>
    %115 = vector.shape_cast %114 : vector<1x1x256xf32> to vector<1x256xf32>
    %116 = vector.broadcast %115 : vector<1x256xf32> to vector<16x256xf32>
    %117 = arith.addf %113, %116 : vector<16x256xf32>
    %cst_49 = arith.constant 5.000000e-01 : f32
    %118 = vector.broadcast %cst_49 : f32 to vector<16x256xf32>
    %119 = arith.mulf %118, %117 : vector<16x256xf32>
    %cst_50 = arith.constant 4.471500e-02 : f32
    %120 = vector.broadcast %cst_50 : f32 to vector<16x256xf32>
    %121 = arith.mulf %120, %117 : vector<16x256xf32>
    %122 = arith.mulf %121, %117 : vector<16x256xf32>
    %123 = arith.mulf %122, %117 : vector<16x256xf32>
    %124 = arith.addf %117, %123 : vector<16x256xf32>
    %cst_51 = arith.constant 0.797884583 : f32
    %125 = vector.broadcast %cst_51 : f32 to vector<16x256xf32>
    %126 = arith.mulf %125, %124 : vector<16x256xf32>
    %127 = math.tanh %126 : vector<16x256xf32>
    %cst_52 = arith.constant 1.000000e+00 : f32
    %128 = vector.broadcast %cst_52 : f32 to vector<16x256xf32>
    %129 = arith.addf %128, %127 : vector<16x256xf32>
    %130 = arith.mulf %119, %129 : vector<16x256xf32>
    %131 = arith.truncf %130 : vector<16x256xf32> to vector<16x256xbf16>
    %c0_53 = arith.constant 0 : index
    %c0_54 = arith.constant 0 : index
    %c0_55 = arith.constant 0 : index
    %132 = vector.load %arg10[%c0_53, %c0_54, %c0_55] : memref<2x256x128xbf16, #tpu.memory_space<vmem>>, vector<1x256x128xbf16>
    %133 = vector.shape_cast %132 : vector<1x256x128xbf16> to vector<256x128xbf16>
    %cst_56 = arith.constant dense<0.000000e+00> : vector<16x128xf32>
    %134 = tpu.matmul %131, %133, %cst_56 {dimension_numbers = #tpu.dot_dimension_numbers<[1], [0], [0], [1], [0, 0, 1, 1], [], []>} : vector<16x256xbf16>, vector<256x128xbf16>, vector<16x128xf32> -> vector<16x128xf32>
    %c0_57 = arith.constant 0 : index
    %c6 = arith.constant 6 : index
    %c0_58 = arith.constant 0 : index
    %135 = vector.load %arg6[%c0_57, %c6, %c0_58] : memref<2x9x128xf32, #tpu.memory_space<vmem>>, vector<1x1x128xf32>
    %136 = vector.shape_cast %135 : vector<1x1x128xf32> to vector<1x128xf32>
    %137 = vector.broadcast %136 : vector<1x128xf32> to vector<16x128xf32>
    %138 = arith.addf %134, %137 : vector<16x128xf32>
    %139 = arith.addf %109, %138 : vector<16x128xf32>
    %c0_59 = arith.constant 0 : index
    %c7 = arith.constant 7 : index
    %c0_60 = arith.constant 0 : index
    %140 = vector.load %arg6[%c0_59, %c7, %c0_60] : memref<2x9x128xf32, #tpu.memory_space<vmem>>, vector<1x1x128xf32>
    %141 = vector.shape_cast %140 : vector<1x1x128xf32> to vector<1x128xf32>
    %c0_61 = arith.constant 0 : index
    %c8 = arith.constant 8 : index
    %c0_62 = arith.constant 0 : index
    %142 = vector.load %arg6[%c0_61, %c8, %c0_62] : memref<2x9x128xf32, #tpu.memory_space<vmem>>, vector<1x1x128xf32>
    %143 = vector.shape_cast %142 : vector<1x1x128xf32> to vector<1x128xf32>
    %cst_63 = arith.constant dense<0.000000e+00> : vector<16xf32>
    %144 = vector.multi_reduction <add>, %139, %cst_63 [1] : vector<16x128xf32> to vector<16xf32>
    %145 = vector.shape_cast %144 : vector<16xf32> to vector<16x1xf32>
    %cst_64 = arith.constant 1.280000e+02 : f32
    %146 = vector.broadcast %cst_64 : f32 to vector<16x1xf32>
    %147 = arith.divf %145, %146 : vector<16x1xf32>
    %148 = vector.broadcast %147 : vector<16x1xf32> to vector<16x128xf32>
    %149 = arith.subf %139, %148 : vector<16x128xf32>
    %150 = arith.mulf %149, %149 : vector<16x128xf32>
    %cst_65 = arith.constant dense<0.000000e+00> : vector<16xf32>
    %151 = vector.multi_reduction <add>, %150, %cst_65 [1] : vector<16x128xf32> to vector<16xf32>
    %152 = vector.shape_cast %151 : vector<16xf32> to vector<16x1xf32>
    %cst_66 = arith.constant 1.280000e+02 : f32
    %153 = vector.broadcast %cst_66 : f32 to vector<16x1xf32>
    %154 = arith.divf %152, %153 : vector<16x1xf32>
    %155 = vector.broadcast %147 : vector<16x1xf32> to vector<16x128xf32>
    %156 = arith.subf %139, %155 : vector<16x128xf32>
    %cst_67 = arith.constant 9.99999996E-13 : f32
    %157 = vector.broadcast %cst_67 : f32 to vector<16x1xf32>
    %158 = arith.addf %154, %157 : vector<16x1xf32>
    %159 = math.rsqrt %158 : vector<16x1xf32>
    %160 = vector.broadcast %159 : vector<16x1xf32> to vector<16x128xf32>
    %161 = arith.mulf %156, %160 : vector<16x128xf32>
    %162 = vector.broadcast %141 : vector<1x128xf32> to vector<16x128xf32>
    %163 = arith.mulf %161, %162 : vector<16x128xf32>
    %164 = vector.broadcast %143 : vector<1x128xf32> to vector<16x128xf32>
    %165 = arith.addf %163, %164 : vector<16x128xf32>
    %166 = arith.truncf %165 : vector<16x128xf32> to vector<16x128xbf16>
    %c1_68 = arith.constant 1 : index
    %c0_69 = arith.constant 0 : index
    %c0_70 = arith.constant 0 : index
    %167 = vector.load %arg5[%c1_68, %c0_69, %c0_70] : memref<2x128x384xbf16, #tpu.memory_space<vmem>>, vector<1x128x384xbf16>
    %168 = vector.shape_cast %167 : vector<1x128x384xbf16> to vector<128x384xbf16>
    %cst_71 = arith.constant dense<0.000000e+00> : vector<16x384xf32>
    %169 = tpu.matmul %166, %168, %cst_71 {dimension_numbers = #tpu.dot_dimension_numbers<[1], [0], [0], [1], [0, 0, 1, 1], [], []>} : vector<16x128xbf16>, vector<128x384xbf16>, vector<16x384xf32> -> vector<16x384xf32>
    %170 = vector.extract_strided_slice %169 {offsets = [0, 0], sizes = [16, 128], strides = [1, 1]} : vector<16x384xf32> to vector<16x128xf32>
    %c1_72 = arith.constant 1 : index
    %c0_73 = arith.constant 0 : index
    %c0_74 = arith.constant 0 : index
    %171 = vector.load %arg6[%c1_72, %c0_73, %c0_74] : memref<2x9x128xf32, #tpu.memory_space<vmem>>, vector<1x1x128xf32>
    %172 = vector.shape_cast %171 : vector<1x1x128xf32> to vector<1x128xf32>
    %173 = vector.broadcast %172 : vector<1x128xf32> to vector<16x128xf32>
    %174 = arith.addf %170, %173 : vector<16x128xf32>
    %175 = arith.truncf %174 : vector<16x128xf32> to vector<16x128xbf16>
    %176 = vector.extract_strided_slice %169 {offsets = [0, 128], sizes = [16, 128], strides = [1, 1]} : vector<16x384xf32> to vector<16x128xf32>
    %c1_75 = arith.constant 1 : index
    %c1_76 = arith.constant 1 : index
    %c0_77 = arith.constant 0 : index
    %177 = vector.load %arg6[%c1_75, %c1_76, %c0_77] : memref<2x9x128xf32, #tpu.memory_space<vmem>>, vector<1x1x128xf32>
    %178 = vector.shape_cast %177 : vector<1x1x128xf32> to vector<1x128xf32>
    %179 = vector.broadcast %178 : vector<1x128xf32> to vector<16x128xf32>
    %180 = arith.addf %176, %179 : vector<16x128xf32>
    %181 = arith.truncf %180 : vector<16x128xf32> to vector<16x128xbf16>
    %182 = vector.extract_strided_slice %169 {offsets = [0, 256], sizes = [16, 128], strides = [1, 1]} : vector<16x384xf32> to vector<16x128xf32>
    %c1_78 = arith.constant 1 : index
    %c2_79 = arith.constant 2 : index
    %c0_80 = arith.constant 0 : index
    %183 = vector.load %arg6[%c1_78, %c2_79, %c0_80] : memref<2x9x128xf32, #tpu.memory_space<vmem>>, vector<1x1x128xf32>
    %184 = vector.shape_cast %183 : vector<1x1x128xf32> to vector<1x128xf32>
    %185 = vector.broadcast %184 : vector<1x128xf32> to vector<16x128xf32>
    %186 = arith.addf %182, %185 : vector<16x128xf32>
    %187 = arith.truncf %186 : vector<16x128xf32> to vector<16x128xbf16>
    %188 = tpu.concatenate %181, %181, %181, %181 in 0 : vector<16x128xbf16>, vector<16x128xbf16>, vector<16x128xbf16>, vector<16x128xbf16> -> vector<64x128xbf16>
    %189 = tpu.concatenate %187, %187, %187, %187 in 0 : vector<16x128xbf16>, vector<16x128xbf16>, vector<16x128xbf16>, vector<16x128xbf16> -> vector<64x128xbf16>
    %190 = arith.select %6, %188, %10 : vector<64x128xi1>, vector<64x128xbf16>
    %191 = arith.select %6, %189, %10 : vector<64x128xi1>, vector<64x128xbf16>
    %cst_81 = arith.constant dense<0.000000e+00> : vector<16x64xf32>
    %192 = tpu.matmul %175, %190, %cst_81 {dimension_numbers = #tpu.dot_dimension_numbers<[1], [1], [0], [0], [0, 0, 1, 0], [], []>} : vector<16x128xbf16>, vector<64x128xbf16>, vector<16x64xf32> -> vector<16x64xf32>
    %193 = arith.addf %192, %36 : vector<16x64xf32>
    %cst_82 = arith.constant dense<0xFF800000> : vector<16xf32>
    %194 = vector.multi_reduction <maximumf>, %193, %cst_82 [1] : vector<16x64xf32> to vector<16xf32>
    %195 = vector.shape_cast %194 : vector<16xf32> to vector<16x1xf32>
    %196 = vector.broadcast %195 : vector<16x1xf32> to vector<16x64xf32>
    %197 = arith.subf %193, %196 : vector<16x64xf32>
    %198 = math.exp %197 : vector<16x64xf32>
    %199 = arith.truncf %198 : vector<16x64xf32> to vector<16x64xbf16>
    %cst_83 = arith.constant dense<0.000000e+00> : vector<16x128xf32>
    %200 = tpu.matmul %199, %191, %cst_83 {dimension_numbers = #tpu.dot_dimension_numbers<[1], [0], [0], [1], [0, 0, 1, 1], [], []>} : vector<16x64xbf16>, vector<64x128xbf16>, vector<16x128xf32> -> vector<16x128xf32>
    %cst_84 = arith.constant dense<0.000000e+00> : vector<16x128xf32>
    %201 = tpu.matmul %199, %9, %cst_84 {dimension_numbers = #tpu.dot_dimension_numbers<[1], [0], [0], [1], [0, 0, 1, 1], [], []>} : vector<16x64xbf16>, vector<64x128xbf16>, vector<16x128xf32> -> vector<16x128xf32>
    %202 = tpu.reciprocal %201 {approx = true} : vector<16x128xf32> -> vector<16x128xf32>
    %203 = arith.mulf %200, %202 : vector<16x128xf32>
    %204 = arith.truncf %203 : vector<16x128xf32> to vector<16x128xbf16>
    %c1_85 = arith.constant 1 : index
    %c0_86 = arith.constant 0 : index
    %c0_87 = arith.constant 0 : index
    %205 = vector.load %arg7[%c1_85, %c0_86, %c0_87] : memref<2x128x128xbf16, #tpu.memory_space<vmem>>, vector<1x128x128xbf16>
    %206 = vector.shape_cast %205 : vector<1x128x128xbf16> to vector<128x128xbf16>
    %cst_88 = arith.constant dense<0.000000e+00> : vector<16x128xf32>
    %207 = tpu.matmul %204, %206, %cst_88 {dimension_numbers = #tpu.dot_dimension_numbers<[1], [0], [0], [1], [0, 0, 1, 1], [], []>} : vector<16x128xbf16>, vector<128x128xbf16>, vector<16x128xf32> -> vector<16x128xf32>
    %c1_89 = arith.constant 1 : index
    %c3_90 = arith.constant 3 : index
    %c0_91 = arith.constant 0 : index
    %208 = vector.load %arg6[%c1_89, %c3_90, %c0_91] : memref<2x9x128xf32, #tpu.memory_space<vmem>>, vector<1x1x128xf32>
    %209 = vector.shape_cast %208 : vector<1x1x128xf32> to vector<1x128xf32>
    %210 = vector.broadcast %209 : vector<1x128xf32> to vector<16x128xf32>
    %211 = arith.addf %207, %210 : vector<16x128xf32>
    %212 = arith.addf %165, %211 : vector<16x128xf32>
    %c1_92 = arith.constant 1 : index
    %c4_93 = arith.constant 4 : index
    %c0_94 = arith.constant 0 : index
    %213 = vector.load %arg6[%c1_92, %c4_93, %c0_94] : memref<2x9x128xf32, #tpu.memory_space<vmem>>, vector<1x1x128xf32>
    %214 = vector.shape_cast %213 : vector<1x1x128xf32> to vector<1x128xf32>
    %c1_95 = arith.constant 1 : index
    %c5_96 = arith.constant 5 : index
    %c0_97 = arith.constant 0 : index
    %215 = vector.load %arg6[%c1_95, %c5_96, %c0_97] : memref<2x9x128xf32, #tpu.memory_space<vmem>>, vector<1x1x128xf32>
    %216 = vector.shape_cast %215 : vector<1x1x128xf32> to vector<1x128xf32>
    %cst_98 = arith.constant dense<0.000000e+00> : vector<16xf32>
    %217 = vector.multi_reduction <add>, %212, %cst_98 [1] : vector<16x128xf32> to vector<16xf32>
    %218 = vector.shape_cast %217 : vector<16xf32> to vector<16x1xf32>
    %cst_99 = arith.constant 1.280000e+02 : f32
    %219 = vector.broadcast %cst_99 : f32 to vector<16x1xf32>
    %220 = arith.divf %218, %219 : vector<16x1xf32>
    %221 = vector.broadcast %220 : vector<16x1xf32> to vector<16x128xf32>
    %222 = arith.subf %212, %221 : vector<16x128xf32>
    %223 = arith.mulf %222, %222 : vector<16x128xf32>
    %cst_100 = arith.constant dense<0.000000e+00> : vector<16xf32>
    %224 = vector.multi_reduction <add>, %223, %cst_100 [1] : vector<16x128xf32> to vector<16xf32>
    %225 = vector.shape_cast %224 : vector<16xf32> to vector<16x1xf32>
    %cst_101 = arith.constant 1.280000e+02 : f32
    %226 = vector.broadcast %cst_101 : f32 to vector<16x1xf32>
    %227 = arith.divf %225, %226 : vector<16x1xf32>
    %228 = vector.broadcast %220 : vector<16x1xf32> to vector<16x128xf32>
    %229 = arith.subf %212, %228 : vector<16x128xf32>
    %cst_102 = arith.constant 9.99999996E-13 : f32
    %230 = vector.broadcast %cst_102 : f32 to vector<16x1xf32>
    %231 = arith.addf %227, %230 : vector<16x1xf32>
    %232 = math.rsqrt %231 : vector<16x1xf32>
    %233 = vector.broadcast %232 : vector<16x1xf32> to vector<16x128xf32>
    %234 = arith.mulf %229, %233 : vector<16x128xf32>
    %235 = vector.broadcast %214 : vector<1x128xf32> to vector<16x128xf32>
    %236 = arith.mulf %234, %235 : vector<16x128xf32>
    %237 = vector.broadcast %216 : vector<1x128xf32> to vector<16x128xf32>
    %238 = arith.addf %236, %237 : vector<16x128xf32>
    %239 = arith.truncf %238 : vector<16x128xf32> to vector<16x128xbf16>
    %c1_103 = arith.constant 1 : index
    %c0_104 = arith.constant 0 : index
    %c0_105 = arith.constant 0 : index
    %240 = vector.load %arg8[%c1_103, %c0_104, %c0_105] : memref<2x128x256xbf16, #tpu.memory_space<vmem>>, vector<1x128x256xbf16>
    %241 = vector.shape_cast %240 : vector<1x128x256xbf16> to vector<128x256xbf16>
    %cst_106 = arith.constant dense<0.000000e+00> : vector<16x256xf32>
    %242 = tpu.matmul %239, %241, %cst_106 {dimension_numbers = #tpu.dot_dimension_numbers<[1], [0], [0], [1], [0, 0, 1, 1], [], []>} : vector<16x128xbf16>, vector<128x256xbf16>, vector<16x256xf32> -> vector<16x256xf32>
    %c1_107 = arith.constant 1 : index
    %c0_108 = arith.constant 0 : index
    %c0_109 = arith.constant 0 : index
    %243 = vector.load %arg9[%c1_107, %c0_108, %c0_109] : memref<2x1x256xf32, #tpu.memory_space<vmem>>, vector<1x1x256xf32>
    %244 = vector.shape_cast %243 : vector<1x1x256xf32> to vector<1x256xf32>
    %245 = vector.broadcast %244 : vector<1x256xf32> to vector<16x256xf32>
    %246 = arith.addf %242, %245 : vector<16x256xf32>
    %cst_110 = arith.constant 5.000000e-01 : f32
    %247 = vector.broadcast %cst_110 : f32 to vector<16x256xf32>
    %248 = arith.mulf %247, %246 : vector<16x256xf32>
    %cst_111 = arith.constant 4.471500e-02 : f32
    %249 = vector.broadcast %cst_111 : f32 to vector<16x256xf32>
    %250 = arith.mulf %249, %246 : vector<16x256xf32>
    %251 = arith.mulf %250, %246 : vector<16x256xf32>
    %252 = arith.mulf %251, %246 : vector<16x256xf32>
    %253 = arith.addf %246, %252 : vector<16x256xf32>
    %cst_112 = arith.constant 0.797884583 : f32
    %254 = vector.broadcast %cst_112 : f32 to vector<16x256xf32>
    %255 = arith.mulf %254, %253 : vector<16x256xf32>
    %256 = math.tanh %255 : vector<16x256xf32>
    %cst_113 = arith.constant 1.000000e+00 : f32
    %257 = vector.broadcast %cst_113 : f32 to vector<16x256xf32>
    %258 = arith.addf %257, %256 : vector<16x256xf32>
    %259 = arith.mulf %248, %258 : vector<16x256xf32>
    %260 = arith.truncf %259 : vector<16x256xf32> to vector<16x256xbf16>
    %c1_114 = arith.constant 1 : index
    %c0_115 = arith.constant 0 : index
    %c0_116 = arith.constant 0 : index
    %261 = vector.load %arg10[%c1_114, %c0_115, %c0_116] : memref<2x256x128xbf16, #tpu.memory_space<vmem>>, vector<1x256x128xbf16>
    %262 = vector.shape_cast %261 : vector<1x256x128xbf16> to vector<256x128xbf16>
    %cst_117 = arith.constant dense<0.000000e+00> : vector<16x128xf32>
    %263 = tpu.matmul %260, %262, %cst_117 {dimension_numbers = #tpu.dot_dimension_numbers<[1], [0], [0], [1], [0, 0, 1, 1], [], []>} : vector<16x256xbf16>, vector<256x128xbf16>, vector<16x128xf32> -> vector<16x128xf32>
    %c1_118 = arith.constant 1 : index
    %c6_119 = arith.constant 6 : index
    %c0_120 = arith.constant 0 : index
    %264 = vector.load %arg6[%c1_118, %c6_119, %c0_120] : memref<2x9x128xf32, #tpu.memory_space<vmem>>, vector<1x1x128xf32>
    %265 = vector.shape_cast %264 : vector<1x1x128xf32> to vector<1x128xf32>
    %266 = vector.broadcast %265 : vector<1x128xf32> to vector<16x128xf32>
    %267 = arith.addf %263, %266 : vector<16x128xf32>
    %268 = arith.addf %238, %267 : vector<16x128xf32>
    %c1_121 = arith.constant 1 : index
    %c7_122 = arith.constant 7 : index
    %c0_123 = arith.constant 0 : index
    %269 = vector.load %arg6[%c1_121, %c7_122, %c0_123] : memref<2x9x128xf32, #tpu.memory_space<vmem>>, vector<1x1x128xf32>
    %270 = vector.shape_cast %269 : vector<1x1x128xf32> to vector<1x128xf32>
    %c1_124 = arith.constant 1 : index
    %c8_125 = arith.constant 8 : index
    %c0_126 = arith.constant 0 : index
    %271 = vector.load %arg6[%c1_124, %c8_125, %c0_126] : memref<2x9x128xf32, #tpu.memory_space<vmem>>, vector<1x1x128xf32>
    %272 = vector.shape_cast %271 : vector<1x1x128xf32> to vector<1x128xf32>
    %cst_127 = arith.constant dense<0.000000e+00> : vector<16xf32>
    %273 = vector.multi_reduction <add>, %268, %cst_127 [1] : vector<16x128xf32> to vector<16xf32>
    %274 = vector.shape_cast %273 : vector<16xf32> to vector<16x1xf32>
    %cst_128 = arith.constant 1.280000e+02 : f32
    %275 = vector.broadcast %cst_128 : f32 to vector<16x1xf32>
    %276 = arith.divf %274, %275 : vector<16x1xf32>
    %277 = vector.broadcast %276 : vector<16x1xf32> to vector<16x128xf32>
    %278 = arith.subf %268, %277 : vector<16x128xf32>
    %279 = arith.mulf %278, %278 : vector<16x128xf32>
    %cst_129 = arith.constant dense<0.000000e+00> : vector<16xf32>
    %280 = vector.multi_reduction <add>, %279, %cst_129 [1] : vector<16x128xf32> to vector<16xf32>
    %281 = vector.shape_cast %280 : vector<16xf32> to vector<16x1xf32>
    %cst_130 = arith.constant 1.280000e+02 : f32
    %282 = vector.broadcast %cst_130 : f32 to vector<16x1xf32>
    %283 = arith.divf %281, %282 : vector<16x1xf32>
    %284 = vector.broadcast %276 : vector<16x1xf32> to vector<16x128xf32>
    %285 = arith.subf %268, %284 : vector<16x128xf32>
    %cst_131 = arith.constant 9.99999996E-13 : f32
    %286 = vector.broadcast %cst_131 : f32 to vector<16x1xf32>
    %287 = arith.addf %283, %286 : vector<16x1xf32>
    %288 = math.rsqrt %287 : vector<16x1xf32>
    %289 = vector.broadcast %288 : vector<16x1xf32> to vector<16x128xf32>
    %290 = arith.mulf %285, %289 : vector<16x128xf32>
    %291 = vector.broadcast %270 : vector<1x128xf32> to vector<16x128xf32>
    %292 = arith.mulf %290, %291 : vector<16x128xf32>
    %293 = vector.broadcast %272 : vector<1x128xf32> to vector<16x128xf32>
    %294 = arith.addf %292, %293 : vector<16x128xf32>
    %c0_132 = arith.constant 0 : index
    %c0_133 = arith.constant 0 : index
    %295 = vector.load %arg12[%c0_132, %c0_133] : memref<16x128xf32, #tpu.memory_space<vmem>>, vector<16x128xf32>
    tpu.vector_store %arg12[%c0_132, %c0_133], %294 {strides = array<i32>} : memref<16x128xf32, #tpu.memory_space<vmem>>, vector<16x128xf32>,
    %296 = arith.truncf %294 : vector<16x128xf32> to vector<16x128xbf16>
    %c0_134 = arith.constant 0 : index
    %c0_135 = arith.constant 0 : index
    %297 = vector.load %arg11[%c0_134, %c0_135] : memref<128x128xbf16, #tpu.memory_space<vmem>>, vector<128x128xbf16>
    %cst_136 = arith.constant dense<0.000000e+00> : vector<16x128xf32>
    %298 = tpu.matmul %296, %297, %cst_136 {dimension_numbers = #tpu.dot_dimension_numbers<[1], [0], [0], [1], [0, 0, 1, 1], [], []>} : vector<16x128xbf16>, vector<128x128xbf16>, vector<16x128xf32> -> vector<16x128xf32>
    %c2_137 = arith.constant 2 : index
    %c0_138 = arith.constant 0 : index
    %299 = vector.load %arg4[%c2_137, %c0_138] : memref<3x128xf32, #tpu.memory_space<vmem>>, vector<1x128xf32>
    %300 = vector.broadcast %299 : vector<1x128xf32> to vector<16x128xf32>
    %301 = arith.addf %298, %300 : vector<16x128xf32>
    %c0_139 = arith.constant 0 : index
    %c0_140 = arith.constant 0 : index
    %302 = vector.load %arg13[%c0_139, %c0_140] : memref<16x128xf32, #tpu.memory_space<vmem>>, vector<16x128xf32>
    tpu.vector_store %arg13[%c0_139, %c0_140], %301 {strides = array<i32>} : memref<16x128xf32, #tpu.memory_space<vmem>>, vector<16x128xf32>,
    %303 = tpu.iota {dimensions = array<i32: 1>} : vector<16x128xi32>
    %c3_i32 = arith.constant 3 : i32
    %304 = vector.broadcast %c3_i32 : i32 to vector<16x128xi32>
    %305 = arith.cmpi slt, %303, %304 : vector<16x128xi32>
    %cst_141 = arith.constant -1.000000e+30 : f32
    %306 = vector.broadcast %cst_141 : f32 to vector<16x128xf32>
    %307 = arith.select %305, %301, %306 : vector<16x128xi1>, vector<16x128xf32>
    %cst_142 = arith.constant dense<0xFF800000> : vector<16xf32>
    %308 = vector.multi_reduction <maximumf>, %307, %cst_142 [1] : vector<16x128xf32> to vector<16xf32>
    %309 = vector.shape_cast %308 : vector<16xf32> to vector<16x1xf32>
    %310 = vector.broadcast %309 : vector<16x1xf32> to vector<16x128xf32>
    %311 = arith.subf %307, %310 : vector<16x128xf32>
    %312 = math.exp %311 : vector<16x128xf32>
    %cst_143 = arith.constant dense<0.000000e+00> : vector<16xf32>
    %313 = vector.multi_reduction <add>, %312, %cst_143 [1] : vector<16x128xf32> to vector<16xf32>
    %314 = vector.shape_cast %313 : vector<16xf32> to vector<16x1xf32>
    %315 = math.log %314 : vector<16x1xf32>
    %316 = arith.addf %309, %315 : vector<16x1xf32>
    %317 = tpu.iota {dimensions = array<i32: 0>} : vector<16x1xi32>
    %c0_i32 = arith.constant 0 : i32
    %318 = vector.broadcast %c0_i32 : i32 to vector<16x1xi32>
    %c3_i32_144 = arith.constant 3 : i32
    %319 = vector.broadcast %c3_i32_144 : i32 to vector<16x1xi32>
    %320 = arith.shrsi %317, %319 : vector<16x1xi32>
    %c0_i32_145 = arith.constant 0 : i32
    %321 = vector.broadcast %c0_i32_145 : i32 to vector<16x1xi32>
    %322 = arith.cmpi eq, %320, %321 : vector<16x1xi32>
    %c0_146 = arith.constant 0 : index
    %323 = memref.load %arg3[%c0_146] : memref<2xi32, #tpu.memory_space<smem>>
    %324 = vector.broadcast %323 : i32 to vector<16x1xi32>
    %325 = arith.select %322, %324, %318 : vector<16x1xi1>, vector<16x1xi32>
    %c3_i32_147 = arith.constant 3 : i32
    %326 = vector.broadcast %c3_i32_147 : i32 to vector<16x1xi32>
    %327 = arith.shrsi %317, %326 : vector<16x1xi32>
    %c1_i32 = arith.constant 1 : i32
    %328 = vector.broadcast %c1_i32 : i32 to vector<16x1xi32>
    %329 = arith.cmpi eq, %327, %328 : vector<16x1xi32>
    %c1_148 = arith.constant 1 : index
    %330 = memref.load %arg3[%c1_148] : memref<2xi32, #tpu.memory_space<smem>>
    %331 = vector.broadcast %330 : i32 to vector<16x1xi32>
    %332 = arith.select %329, %331, %325 : vector<16x1xi1>, vector<16x1xi32>
    %333 = vector.broadcast %332 : vector<16x1xi32> to vector<16x128xi32>
    %334 = arith.cmpi eq, %303, %333 : vector<16x128xi32>
    %cst_149 = arith.constant 0.000000e+00 : f32
    %335 = vector.broadcast %cst_149 : f32 to vector<16x128xf32>
    %336 = arith.select %334, %301, %335 : vector<16x128xi1>, vector<16x128xf32>
    %cst_150 = arith.constant dense<0.000000e+00> : vector<16xf32>
    %337 = vector.multi_reduction <add>, %336, %cst_150 [1] : vector<16x128xf32> to vector<16xf32>
    %338 = vector.shape_cast %337 : vector<16xf32> to vector<16x1xf32>
    %c7_i32 = arith.constant 7 : i32
    %339 = vector.broadcast %c7_i32 : i32 to vector<16x1xi32>
    %340 = arith.andi %317, %339 : vector<16x1xi32>
    %c0_i32_151 = arith.constant 0 : i32
    %341 = vector.broadcast %c0_i32_151 : i32 to vector<16x1xi32>
    %342 = arith.cmpi eq, %340, %341 : vector<16x1xi32>
    %343 = arith.extui %342 : vector<16x1xi1> to vector<16x1xi32>
    %344 = arith.sitofp %343 : vector<16x1xi32> to vector<16x1xf32>
    %345 = arith.subf %316, %338 : vector<16x1xf32>
    %346 = arith.mulf %345, %344 : vector<16x1xf32>
    %347 = vector.shape_cast %346 : vector<16x1xf32> to vector<1x16x1xf32>
    %cst_152 = arith.constant dense<0.000000e+00> : vector<1xf32>
    %348 = vector.multi_reduction <add>, %347, %cst_152 [1, 2] : vector<1x16x1xf32> to vector<1xf32>
    %349 = vector.shape_cast %348 : vector<1xf32> to vector<1x1x1xf32>
    %350 = vector.extract %349[0, 0, 0] : f32 from vector<1x1x1xf32>
    %cst_153 = arith.constant 5.000000e-01 : f32
    %351 = arith.mulf %350, %cst_153 : f32
    %c0_154 = arith.constant 0 : index
    %c0_155 = arith.constant 0 : index
    %352 = memref.load %arg14[%c0_154, %c0_155] : memref<1x1xf32, #tpu.memory_space<smem>>
    memref.store %351, %arg14[%c0_154, %c0_155] : memref<1x1xf32, #tpu.memory_space<smem>>
    return
  }
  func.func @transform_0(%arg0: i32) -> (i32, i32) {
    %c0_i32 = arith.constant 0 : i32
    %c0_i32_0 = arith.constant 0 : i32
    %c0_i32_1 = arith.constant 0 : i32
    return %c0_i32, %c0_i32_0 : i32, i32
  }
  func.func @transform_1(%arg0: i32) -> (i32, i32) {
    %c0_i32 = arith.constant 0 : i32
    %c0_i32_0 = arith.constant 0 : i32
    %c0_i32_1 = arith.constant 0 : i32
    return %c0_i32, %c0_i32_0 : i32, i32
  }
  func.func @transform_2(%arg0: i32) -> i32 {
    %c0_i32 = arith.constant 0 : i32
    %c0_i32_0 = arith.constant 0 : i32
    return %c0_i32 : i32
  }
  func.func @transform_3(%arg0: i32) -> (i32, i32) {
    %c0_i32 = arith.constant 0 : i32
    %c0_i32_0 = arith.constant 0 : i32
    %c0_i32_1 = arith.constant 0 : i32
    return %c0_i32, %c0_i32_0 : i32, i32
  }
  func.func @transform_4(%arg0: i32) -> (i32, i32, i32) {
    %c0_i32 = arith.constant 0 : i32
    %c0_i32_0 = arith.constant 0 : i32
    %c0_i32_1 = arith.constant 0 : i32
    %c0_i32_2 = arith.constant 0 : i32
    return %c0_i32, %c0_i32_0, %c0_i32_1 : i32, i32, i32
  }
  func.func @transform_5(%arg0: i32) -> (i32, i32, i32) {
    %c0_i32 = arith.constant 0 : i32
    %c0_i32_0 = arith.constant 0 : i32
    %c0_i32_1 = arith.constant 0 : i32
    %c0_i32_2 = arith.constant 0 : i32
    return %c0_i32, %c0_i32_0, %c0_i32_1 : i32, i32, i32
  }
  func.func @transform_6(%arg0: i32) -> (i32, i32, i32) {
    %c0_i32 = arith.constant 0 : i32
    %c0_i32_0 = arith.constant 0 : i32
    %c0_i32_1 = arith.constant 0 : i32
    %c0_i32_2 = arith.constant 0 : i32
    return %c0_i32, %c0_i32_0, %c0_i32_1 : i32, i32, i32
  }
  func.func @transform_7(%arg0: i32) -> (i32, i32, i32) {
    %c0_i32 = arith.constant 0 : i32
    %c0_i32_0 = arith.constant 0 : i32
    %c0_i32_1 = arith.constant 0 : i32
    %c0_i32_2 = arith.constant 0 : i32
    return %c0_i32, %c0_i32_0, %c0_i32_1 : i32, i32, i32
  }
  func.func @transform_8(%arg0: i32) -> (i32, i32, i32) {
    %c0_i32 = arith.constant 0 : i32
    %c0_i32_0 = arith.constant 0 : i32
    %c0_i32_1 = arith.constant 0 : i32
    %c0_i32_2 = arith.constant 0 : i32
    return %c0_i32, %c0_i32_0, %c0_i32_1 : i32, i32, i32
  }
  func.func @transform_9(%arg0: i32) -> (i32, i32, i32) {
    %c0_i32 = arith.constant 0 : i32
    %c0_i32_0 = arith.constant 0 : i32
    %c0_i32_1 = arith.constant 0 : i32
    %c0_i32_2 = arith.constant 0 : i32
    return %c0_i32, %c0_i32_0, %c0_i32_1 : i32, i32, i32
  }
  func.func @transform_10(%arg0: i32) -> (i32, i32) {
    %c0_i32 = arith.constant 0 : i32
    %c0_i32_0 = arith.constant 0 : i32
    %c0_i32_1 = arith.constant 0 : i32
    return %c0_i32, %c0_i32_0 : i32, i32
  }
  func.func @transform_11(%arg0: i32) -> (i32, i32) {
    %c0_i32 = arith.constant 0 : i32
    %c0_i32_0 = arith.constant 0 : i32
    %c0_i32_1 = arith.constant 0 : i32
    return %c0_i32, %c0_i32_0 : i32, i32
  }
  func.func @transform_12(%arg0: i32) -> (i32, i32) {
    %c0_i32 = arith.constant 0 : i32
    %c0_i32_0 = arith.constant 0 : i32
    %c0_i32_1 = arith.constant 0 : i32
    return %c0_i32, %c0_i32_0 : i32, i32
  }
  func.func @transform_13(%arg0: i32) -> (i32, i32) {
    %c0_i32 = arith.constant 0 : i32
    %c0_i32_0 = arith.constant 0 : i32
    %c0_i32_1 = arith.constant 0 : i32
    return %c0_i32, %c0_i32_0 : i32, i32
  }
}

</mosaic_0001>

<llo_original>
// kernel: tpu_custom_call.1
$region0: #{tpu_custom_call.1}
  #allocation0 [shape = 'u32[]', space=smem, size = 0x4, offset = 0x4, fixed_abs, tag = 'smem constant byte address 0x4 - core index']
  #allocation1 [shape = 'u32[144,128]{1,0:T(1,128)}', space=vmem, size = 0x12000, scoped, tag = 'internal scratch']
  %s0 = inlined_call_operand.hbm [shape: f32[16,128], index: 0, kind: input, shape index: {}]
  %s1 = inlined_call_operand.hbm [shape: f32[16,64], index: 1, kind: input, shape index: {}]
  %s2 = inlined_call_operand.hbm [shape: s32[2], index: 2, kind: input, shape index: {}]
  %s3 = inlined_call_operand.vmem [shape: f32[3,128], index: 3, kind: input, shape index: {}]
  %s4 = inlined_call_operand.hbm [shape: bf16[2,128,384], index: 4, kind: input, shape index: {}]
  %s5 = inlined_call_operand.vmem [shape: f32[2,9,128], index: 5, kind: input, shape index: {}]
  %s6 = inlined_call_operand.hbm [shape: bf16[2,128,128], index: 6, kind: input, shape index: {}]
  %s7 = inlined_call_operand.hbm [shape: bf16[2,128,256], index: 7, kind: input, shape index: {}]
  %s8 = inlined_call_operand.hbm [shape: f32[2,1,256], index: 8, kind: input, shape index: {}]
  %s9 = inlined_call_operand.hbm [shape: bf16[2,256,128], index: 9, kind: input, shape index: {}]
  %s10 = inlined_call_operand.vmem [shape: bf16[128,128], index: 10, kind: input, shape index: {}]
  %s11 = inlined_call_operand.hbm [shape: f32[16,128], index: 11, kind: output, shape index: {0}]
  %s12 = inlined_call_operand.hbm [shape: f32[16,128], index: 12, kind: output, shape index: {1}]
  %s13 = inlined_call_operand.hbm [shape: f32[1,1], index: 13, kind: output, shape index: {2}]
  %14 = xla_tuple %s11, %s12, %s13
  %s15 = sld [smem:[#allocation0]]
  $region102: #{tpu_custom_call.1} parent=0
    _
  %s17 = ssub.s32 1, %s15
  %s18 = scalar_select 0, %s17, %s15
  $region1: #{tpu_custom_call.1} parent=0
    #allocation2 [shape = 'u8[8192]{0}', space=vmem, size = 0x2000, scoped, tag = 'input window, operand 0, single buffered']
    #allocation3 [shape = 's32[1]{0}', space=sflag, size = 0x4, scoped, tag = 'scoped memory for tpu_custom_call.1']
    #allocation4 [shape = 's32[1]{0}', space=sflag, size = 0x4, scoped, tag = 'scoped memory for tpu_custom_call.1']
    #allocation5 [shape = 's32[1]{0}', space=sflag, size = 0x4, scoped, tag = 'scoped memory for tpu_custom_call.1']
    #allocation6 [shape = 's32[1]{0}', space=sflag, size = 0x4, scoped, tag = 'scoped memory for tpu_custom_call.1']
    #allocation7 [shape = 'u8[8192]{0}', space=vmem, size = 0x2000, scoped, tag = 'input window, operand 1, single buffered']
    #allocation8 [shape = 's32[1]{0}', space=sflag, size = 0x4, scoped, tag = 'scoped memory for tpu_custom_call.1']
    #allocation9 [shape = 'u8[512]{0}', space=smem, size = 0x200, scoped, tag = 'input window, operand 2, single buffered']
    #allocation10 [shape = 'u8[196608]{0}', space=vmem, size = 0x30000, scoped, tag = 'input window, operand 4, single buffered']
    #allocation11 [shape = 'u8[65536]{0}', space=vmem, size = 0x10000, scoped, tag = 'input window, operand 6, single buffered']
    #allocation12 [shape = 's32[1]{0}', space=sflag, size = 0x4, scoped, tag = 'scoped memory for tpu_custom_call.1']
    #allocation13 [shape = 'u8[131072]{0}', space=vmem, size = 0x20000, scoped, tag = 'input window, operand 7, single buffered']
    #allocation14 [shape = 'u8[2048]{0}', space=vmem, size = 0x800, scoped, tag = 'input window, operand 8, single buffered']
    #allocation15 [shape = 's32[1]{0}', space=sflag, size = 0x4, scoped, tag = 'scoped memory for tpu_custom_call.1']
    #allocation16 [shape = 'u8[131072]{0}', space=vmem, size = 0x20000, scoped, tag = 'input window, operand 9, single buffered']
    #allocation17 [shape = 'u8[8192]{0}', space=vmem, size = 0x2000, scoped, tag = 'output window, operand 0, single buffered']
    #allocation18 [shape = 'u8[8192]{0}', space=vmem, size = 0x2000, scoped, tag = 'output window, operand 1, single buffered']
    #allocation19 [shape = 's32[1]{0}', space=sflag, size = 0x4, scoped, tag = 'scoped memory for tpu_custom_call.1']
    #allocation20 [shape = 'u8[512]{0}', space=smem, size = 0x200, scoped, tag = 'output window, operand 2, single buffered']
    %19 = vsyncpa [#allocation3], 0
    %20 = vsyncpa [#allocation8], 0
    %21 = vsyncpa [#allocation5], 0
    %22 = vsyncpa [#allocation12], 0
    %23 = vsyncpa [#allocation15], 0
    %24 = vsyncpa [#allocation4], 0
    %25 = vsyncpa [#allocation19], 0
    %26 = vsyncpa [#allocation6], 0
    // Predicated region
    $region2: #{tpu_custom_call.1} parent=1 // pred_check
      _
    $region3: #{tpu_custom_call.1} parent=1 // pred_check_branch
      %28 = sbr.rel (0) target = $region5
    $region4: #{tpu_custom_call.1} parent=1 // pred_region
      %s30 = ssub.s32 256, 256
      %31 = vsyncadd [#allocation3], %s30
      %s32 = sshll.u32 [#allocation2], 4
      %s33 = int_to_ptr.vmem [resolvable:$true] %s32
      %38 = dma.hbm_to_vmem [thread:$0]  %s0, 256, %s33, [#allocation3], 128, 128, 8
    $region5: #{tpu_custom_call.1} parent=1 // pred_fallthru
      _
    // Predicated region
    $region6: #{tpu_custom_call.1} parent=1 // pred_check
      _
    $region7: #{tpu_custom_call.1} parent=1 // pred_check_branch
      %40 = sbr.rel (0) target = $region9
    $region8: #{tpu_custom_call.1} parent=1 // pred_region
      %s42 = ssub.s32 256, 256
      %43 = vsyncadd [#allocation8], %s42
      %s44 = sshll.u32 [#allocation7], 4
      %s45 = int_to_ptr.vmem [resolvable:$true] %s44
      %50 = dma.hbm_to_vmem [thread:$0]  %s1, 256, %s45, [#allocation8], 128, 128, 8
    $region9: #{tpu_custom_call.1} parent=1 // pred_fallthru
      _
    // Predicated region
    $region10: #{tpu_custom_call.1} parent=1 // pred_check
      _
    $region11: #{tpu_custom_call.1} parent=1 // pred_check_branch
      %52 = sbr.rel (0) target = $region13
    $region12: #{tpu_custom_call.1} parent=1 // pred_region
      %s54 = ssub.s32 16, 16
      %55 = vsyncadd [#allocation5], %s54
      %58 = dma.hbm_to_smem %s2, 16, [#allocation9], [#allocation5]
    $region13: #{tpu_custom_call.1} parent=1 // pred_fallthru
      _
    // Predicated region
    $region14: #{tpu_custom_call.1} parent=1 // pred_check
      _
    $region15: #{tpu_custom_call.1} parent=1 // pred_check_branch
      %60 = sbr.rel (0) target = $region17
    $region16: #{tpu_custom_call.1} parent=1 // pred_region
      _
    $region17: #{tpu_custom_call.1} parent=1 // pred_fallthru
      _
    // Predicated region
    $region18: #{tpu_custom_call.1} parent=1 // pred_check
      _
    $region19: #{tpu_custom_call.1} parent=1 // pred_check_branch
      %62 = sbr.rel (0) target = $region21
    $region20: #{tpu_custom_call.1} parent=1 // pred_region
      %s64 = ssub.s32 6144, 6144
      %65 = vsyncadd [#allocation8], %s64
      %s66 = sshll.u32 [#allocation10], 4
      %s67 = int_to_ptr.vmem [resolvable:$true] %s66
      %72 = dma.hbm_to_vmem [thread:$0]  %s4, 6144, %s67, [#allocation8], 192, 192, 12
    $region21: #{tpu_custom_call.1} parent=1 // pred_fallthru
      _
    // Predicated region
    $region22: #{tpu_custom_call.1} parent=1 // pred_check
      _
    $region23: #{tpu_custom_call.1} parent=1 // pred_check_branch
      %74 = sbr.rel (0) target = $region25
    $region24: #{tpu_custom_call.1} parent=1 // pred_region
      _
    $region25: #{tpu_custom_call.1} parent=1 // pred_fallthru
      _
    // Predicated region
    $region26: #{tpu_custom_call.1} parent=1 // pred_check
      _
    $region27: #{tpu_custom_call.1} parent=1 // pred_check_branch
      %76 = sbr.rel (0) target = $region29
    $region28: #{tpu_custom_call.1} parent=1 // pred_region
      %s78 = ssub.s32 2048, 2048
      %79 = vsyncadd [#allocation12], %s78
      %s80 = sshll.u32 [#allocation11], 4
      %s81 = int_to_ptr.vmem [resolvable:$true] %s80
      %86 = dma.hbm_to_vmem [thread:$0]  %s6, 2048, %s81, [#allocation12], 64, 64, 4
    $region29: #{tpu_custom_call.1} parent=1 // pred_fallthru
      _
    // Predicated region
    $region30: #{tpu_custom_call.1} parent=1 // pred_check
      _
    $region31: #{tpu_custom_call.1} parent=1 // pred_check_branch
      %88 = sbr.rel (0) target = $region33
    $region32: #{tpu_custom_call.1} parent=1 // pred_region
      %s90 = ssub.s32 4096, 4096
      %91 = vsyncadd [#allocation12], %s90
      %s92 = sshll.u32 [#allocation13], 4
      %s93 = int_to_ptr.vmem [resolvable:$true] %s92
      %98 = dma.hbm_to_vmem [thread:$0]  %s7, 4096, %s93, [#allocation12], 128, 128, 8
    $region33: #{tpu_custom_call.1} parent=1 // pred_fallthru
      _
    // Predicated region
    $region34: #{tpu_custom_call.1} parent=1 // pred_check
      _
    $region35: #{tpu_custom_call.1} parent=1 // pred_check_branch
      %100 = sbr.rel (0) target = $region37
    $region36: #{tpu_custom_call.1} parent=1 // pred_region
      %s102 = ssub.s32 64, 64
      %103 = vsyncadd [#allocation15], %s102
      %s104 = sshll.u32 [#allocation14], 4
      %s105 = int_to_ptr.vmem [resolvable:$true] %s104
      %110 = dma.hbm_to_vmem [thread:$0]  %s8, 64, %s105, [#allocation15], 32, 32, 2
    $region37: #{tpu_custom_call.1} parent=1 // pred_fallthru
      _
    // Predicated region
    $region38: #{tpu_custom_call.1} parent=1 // pred_check
      _
    $region39: #{tpu_custom_call.1} parent=1 // pred_check_branch
      %112 = sbr.rel (0) target = $region41
    $region40: #{tpu_custom_call.1} parent=1 // pred_region
      %s114 = ssub.s32 4096, 4096
      %115 = vsyncadd [#allocation15], %s114
      %s116 = sshll.u32 [#allocation16], 4
      %s117 = int_to_ptr.vmem [resolvable:$true] %s116
      %122 = dma.hbm_to_vmem [thread:$0]  %s9, 4096, %s117, [#allocation15], 64, 64, 4
    $region41: #{tpu_custom_call.1} parent=1 // pred_fallthru
      _
    // Predicated region
    $region42: #{tpu_custom_call.1} parent=1 // pred_check
      _
    $region43: #{tpu_custom_call.1} parent=1 // pred_check_branch
      %124 = sbr.rel (0) target = $region45
    $region44: #{tpu_custom_call.1} parent=1 // pred_region
      _
    $region45: #{tpu_custom_call.1} parent=1 // pred_fallthru
      _
    // Predicated region
    $region46: #{tpu_custom_call.1} parent=1 // pred_check
      _
    $region47: #{tpu_custom_call.1} parent=1 // pred_check_branch
      %126 = sbr.rel (0) target = $region49
    $region48: #{tpu_custom_call.1} parent=1 // pred_region
      %127 = dma.done [#allocation3], 256
    $region49: #{tpu_custom_call.1} parent=1 // pred_fallthru
      _
    // Predicated region
    $region50: #{tpu_custom_call.1} parent=1 // pred_check
      _
    $region51: #{tpu_custom_call.1} parent=1 // pred_check_branch
      %129 = sbr.rel (0) target = $region53
    $region52: #{tpu_custom_call.1} parent=1 // pred_region
      %130 = dma.done [#allocation8], 256
    $region53: #{tpu_custom_call.1} parent=1 // pred_fallthru
      _
    // Predicated region
    $region54: #{tpu_custom_call.1} parent=1 // pred_check
      _
    $region55: #{tpu_custom_call.1} parent=1 // pred_check_branch
      %132 = sbr.rel (0) target = $region57
    $region56: #{tpu_custom_call.1} parent=1 // pred_region
      %133 = dma.done [#allocation5], 16
    $region57: #{tpu_custom_call.1} parent=1 // pred_fallthru
      _
    // Predicated region
    $region58: #{tpu_custom_call.1} parent=1 // pred_check
      _
    $region59: #{tpu_custom_call.1} parent=1 // pred_check_branch
      %135 = sbr.rel (0) target = $region61
    $region60: #{tpu_custom_call.1} parent=1 // pred_region
      %136 = dma.done [#allocation8], 6144
    $region61: #{tpu_custom_call.1} parent=1 // pred_fallthru
      _
    // Predicated region
    $region62: #{tpu_custom_call.1} parent=1 // pred_check
      _
    $region63: #{tpu_custom_call.1} parent=1 // pred_check_branch
      %138 = sbr.rel (0) target = $region65
    $region64: #{tpu_custom_call.1} parent=1 // pred_region
      %139 = dma.done [#allocation12], 2048
    $region65: #{tpu_custom_call.1} parent=1 // pred_fallthru
      _
    // Predicated region
    $region66: #{tpu_custom_call.1} parent=1 // pred_check
      _
    $region67: #{tpu_custom_call.1} parent=1 // pred_check_branch
      %141 = sbr.rel (0) target = $region69
    $region68: #{tpu_custom_call.1} parent=1 // pred_region
      %142 = dma.done [#allocation12], 4096
    $region69: #{tpu_custom_call.1} parent=1 // pred_fallthru
      _
    // Predicated region
    $region70: #{tpu_custom_call.1} parent=1 // pred_check
      _
    $region71: #{tpu_custom_call.1} parent=1 // pred_check_branch
      %144 = sbr.rel (0) target = $region73
    $region72: #{tpu_custom_call.1} parent=1 // pred_region
      %145 = dma.done [#allocation15], 64
    $region73: #{tpu_custom_call.1} parent=1 // pred_fallthru
      _
    // Predicated region
    $region74: #{tpu_custom_call.1} parent=1 // pred_check
      _
    $region75: #{tpu_custom_call.1} parent=1 // pred_check_branch
      %147 = sbr.rel (0) target = $region77
    $region76: #{tpu_custom_call.1} parent=1 // pred_region
      %148 = dma.done [#allocation15], 4096
    $region77: #{tpu_custom_call.1} parent=1 // pred_fallthru
      _
    %149 = sfence
    %v151 = vlaneseq
    %v152 = vshrl.u32 %v151, 7
    %v153 = vadd.s32 %v152, 8
    %v154 = vadd.s32 %v152, 16
    %v155 = vadd.s32 %v152, 24
    %v156 = vadd.s32 %v152, 32
    %v157 = vadd.s32 %v152, 40
    %v158 = vadd.s32 %v152, 48
    %v159 = vadd.s32 %v152, 56
    %v160 = vlaneseq
    %v161 = vand.u32 %v160, 127
    %v162 = vshra.s32 %v152, 4
    %v163 = vshra.s32 %v153, 4
    %v164 = vshra.s32 %v154, 4
    %v165 = vshra.s32 %v155, 4
    %v166 = vshra.s32 %v156, 4
    %v167 = vshra.s32 %v157, 4
    %v168 = vshra.s32 %v158, 4
    %v169 = vshra.s32 %v159, 4
    %v170 = vshra.s32 %v161, 5
    %vm171 = vcmp.eq.s32.totalorder %v162, %v170
    %vm172 = vcmp.eq.s32.totalorder %v163, %v170
    %vm173 = vcmp.eq.s32.totalorder %v164, %v170
    %vm174 = vcmp.eq.s32.totalorder %v165, %v170
    %vm175 = vcmp.eq.s32.totalorder %v166, %v170
    %vm176 = vcmp.eq.s32.totalorder %v167, %v170
    %vm177 = vcmp.eq.s32.totalorder %v168, %v170
    %vm178 = vcmp.eq.s32.totalorder %v169, %v170
    %v179 = vsel %vm171, 1, 0
    %v180 = vsel %vm172, 1, 0
    %v181 = vsel %vm173, 1, 0
    %v182 = vsel %vm174, 1, 0
    %v183 = vsel %vm175, 1, 0
    %v184 = vsel %vm176, 1, 0
    %v185 = vsel %vm177, 1, 0
    %v186 = vsel %vm178, 1, 0
    %v187 = vcvt.s32.f32 %v179
    %v188 = vcvt.s32.f32 %v180
    %v189 = vcvt.s32.f32 %v181
    %v190 = vcvt.s32.f32 %v182
    %v191 = vcvt.s32.f32 %v183
    %v192 = vcvt.s32.f32 %v184
    %v193 = vcvt.s32.f32 %v185
    %v194 = vcvt.s32.f32 %v186
    %v195 = vpack.c.bf16 %v188, %v187
    %v196 = vpack.c.bf16 %v190, %v189
    %v197 = vpack.c.bf16 %v192, %v191
    %v198 = vpack.c.bf16 %v194, %v193
    %v199 = vld [vmem:[#allocation2] sm:$0xff]
    %v200 = vld [vmem:[#allocation2 + $0x8] sm:$0xff]
    %v201 = vld [vmem:[%s3] sm:$0x1]
    %v202 = vld [vmem:[%s3 + $0x1] sm:$0x1]
    %203 = vadd.xlane.f32.xlu0 %v199
    %v204 = vpop.xlane.xlu0 %203
    %205 = vadd.xlane.f32.xlu0 %v200
    %v206 = vpop.xlane.xlu0 %205
    %v207 = vrcp.pop 128.0
    %v208 = vmul.f32 %v204, %v207
    %v209 = vmul.f32 %v206, %v207
    %v210 = vsub.f32 %v199, %v208
    %v211 = vsub.f32 %v200, %v209
    %v212 = vmul.f32 %v210, %v210
    %v213 = vmul.f32 %v211, %v211
    %214 = vadd.xlane.f32.xlu0 %v212
    %v215 = vpop.xlane.xlu0 %214
    %216 = vadd.xlane.f32.xlu0 %v213
    %v217 = vpop.xlane.xlu0 %216
    %v218 = vmul.f32 %v215, %v207
    %v219 = vmul.f32 %v217, %v207
    %v220 = vadd.f32 %v218, 1e-12
    %v221 = vadd.f32 %v219, 1e-12
    %v222 = vrsqrt.pop %v220
    %v223 = vrsqrt.pop %v221
    %v224 = vmul.f32 %v210, %v222
    %v225 = vmul.f32 %v211, %v223
    %v226 = vlaneseq
    %v227 = vshrl.u32 %v226, 7
    %v228 = vsub.s32 0, %v227
    %v229 = vrot.slane %v201, %v228
    %v230 = vmul.f32 %v224, %v229
    %v231 = vmul.f32 %v225, %v229
    %v232 = vlaneseq
    %v233 = vshrl.u32 %v232, 7
    %v234 = vsub.s32 0, %v233
    %v235 = vrot.slane %v202, %v234
    %v236 = vadd.f32 %v230, %v235
    %v237 = vadd.f32 %v231, %v235
    %v238 = vld [vmem:[#allocation7] sm:$0xff]
    %v239 = vld [vmem:[#allocation7 + $0x8] sm:$0xff]
    %v240 = vpack.c.bf16 %v237, %v236
    %v241 = vld [vmem:[#allocation10] sm:$0xff]
    %v242 = vld [vmem:[#allocation10 + $0x8] sm:$0xf]
    %v243 = vld [vmem:[#allocation10 + $0xc] sm:$0xff]
    %v244 = vld [vmem:[#allocation10 + $0x14] sm:$0xf]
    %v245 = vld [vmem:[#allocation10 + $0x18] sm:$0xff]
    %v246 = vld [vmem:[#allocation10 + $0x20] sm:$0xf]
    %v247 = vld [vmem:[#allocation10 + $0x24] sm:$0xff]
    %v248 = vld [vmem:[#allocation10 + $0x2c] sm:$0xf]
    %v249 = vld [vmem:[#allocation10 + $0x30] sm:$0xff]
    %v250 = vld [vmem:[#allocation10 + $0x38] sm:$0xf]
    %v251 = vld [vmem:[#allocation10 + $0x3c] sm:$0xff]
    %v252 = vld [vmem:[#allocation10 + $0x44] sm:$0xf]
    %v253 = vld [vmem:[#allocation10 + $0x48] sm:$0xff]
    %v254 = vld [vmem:[#allocation10 + $0x50] sm:$0xf]
    %v255 = vld [vmem:[#allocation10 + $0x54] sm:$0xff]
    %v256 = vld [vmem:[#allocation10 + $0x5c] sm:$0xf]
    %v257 = vld [vmem:[#allocation10 + $0x60] sm:$0xff]
    %v258 = vld [vmem:[#allocation10 + $0x68] sm:$0xf]
    %v259 = vld [vmem:[#allocation10 + $0x6c] sm:$0xff]
    %v260 = vld [vmem:[#allocation10 + $0x74] sm:$0xf]
    %v261 = vld [vmem:[#allocation10 + $0x78] sm:$0xff]
    %v262 = vld [vmem:[#allocation10 + $0x80] sm:$0xf]
    %v263 = vld [vmem:[#allocation10 + $0x84] sm:$0xff]
    %v264 = vld [vmem:[#allocation10 + $0x8c] sm:$0xf]
    %v265 = vld [vmem:[#allocation10 + $0x90] sm:$0xff]
    %v266 = vld [vmem:[#allocation10 + $0x98] sm:$0xf]
    %v267 = vld [vmem:[#allocation10 + $0x9c] sm:$0xff]
    %v268 = vld [vmem:[#allocation10 + $0xa4] sm:$0xf]
    %v269 = vld [vmem:[#allocation10 + $0xa8] sm:$0xff]
    %v270 = vld [vmem:[#allocation10 + $0xb0] sm:$0xf]
    %v271 = vld [vmem:[#allocation10 + $0xb4] sm:$0xff]
    %v272 = vld [vmem:[#allocation10 + $0xbc] sm:$0xf]
    %v305 = vunpack.c.l.b16 %v241
    %v306 = vunpack.c.h.b16 %v241
    %v307 = vunpack.c.l.b16 %v242
    %v308 = vunpack.c.l.b16 %v243
    %v309 = vunpack.c.h.b16 %v243
    %v310 = vunpack.c.l.b16 %v244
    %v311 = vunpack.c.l.b16 %v245
    %v312 = vunpack.c.h.b16 %v245
    %v313 = vunpack.c.l.b16 %v246
    %v314 = vunpack.c.l.b16 %v247
    %v315 = vunpack.c.h.b16 %v247
    %v316 = vunpack.c.l.b16 %v248
    %v317 = vunpack.c.l.b16 %v249
    %v318 = vunpack.c.h.b16 %v249
    %v319 = vunpack.c.l.b16 %v250
    %v320 = vunpack.c.l.b16 %v251
    %v321 = vunpack.c.h.b16 %v251
    %v322 = vunpack.c.l.b16 %v252
    %v323 = vunpack.c.l.b16 %v253
    %v324 = vunpack.c.h.b16 %v253
    %v325 = vunpack.c.l.b16 %v254
    %v326 = vunpack.c.l.b16 %v255
    %v327 = vunpack.c.h.b16 %v255
    %v328 = vunpack.c.l.b16 %v256
    %v329 = vunpack.c.l.b16 %v257
    %v330 = vunpack.c.h.b16 %v257
    %v331 = vunpack.c.l.b16 %v258
    %v332 = vunpack.c.l.b16 %v259
    %v333 = vunpack.c.h.b16 %v259
    %v334 = vunpack.c.l.b16 %v260
    %v335 = vunpack.c.l.b16 %v261
    %v336 = vunpack.c.h.b16 %v261
    %v337 = vunpack.c.l.b16 %v262
    %v338 = vunpack.c.l.b16 %v263
    %v339 = vunpack.c.h.b16 %v263
    %v340 = vunpack.c.l.b16 %v264
    %v341 = vunpack.c.l.b16 %v265
    %v342 = vunpack.c.h.b16 %v265
    %v343 = vunpack.c.l.b16 %v266
    %v344 = vunpack.c.l.b16 %v267
    %v345 = vunpack.c.h.b16 %v267
    %v346 = vunpack.c.l.b16 %v268
    %v347 = vunpack.c.l.b16 %v269
    %v348 = vunpack.c.h.b16 %v269
    %v349 = vunpack.c.l.b16 %v270
    %v350 = vunpack.c.l.b16 %v271
    %v351 = vunpack.c.h.b16 %v271
    %v352 = vunpack.c.l.b16 %v272
    %v353 = vpack.c.b16 %v308, %v305
    %v354 = vpack.c.b16 %v309, %v306
    %v355 = vpack.c.b16 %v310, %v307
    %v356 = vpack.c.b16 %v314, %v311
    %v357 = vpack.c.b16 %v315, %v312
    %v358 = vpack.c.b16 %v316, %v313
    %v359 = vpack.c.b16 %v320, %v317
    %v360 = vpack.c.b16 %v321, %v318
    %v361 = vpack.c.b16 %v322, %v319
    %v362 = vpack.c.b16 %v326, %v323
    %v363 = vpack.c.b16 %v327, %v324
    %v364 = vpack.c.b16 %v328, %v325
    %v365 = vpack.c.b16 %v332, %v329
    %v366 = vpack.c.b16 %v333, %v330
    %v367 = vpack.c.b16 %v334, %v331
    %v368 = vpack.c.b16 %v338, %v335
    %v369 = vpack.c.b16 %v339, %v336
    %v370 = vpack.c.b16 %v340, %v337
    %v371 = vpack.c.b16 %v344, %v341
    %v372 = vpack.c.b16 %v345, %v342
    %v373 = vpack.c.b16 %v346, %v343
    %v374 = vpack.c.b16 %v350, %v347
    %v375 = vpack.c.b16 %v351, %v348
    %v376 = vpack.c.b16 %v352, %v349
    %401 = vmatprep.subr.bf16.mxu0 %v375
    %402 = vmatpush1.bf16.msra.mxu0 %v374
    %403 = vmatprep.subr.bf16.mxu0 %v372
    %404 = vmatpush1.bf16.msra.mxu0 %v371
    %405 = vmatprep.subr.bf16.mxu0 %v369
    %406 = vmatpush1.bf16.msra.mxu0 %v368
    %407 = vmatprep.subr.bf16.mxu0 %v366
    %408 = vmatpush1.bf16.msra.mxu0 %v365
    %409 = vmatprep.subr.bf16.mxu0 %v363
    %410 = vmatpush1.bf16.msra.mxu0 %v362
    %411 = vmatprep.subr.bf16.mxu0 %v360
    %412 = vmatpush1.bf16.msra.mxu0 %v359
    %413 = vmatprep.subr.bf16.mxu0 %v357
    %414 = vmatpush1.bf16.msra.mxu0 %v356
    %415 = vmatprep.subr.bf16.mxu0 %v354
    %416 = vmatpush1.bf16.msra.mxu0 %v353
    %417 = vmatprep.subr.bf16.mxu0 0
    %418 = vmatpush2.bf16.msra.mxu0 0
    %419 = vmatprep.subr.bf16.mxu0 0
    %420 = vmatpush2.bf16.msra.mxu0 0
    %421 = vmatprep.subr.bf16.mxu0 0
    %422 = vmatpush2.bf16.msra.mxu0 0
    %423 = vmatprep.subr.bf16.mxu0 0
    %424 = vmatpush2.bf16.msra.mxu0 0
    %425 = vmatprep.subr.bf16.mxu0 0
    %426 = vmatpush2.bf16.msra.mxu0 0
    %427 = vmatprep.subr.bf16.mxu0 0
    %428 = vmatpush2.bf16.msra.mxu0 0
    %429 = vmatprep.subr.bf16.mxu0 0
    %430 = vmatpush2.bf16.msra.mxu0 0
    %431 = vmatprep.subr.bf16.mxu0 0
    %432 = vmatpush2.bf16.msra.mxu0 0
    %433 = vmatprep.mubr.bf16.mxu0 0
    %434 = vmatmul.mubr.bf16.gmra.mxu0 %v240
    %v435 = vpop.f32.mrf.mxu0
    %v436 = vadd.f32 0.0, %v435
    %v437 = vpop.f32.mrf.mxu0
    %v438 = vadd.f32 0.0, %v437
    %v439 = vpop.f32.mrf.mxu0
    %v440 = vadd.f32 0.0, %v439
    %v441 = vpop.f32.mrf.mxu0
    %v442 = vadd.f32 0.0, %v441
    %443 = vdwg.mxu0
    %444 = vmatprep.subr.bf16.mxu0 0
    %445 = vmatpush1.bf16.msra.mxu0 %v376
    %446 = vmatprep.subr.bf16.mxu0 0
    %447 = vmatpush1.bf16.msra.mxu0 %v373
    %448 = vmatprep.subr.bf16.mxu0 0
    %449 = vmatpush1.bf16.msra.mxu0 %v370
    %450 = vmatprep.subr.bf16.mxu0 0
    %451 = vmatpush1.bf16.msra.mxu0 %v367
    %452 = vmatprep.subr.bf16.mxu0 0
    %453 = vmatpush1.bf16.msra.mxu0 %v364
    %454 = vmatprep.subr.bf16.mxu0 0
    %455 = vmatpush1.bf16.msra.mxu0 %v361
    %456 = vmatprep.subr.bf16.mxu0 0
    %457 = vmatpush1.bf16.msra.mxu0 %v358
    %458 = vmatprep.subr.bf16.mxu0 0
    %459 = vmatpush1.bf16.msra.mxu0 %v355
    %460 = vmatprep.subr.bf16.mxu0 0
    %461 = vmatpush2.bf16.msra.mxu0 0
    %462 = vmatprep.subr.bf16.mxu0 0
    %463 = vmatpush2.bf16.msra.mxu0 0
    %464 = vmatprep.subr.bf16.mxu0 0
    %465 = vmatpush2.bf16.msra.mxu0 0
    %466 = vmatprep.subr.bf16.mxu0 0
    %467 = vmatpush2.bf16.msra.mxu0 0
    %468 = vmatprep.subr.bf16.mxu0 0
    %469 = vmatpush2.bf16.msra.mxu0 0
    %470 = vmatprep.subr.bf16.mxu0 0
    %471 = vmatpush2.bf16.msra.mxu0 0
    %472 = vmatprep.subr.bf16.mxu0 0
    %473 = vmatpush2.bf16.msra.mxu0 0
    %474 = vmatprep.subr.bf16.mxu0 0
    %475 = vmatpush2.bf16.msra.mxu0 0
    %476 = vmatprep.mubr.bf16.mxu0 0
    %477 = vmatmul.mubr.bf16.gmra.mxu0 %v240
    %v478 = vpop.f32.mrf.mxu0
    %v479 = vadd.f32 0.0, %v478
    %v480 = vpop.f32.mrf.mxu0
    %v481 = vpop.f32.mrf.mxu0
    %v482 = vadd.f32 0.0, %v481
    %v483 = vpop.f32.mrf.mxu0
    %484 = vdwg.mxu0
    %v485 = vld [vmem:[%s5] sm:$0x1]
    %v486 = vlaneseq
    %v487 = vshrl.u32 %v486, 7
    %v488 = vsub.s32 0, %v487
    %v489 = vrot.slane %v485, %v488
    %v490 = vadd.f32 %v436, %v489
    %v491 = vadd.f32 %v440, %v489
    %v492 = vpack.c.bf16 %v491, %v490
    %v493 = vld [vmem:[%s5 + $0x1] sm:$0x1]
    %v494 = vlaneseq
    %v495 = vshrl.u32 %v494, 7
    %v496 = vsub.s32 0, %v495
    %v497 = vrot.slane %v493, %v496
    %v498 = vadd.f32 %v438, %v497
    %v499 = vadd.f32 %v442, %v497
    %v500 = vpack.c.bf16 %v499, %v498
    %v501 = vld [vmem:[%s5 + $0x2] sm:$0x1]
    %v502 = vlaneseq
    %v503 = vshrl.u32 %v502, 7
    %v504 = vsub.s32 0, %v503
    %v505 = vrot.slane %v501, %v504
    %v506 = vadd.f32 %v479, %v505
    %v507 = vadd.f32 %v482, %v505
    %v508 = vpack.c.bf16 %v507, %v506
    %vm509 = vmpackc.low %vm172, %vm171
    %vm510 = vmpackc.low %vm174, %vm173
    %vm511 = vmpackc.low %vm176, %vm175
    %vm512 = vmpackc.low %vm178, %vm177
    %v513 = vsel %vm509, %v500, 0
    %v514 = vsel %vm510, %v500, 0
    %v515 = vsel %vm511, %v500, 0
    %v516 = vsel %vm512, %v500, 0
    %v517 = vsel %vm509, %v508, 0
    %v518 = vsel %vm510, %v508, 0
    %v519 = vsel %vm511, %v508, 0
    %v520 = vsel %vm512, %v508, 0
    %521 = vmatprep.subr.bf16.mxu0 0
    %522 = vmatpush1.bf16.xpose.msra.mxu0 0
    %523 = vmatprep.subr.bf16.mxu0 0
    %524 = vmatpush1.bf16.xpose.msra.mxu0 0
    %525 = vmatprep.subr.bf16.mxu0 0
    %526 = vmatpush1.bf16.xpose.msra.mxu0 0
    %527 = vmatprep.subr.bf16.mxu0 0
    %528 = vmatpush1.bf16.xpose.msra.mxu0 0
    %529 = vmatprep.subr.bf16.mxu0 0
    %530 = vmatpush1.bf16.xpose.msra.mxu0 %v516
    %531 = vmatprep.subr.bf16.mxu0 0
    %532 = vmatpush1.bf16.xpose.msra.mxu0 %v515
    %533 = vmatprep.subr.bf16.mxu0 0
    %534 = vmatpush1.bf16.xpose.msra.mxu0 %v514
    %535 = vmatprep.subr.bf16.mxu0 0
    %536 = vmatpush1.bf16.xpose.msra.mxu0 %v513
    %537 = vmatprep.subr.bf16.mxu0 0
    %538 = vmatpush2.bf16.xpose.msra.mxu0 0
    %539 = vmatprep.subr.bf16.mxu0 0
    %540 = vmatpush2.bf16.xpose.msra.mxu0 0
    %541 = vmatprep.subr.bf16.mxu0 0
    %542 = vmatpush2.bf16.xpose.msra.mxu0 0
    %543 = vmatprep.subr.bf16.mxu0 0
    %544 = vmatpush2.bf16.xpose.msra.mxu0 0
    %545 = vmatprep.subr.bf16.mxu0 0
    %546 = vmatpush2.bf16.xpose.msra.mxu0 0
    %547 = vmatprep.subr.bf16.mxu0 0
    %548 = vmatpush2.bf16.xpose.msra.mxu0 0
    %549 = vmatprep.subr.bf16.mxu0 0
    %550 = vmatpush2.bf16.xpose.msra.mxu0 0
    %551 = vmatprep.subr.bf16.mxu0 0
    %552 = vmatpush2.bf16.xpose.msra.mxu0 0
    %553 = vmatprep.mubr.bf16.mxu0 0
    %554 = vmatmul.mubr.bf16.gmra.mxu0 %v492
    %v555 = vpop.f32.mrf.mxu0
    %v556 = vadd.f32 %v238, %v555
    %v557 = vpop.f32.mrf.mxu0
    %v558 = vpop.f32.mrf.mxu0
    %v559 = vadd.f32 %v239, %v558
    %v560 = vpop.f32.mrf.mxu0
    %561 = vdwg.mxu0
    %vm562 = vcmask 523264
    %v563 = vsel %vm562, %v556, -inf
    %564 = vmax.xlane.f32.xlu0 %v563
    %v565 = vpop.xlane.xlu0 %564
    %v566 = vsel %vm562, %v559, -inf
    %567 = vmax.xlane.f32.xlu0 %v566
    %v568 = vpop.xlane.xlu0 %567
    %v569 = vsub.f32 %v556, %v565
    %v570 = vsub.f32 %v559, %v568
    %v571 = vmul.f32 %v569, 1.442695
    %v572 = vpow.pop %v571
    %v573 = vmul.f32 %v570, 1.442695
    %v574 = vpow.pop %v573
    %v575 = vpack.c.bf16 %v574, %v572
    %v577 = vsel %vm562, %v575, 0
    %579 = vmatprep.subr.bf16.mxu0 0
    %580 = vmatpush1.bf16.msra.mxu0 0
    %581 = vmatprep.subr.bf16.mxu0 0
    %582 = vmatpush1.bf16.msra.mxu0 0
    %583 = vmatprep.subr.bf16.mxu0 0
    %584 = vmatpush1.bf16.msra.mxu0 0
    %585 = vmatprep.subr.bf16.mxu0 0
    %586 = vmatpush1.bf16.msra.mxu0 0
    %587 = vmatprep.subr.bf16.mxu0 0
    %588 = vmatpush1.bf16.msra.mxu0 %v520
    %589 = vmatprep.subr.bf16.mxu0 0
    %590 = vmatpush1.bf16.msra.mxu0 %v519
    %591 = vmatprep.subr.bf16.mxu0 0
    %592 = vmatpush1.bf16.msra.mxu0 %v518
    %593 = vmatprep.subr.bf16.mxu0 0
    %594 = vmatpush1.bf16.msra.mxu0 %v517
    %595 = vmatprep.subr.bf16.mxu0 0
    %596 = vmatpush2.bf16.msra.mxu0 0
    %597 = vmatprep.subr.bf16.mxu0 0
    %598 = vmatpush2.bf16.msra.mxu0 0
    %599 = vmatprep.subr.bf16.mxu0 0
    %600 = vmatpush2.bf16.msra.mxu0 0
    %601 = vmatprep.subr.bf16.mxu0 0
    %602 = vmatpush2.bf16.msra.mxu0 0
    %603 = vmatprep.subr.bf16.mxu0 0
    %604 = vmatpush2.bf16.msra.mxu0 0
    %605 = vmatprep.subr.bf16.mxu0 0
    %606 = vmatpush2.bf16.msra.mxu0 0
    %607 = vmatprep.subr.bf16.mxu0 0
    %608 = vmatpush2.bf16.msra.mxu0 0
    %609 = vmatprep.subr.bf16.mxu0 0
    %610 = vmatpush2.bf16.msra.mxu0 0
    %611 = vmatprep.mubr.bf16.mxu0 0
    %612 = vmatmul.mubr.bf16.gmra.mxu0 %v577
    %v613 = vpop.f32.mrf.mxu0
    %v614 = vadd.f32 0.0, %v613
    %v615 = vpop.f32.mrf.mxu0
    %v616 = vpop.f32.mrf.mxu0
    %v617 = vadd.f32 0.0, %v616
    %v618 = vpop.f32.mrf.mxu0
    %619 = vdwg.mxu0
    %620 = vmatprep.subr.bf16.mxu0 0
    %621 = vmatpush1.bf16.msra.mxu0 0
    %622 = vmatprep.subr.bf16.mxu0 0
    %623 = vmatpush1.bf16.msra.mxu0 0
    %624 = vmatprep.subr.bf16.mxu0 0
    %625 = vmatpush1.bf16.msra.mxu0 0
    %626 = vmatprep.subr.bf16.mxu0 0
    %627 = vmatpush1.bf16.msra.mxu0 0
    %628 = vmatprep.subr.bf16.mxu0 0
    %629 = vmatpush1.bf16.msra.mxu0 %v198
    %630 = vmatprep.subr.bf16.mxu0 0
    %631 = vmatpush1.bf16.msra.mxu0 %v197
    %632 = vmatprep.subr.bf16.mxu0 0
    %633 = vmatpush1.bf16.msra.mxu0 %v196
    %634 = vmatprep.subr.bf16.mxu0 0
    %635 = vmatpush1.bf16.msra.mxu0 %v195
    %636 = vmatprep.subr.bf16.mxu0 0
    %637 = vmatpush2.bf16.msra.mxu0 0
    %638 = vmatprep.subr.bf16.mxu0 0
    %639 = vmatpush2.bf16.msra.mxu0 0
    %640 = vmatprep.subr.bf16.mxu0 0
    %641 = vmatpush2.bf16.msra.mxu0 0
    %642 = vmatprep.subr.bf16.mxu0 0
    %643 = vmatpush2.bf16.msra.mxu0 0
    %644 = vmatprep.subr.bf16.mxu0 0
    %645 = vmatpush2.bf16.msra.mxu0 0
    %646 = vmatprep.subr.bf16.mxu0 0
    %647 = vmatpush2.bf16.msra.mxu0 0
    %648 = vmatprep.subr.bf16.mxu0 0
    %649 = vmatpush2.bf16.msra.mxu0 0
    %650 = vmatprep.subr.bf16.mxu0 0
    %651 = vmatpush2.bf16.msra.mxu0 0
    %652 = vmatprep.mubr.bf16.mxu0 0
    %653 = vmatmul.mubr.bf16.gmra.mxu0 %v577
    %v654 = vpop.f32.mrf.mxu0
    %v655 = vadd.f32 0.0, %v654
    %v656 = vpop.f32.mrf.mxu0
    %v657 = vpop.f32.mrf.mxu0
    %v658 = vadd.f32 0.0, %v657
    %v659 = vpop.f32.mrf.mxu0
    %660 = vdwg.mxu0
    %v661 = vrcp.pop %v655
    %v662 = vrcp.pop %v658
    %v663 = vmul.f32 %v614, %v661
    %v664 = vmul.f32 %v617, %v662
    %v665 = vpack.c.bf16 %v664, %v663
    %v666 = vld [vmem:[#allocation11] sm:$0xf]
    %v667 = vld [vmem:[#allocation11 + $0x4] sm:$0xf]
    %v668 = vld [vmem:[#allocation11 + $0x8] sm:$0xf]
    %v669 = vld [vmem:[#allocation11 + $0xc] sm:$0xf]
    %v670 = vld [vmem:[#allocation11 + $0x10] sm:$0xf]
    %v671 = vld [vmem:[#allocation11 + $0x14] sm:$0xf]
    %v672 = vld [vmem:[#allocation11 + $0x18] sm:$0xf]
    %v673 = vld [vmem:[#allocation11 + $0x1c] sm:$0xf]
    %v674 = vld [vmem:[#allocation11 + $0x20] sm:$0xf]
    %v675 = vld [vmem:[#allocation11 + $0x24] sm:$0xf]
    %v676 = vld [vmem:[#allocation11 + $0x28] sm:$0xf]
    %v677 = vld [vmem:[#allocation11 + $0x2c] sm:$0xf]
    %v678 = vld [vmem:[#allocation11 + $0x30] sm:$0xf]
    %v679 = vld [vmem:[#allocation11 + $0x34] sm:$0xf]
    %v680 = vld [vmem:[#allocation11 + $0x38] sm:$0xf]
    %v681 = vld [vmem:[#allocation11 + $0x3c] sm:$0xf]
    %v682 = vld [vmem:[%s5 + $0x3] sm:$0x1]
    %v683 = vlaneseq
    %v684 = vshrl.u32 %v683, 7
    %v685 = vsub.s32 0, %v684
    %v686 = vrot.slane %v682, %v685
    %v703 = vunpack.c.l.b16 %v666
    %v704 = vunpack.c.l.b16 %v667
    %v705 = vunpack.c.l.b16 %v668
    %v706 = vunpack.c.l.b16 %v669
    %v707 = vunpack.c.l.b16 %v670
    %v708 = vunpack.c.l.b16 %v671
    %v709 = vunpack.c.l.b16 %v672
    %v710 = vunpack.c.l.b16 %v673
    %v711 = vunpack.c.l.b16 %v674
    %v712 = vunpack.c.l.b16 %v675
    %v713 = vunpack.c.l.b16 %v676
    %v714 = vunpack.c.l.b16 %v677
    %v715 = vunpack.c.l.b16 %v678
    %v716 = vunpack.c.l.b16 %v679
    %v717 = vunpack.c.l.b16 %v680
    %v718 = vunpack.c.l.b16 %v681
    %v719 = vpack.c.b16 %v704, %v703
    %v720 = vpack.c.b16 %v706, %v705
    %v721 = vpack.c.b16 %v708, %v707
    %v722 = vpack.c.b16 %v710, %v709
    %v723 = vpack.c.b16 %v712, %v711
    %v724 = vpack.c.b16 %v714, %v713
    %v725 = vpack.c.b16 %v716, %v715
    %v726 = vpack.c.b16 %v718, %v717
    %735 = vmatprep.subr.bf16.mxu0 0
    %736 = vmatpush1.bf16.msra.mxu0 %v726
    %737 = vmatprep.subr.bf16.mxu0 0
    %738 = vmatpush1.bf16.msra.mxu0 %v725
    %739 = vmatprep.subr.bf16.mxu0 0
    %740 = vmatpush1.bf16.msra.mxu0 %v724
    %741 = vmatprep.subr.bf16.mxu0 0
    %742 = vmatpush1.bf16.msra.mxu0 %v723
    %743 = vmatprep.subr.bf16.mxu0 0
    %744 = vmatpush1.bf16.msra.mxu0 %v722
    %745 = vmatprep.subr.bf16.mxu0 0
    %746 = vmatpush1.bf16.msra.mxu0 %v721
    %747 = vmatprep.subr.bf16.mxu0 0
    %748 = vmatpush1.bf16.msra.mxu0 %v720
    %749 = vmatprep.subr.bf16.mxu0 0
    %750 = vmatpush1.bf16.msra.mxu0 %v719
    %751 = vmatprep.subr.bf16.mxu0 0
    %752 = vmatpush2.bf16.msra.mxu0 0
    %753 = vmatprep.subr.bf16.mxu0 0
    %754 = vmatpush2.bf16.msra.mxu0 0
    %755 = vmatprep.subr.bf16.mxu0 0
    %756 = vmatpush2.bf16.msra.mxu0 0
    %757 = vmatprep.subr.bf16.mxu0 0
    %758 = vmatpush2.bf16.msra.mxu0 0
    %759 = vmatprep.subr.bf16.mxu0 0
    %760 = vmatpush2.bf16.msra.mxu0 0
    %761 = vmatprep.subr.bf16.mxu0 0
    %762 = vmatpush2.bf16.msra.mxu0 0
    %763 = vmatprep.subr.bf16.mxu0 0
    %764 = vmatpush2.bf16.msra.mxu0 0
    %765 = vmatprep.subr.bf16.mxu0 0
    %766 = vmatpush2.bf16.msra.mxu0 0
    %767 = vmatprep.mubr.bf16.mxu0 0
    %768 = vmatmul.mubr.bf16.gmra.mxu0 %v665
    %v769 = vpop.f32.mrf.mxu0
    %v770 = vadd.f32 %v686, %v769
    %v771 = vpop.f32.mrf.mxu0
    %v772 = vpop.f32.mrf.mxu0
    %v773 = vadd.f32 %v686, %v772
    %v774 = vpop.f32.mrf.mxu0
    %775 = vdwg.mxu0
    %v776 = vadd.f32 %v236, %v770
    %v777 = vadd.f32 %v237, %v773
    %v778 = vld [vmem:[%s5 + $0x4] sm:$0x1]
    %v779 = vld [vmem:[%s5 + $0x5] sm:$0x1]
    %780 = vadd.xlane.f32.xlu0 %v776
    %v781 = vpop.xlane.xlu0 %780
    %782 = vadd.xlane.f32.xlu0 %v777
    %v783 = vpop.xlane.xlu0 %782
    %v784 = vmul.f32 %v781, %v207
    %v785 = vmul.f32 %v783, %v207
    %v786 = vsub.f32 %v776, %v784
    %v787 = vsub.f32 %v777, %v785
    %v788 = vmul.f32 %v786, %v786
    %v789 = vmul.f32 %v787, %v787
    %790 = vadd.xlane.f32.xlu0 %v788
    %v791 = vpop.xlane.xlu0 %790
    %792 = vadd.xlane.f32.xlu0 %v789
    %v793 = vpop.xlane.xlu0 %792
    %v794 = vmul.f32 %v791, %v207
    %v795 = vmul.f32 %v793, %v207
    %v796 = vadd.f32 %v794, 1e-12
    %v797 = vadd.f32 %v795, 1e-12
    %v798 = vrsqrt.pop %v796
    %v799 = vrsqrt.pop %v797
    %v800 = vmul.f32 %v786, %v798
    %v801 = vmul.f32 %v787, %v799
    %v802 = vlaneseq
    %v803 = vshrl.u32 %v802, 7
    %v804 = vsub.s32 0, %v803
    %v805 = vrot.slane %v778, %v804
    %v806 = vmul.f32 %v800, %v805
    %v807 = vmul.f32 %v801, %v805
    %v808 = vlaneseq
    %v809 = vshrl.u32 %v808, 7
    %v810 = vsub.s32 0, %v809
    %v811 = vrot.slane %v779, %v810
    %v812 = vadd.f32 %v806, %v811
    %v813 = vadd.f32 %v807, %v811
    %v814 = vpack.c.bf16 %v813, %v812
    %v815 = vld [vmem:[#allocation13] sm:$0xff]
    %v816 = vld [vmem:[#allocation13 + $0x8] sm:$0xff]
    %v817 = vld [vmem:[#allocation13 + $0x10] sm:$0xff]
    %v818 = vld [vmem:[#allocation13 + $0x18] sm:$0xff]
    %v819 = vld [vmem:[#allocation13 + $0x20] sm:$0xff]
    %v820 = vld [vmem:[#allocation13 + $0x28] sm:$0xff]
    %v821 = vld [vmem:[#allocation13 + $0x30] sm:$0xff]
    %v822 = vld [vmem:[#allocation13 + $0x38] sm:$0xff]
    %v823 = vld [vmem:[#allocation13 + $0x40] sm:$0xff]
    %v824 = vld [vmem:[#allocation13 + $0x48] sm:$0xff]
    %v825 = vld [vmem:[#allocation13 + $0x50] sm:$0xff]
    %v826 = vld [vmem:[#allocation13 + $0x58] sm:$0xff]
    %v827 = vld [vmem:[#allocation13 + $0x60] sm:$0xff]
    %v828 = vld [vmem:[#allocation13 + $0x68] sm:$0xff]
    %v829 = vld [vmem:[#allocation13 + $0x70] sm:$0xff]
    %v830 = vld [vmem:[#allocation13 + $0x78] sm:$0xff]
    %v831 = vld [vmem:[#allocation14] sm:$0x3]
    %v833 = vlaneseq
    %v834 = vshrl.u32 %v833, 7
    %v835 = vsub.s32 0, %v834
    %v836 = vrot.slane %v831, %v835
    %v837 = vlaneseq
    %v838 = vshrl.u32 %v837, 7
    %v839 = vsub.s32 1, %v838
    %v840 = vrot.slane %v831, %v839
    %v859 = vunpack.c.l.b16 %v815
    %v860 = vunpack.c.h.b16 %v815
    %v861 = vunpack.c.l.b16 %v816
    %v862 = vunpack.c.h.b16 %v816
    %v863 = vunpack.c.l.b16 %v817
    %v864 = vunpack.c.h.b16 %v817
    %v865 = vunpack.c.l.b16 %v818
    %v866 = vunpack.c.h.b16 %v818
    %v867 = vunpack.c.l.b16 %v819
    %v868 = vunpack.c.h.b16 %v819
    %v869 = vunpack.c.l.b16 %v820
    %v870 = vunpack.c.h.b16 %v820
    %v871 = vunpack.c.l.b16 %v821
    %v872 = vunpack.c.h.b16 %v821
    %v873 = vunpack.c.l.b16 %v822
    %v874 = vunpack.c.h.b16 %v822
    %v875 = vunpack.c.l.b16 %v823
    %v876 = vunpack.c.h.b16 %v823
    %v877 = vunpack.c.l.b16 %v824
    %v878 = vunpack.c.h.b16 %v824
    %v879 = vunpack.c.l.b16 %v825
    %v880 = vunpack.c.h.b16 %v825
    %v881 = vunpack.c.l.b16 %v826
    %v882 = vunpack.c.h.b16 %v826
    %v883 = vunpack.c.l.b16 %v827
    %v884 = vunpack.c.h.b16 %v827
    %v885 = vunpack.c.l.b16 %v828
    %v886 = vunpack.c.h.b16 %v828
    %v887 = vunpack.c.l.b16 %v829
    %v888 = vunpack.c.h.b16 %v829
    %v889 = vunpack.c.l.b16 %v830
    %v890 = vunpack.c.h.b16 %v830
    %v891 = vpack.c.b16 %v861, %v859
    %v892 = vpack.c.b16 %v862, %v860
    %v893 = vpack.c.b16 %v865, %v863
    %v894 = vpack.c.b16 %v866, %v864
    %v895 = vpack.c.b16 %v869, %v867
    %v896 = vpack.c.b16 %v870, %v868
    %v897 = vpack.c.b16 %v873, %v871
    %v898 = vpack.c.b16 %v874, %v872
    %v899 = vpack.c.b16 %v877, %v875
    %v900 = vpack.c.b16 %v878, %v876
    %v901 = vpack.c.b16 %v881, %v879
    %v902 = vpack.c.b16 %v882, %v880
    %v903 = vpack.c.b16 %v885, %v883
    %v904 = vpack.c.b16 %v886, %v884
    %v905 = vpack.c.b16 %v889, %v887
    %v906 = vpack.c.b16 %v890, %v888
    %923 = vmatprep.subr.bf16.mxu0 %v906
    %924 = vmatpush1.bf16.msra.mxu0 %v905
    %925 = vmatprep.subr.bf16.mxu0 %v904
    %926 = vmatpush1.bf16.msra.mxu0 %v903
    %927 = vmatprep.subr.bf16.mxu0 %v902
    %928 = vmatpush1.bf16.msra.mxu0 %v901
    %929 = vmatprep.subr.bf16.mxu0 %v900
    %930 = vmatpush1.bf16.msra.mxu0 %v899
    %931 = vmatprep.subr.bf16.mxu0 %v898
    %932 = vmatpush1.bf16.msra.mxu0 %v897
    %933 = vmatprep.subr.bf16.mxu0 %v896
    %934 = vmatpush1.bf16.msra.mxu0 %v895
    %935 = vmatprep.subr.bf16.mxu0 %v894
    %936 = vmatpush1.bf16.msra.mxu0 %v893
    %937 = vmatprep.subr.bf16.mxu0 %v892
    %938 = vmatpush1.bf16.msra.mxu0 %v891
    %939 = vmatprep.subr.bf16.mxu0 0
    %940 = vmatpush2.bf16.msra.mxu0 0
    %941 = vmatprep.subr.bf16.mxu0 0
    %942 = vmatpush2.bf16.msra.mxu0 0
    %943 = vmatprep.subr.bf16.mxu0 0
    %944 = vmatpush2.bf16.msra.mxu0 0
    %945 = vmatprep.subr.bf16.mxu0 0
    %946 = vmatpush2.bf16.msra.mxu0 0
    %947 = vmatprep.subr.bf16.mxu0 0
    %948 = vmatpush2.bf16.msra.mxu0 0
    %949 = vmatprep.subr.bf16.mxu0 0
    %950 = vmatpush2.bf16.msra.mxu0 0
    %951 = vmatprep.subr.bf16.mxu0 0
    %952 = vmatpush2.bf16.msra.mxu0 0
    %953 = vmatprep.subr.bf16.mxu0 0
    %954 = vmatpush2.bf16.msra.mxu0 0
    %955 = vmatprep.mubr.bf16.mxu0 0
    %956 = vmatmul.mubr.bf16.gmra.mxu0 %v814
    %v957 = vpop.f32.mrf.mxu0
    %v958 = vadd.f32 %v836, %v957
    %v959 = vpop.f32.mrf.mxu0
    %v960 = vadd.f32 %v840, %v959
    %v961 = vpop.f32.mrf.mxu0
    %v962 = vadd.f32 %v836, %v961
    %v963 = vpop.f32.mrf.mxu0
    %v964 = vadd.f32 %v840, %v963
    %965 = vdwg.mxu0
    %v966 = vmul.f32 %v958, 0.5
    %v967 = vmul.f32 %v960, 0.5
    %v968 = vmul.f32 %v962, 0.5
    %v969 = vmul.f32 %v964, 0.5
    %v970 = vmul.f32 %v958, 0.044715
    %v971 = vmul.f32 %v960, 0.044715
    %v972 = vmul.f32 %v962, 0.044715
    %v973 = vmul.f32 %v964, 0.044715
    %v974 = vmul.f32 %v970, %v958
    %v975 = vmul.f32 %v971, %v960
    %v976 = vmul.f32 %v972, %v962
    %v977 = vmul.f32 %v973, %v964
    %v978 = vmul.f32 %v974, %v958
    %v979 = vmul.f32 %v975, %v960
    %v980 = vmul.f32 %v976, %v962
    %v981 = vmul.f32 %v977, %v964
    %v982 = vadd.f32 %v958, %v978
    %v983 = vadd.f32 %v960, %v979
    %v984 = vadd.f32 %v962, %v980
    %v985 = vadd.f32 %v964, %v981
    %v986 = vmul.f32 %v982, 0.7978846
    %v987 = vmul.f32 %v983, 0.7978846
    %v988 = vmul.f32 %v984, 0.7978846
    %v989 = vmul.f32 %v985, 0.7978846
    %v990 = vtanh.pop %v986
    %v991 = vtanh.pop %v987
    %v992 = vtanh.pop %v988
    %v993 = vtanh.pop %v989
    %v994 = vadd.f32 %v990, 1.0
    %v995 = vadd.f32 %v991, 1.0
    %v996 = vadd.f32 %v992, 1.0
    %v997 = vadd.f32 %v993, 1.0
    %v998 = vmul.f32 %v966, %v994
    %v999 = vmul.f32 %v967, %v995
    %v1000 = vmul.f32 %v968, %v996
    %v1001 = vmul.f32 %v969, %v997
    %v1002 = vpack.c.bf16 %v1000, %v998
    %v1003 = vpack.c.bf16 %v1001, %v999
    %v1004 = vld [vmem:[#allocation16] sm:$0xf]
    %v1005 = vld [vmem:[#allocation16 + $0x4] sm:$0xf]
    %v1006 = vld [vmem:[#allocation16 + $0x8] sm:$0xf]
    %v1007 = vld [vmem:[#allocation16 + $0xc] sm:$0xf]
    %v1008 = vld [vmem:[#allocation16 + $0x10] sm:$0xf]
    %v1009 = vld [vmem:[#allocation16 + $0x14] sm:$0xf]
    %v1010 = vld [vmem:[#allocation16 + $0x18] sm:$0xf]
    %v1011 = vld [vmem:[#allocation16 + $0x1c] sm:$0xf]
    %v1012 = vld [vmem:[#allocation16 + $0x20] sm:$0xf]
    %v1013 = vld [vmem:[#allocation16 + $0x24] sm:$0xf]
    %v1014 = vld [vmem:[#allocation16 + $0x28] sm:$0xf]
    %v1015 = vld [vmem:[#allocation16 + $0x2c] sm:$0xf]
    %v1016 = vld [vmem:[#allocation16 + $0x30] sm:$0xf]
    %v1017 = vld [vmem:[#allocation16 + $0x34] sm:$0xf]
    %v1018 = vld [vmem:[#allocation16 + $0x38] sm:$0xf]
    %v1019 = vld [vmem:[#allocation16 + $0x3c] sm:$0xf]
    %v1020 = vld [vmem:[#allocation16 + $0x40] sm:$0xf]
    %v1021 = vld [vmem:[#allocation16 + $0x44] sm:$0xf]
    %v1022 = vld [vmem:[#allocation16 + $0x48] sm:$0xf]
    %v1023 = vld [vmem:[#allocation16 + $0x4c] sm:$0xf]
    %v1024 = vld [vmem:[#allocation16 + $0x50] sm:$0xf]
    %v1025 = vld [vmem:[#allocation16 + $0x54] sm:$0xf]
    %v1026 = vld [vmem:[#allocation16 + $0x58] sm:$0xf]
    %v1027 = vld [vmem:[#allocation16 + $0x5c] sm:$0xf]
    %v1028 = vld [vmem:[#allocation16 + $0x60] sm:$0xf]
    %v1029 = vld [vmem:[#allocation16 + $0x64] sm:$0xf]
    %v1030 = vld [vmem:[#allocation16 + $0x68] sm:$0xf]
    %v1031 = vld [vmem:[#allocation16 + $0x6c] sm:$0xf]
    %v1032 = vld [vmem:[#allocation16 + $0x70] sm:$0xf]
    %v1033 = vld [vmem:[#allocation16 + $0x74] sm:$0xf]
    %v1034 = vld [vmem:[#allocation16 + $0x78] sm:$0xf]
    %v1035 = vld [vmem:[#allocation16 + $0x7c] sm:$0xf]
    %v1036 = vld [vmem:[%s5 + $0x6] sm:$0x1]
    %v1037 = vlaneseq
    %v1038 = vshrl.u32 %v1037, 7
    %v1039 = vsub.s32 0, %v1038
    %v1040 = vrot.slane %v1036, %v1039
    %v1073 = vunpack.c.l.b16 %v1004
    %v1074 = vunpack.c.l.b16 %v1005
    %v1075 = vunpack.c.l.b16 %v1006
    %v1076 = vunpack.c.l.b16 %v1007
    %v1077 = vunpack.c.l.b16 %v1008
    %v1078 = vunpack.c.l.b16 %v1009
    %v1079 = vunpack.c.l.b16 %v1010
    %v1080 = vunpack.c.l.b16 %v1011
    %v1081 = vunpack.c.l.b16 %v1012
    %v1082 = vunpack.c.l.b16 %v1013
    %v1083 = vunpack.c.l.b16 %v1014
    %v1084 = vunpack.c.l.b16 %v1015
    %v1085 = vunpack.c.l.b16 %v1016
    %v1086 = vunpack.c.l.b16 %v1017
    %v1087 = vunpack.c.l.b16 %v1018
    %v1088 = vunpack.c.l.b16 %v1019
    %v1089 = vunpack.c.l.b16 %v1020
    %v1090 = vunpack.c.l.b16 %v1021
    %v1091 = vunpack.c.l.b16 %v1022
    %v1092 = vunpack.c.l.b16 %v1023
    %v1093 = vunpack.c.l.b16 %v1024
    %v1094 = vunpack.c.l.b16 %v1025
    %v1095 = vunpack.c.l.b16 %v1026
    %v1096 = vunpack.c.l.b16 %v1027
    %v1097 = vunpack.c.l.b16 %v1028
    %v1098 = vunpack.c.l.b16 %v1029
    %v1099 = vunpack.c.l.b16 %v1030
    %v1100 = vunpack.c.l.b16 %v1031
    %v1101 = vunpack.c.l.b16 %v1032
    %v1102 = vunpack.c.l.b16 %v1033
    %v1103 = vunpack.c.l.b16 %v1034
    %v1104 = vunpack.c.l.b16 %v1035
    %v1105 = vpack.c.b16 %v1074, %v1073
    %v1106 = vpack.c.b16 %v1076, %v1075
    %v1107 = vpack.c.b16 %v1078, %v1077
    %v1108 = vpack.c.b16 %v1080, %v1079
    %v1109 = vpack.c.b16 %v1082, %v1081
    %v1110 = vpack.c.b16 %v1084, %v1083
    %v1111 = vpack.c.b16 %v1086, %v1085
    %v1112 = vpack.c.b16 %v1088, %v1087
    %v1113 = vpack.c.b16 %v1090, %v1089
    %v1114 = vpack.c.b16 %v1092, %v1091
    %v1115 = vpack.c.b16 %v1094, %v1093
    %v1116 = vpack.c.b16 %v1096, %v1095
    %v1117 = vpack.c.b16 %v1098, %v1097
    %v1118 = vpack.c.b16 %v1100, %v1099
    %v1119 = vpack.c.b16 %v1102, %v1101
    %v1120 = vpack.c.b16 %v1104, %v1103
    %1137 = vmatprep.subr.bf16.mxu0 0
    %1138 = vmatpush1.bf16.msra.mxu0 %v1112
    %1139 = vmatprep.subr.bf16.mxu0 0
    %1140 = vmatpush1.bf16.msra.mxu0 %v1111
    %1141 = vmatprep.subr.bf16.mxu0 0
    %1142 = vmatpush1.bf16.msra.mxu0 %v1110
    %1143 = vmatprep.subr.bf16.mxu0 0
    %1144 = vmatpush1.bf16.msra.mxu0 %v1109
    %1145 = vmatprep.subr.bf16.mxu0 0
    %1146 = vmatpush1.bf16.msra.mxu0 %v1108
    %1147 = vmatprep.subr.bf16.mxu0 0
    %1148 = vmatpush1.bf16.msra.mxu0 %v1107
    %1149 = vmatprep.subr.bf16.mxu0 0
    %1150 = vmatpush1.bf16.msra.mxu0 %v1106
    %1151 = vmatprep.subr.bf16.mxu0 0
    %1152 = vmatpush1.bf16.msra.mxu0 %v1105
    %1153 = vmatprep.subr.bf16.mxu0 0
    %1154 = vmatpush2.bf16.msra.mxu0 %v1120
    %1155 = vmatprep.subr.bf16.mxu0 0
    %1156 = vmatpush2.bf16.msra.mxu0 %v1119
    %1157 = vmatprep.subr.bf16.mxu0 0
    %1158 = vmatpush2.bf16.msra.mxu0 %v1118
    %1159 = vmatprep.subr.bf16.mxu0 0
    %1160 = vmatpush2.bf16.msra.mxu0 %v1117
    %1161 = vmatprep.subr.bf16.mxu0 0
    %1162 = vmatpush2.bf16.msra.mxu0 %v1116
    %1163 = vmatprep.subr.bf16.mxu0 0
    %1164 = vmatpush2.bf16.msra.mxu0 %v1115
    %1165 = vmatprep.subr.bf16.mxu0 0
    %1166 = vmatpush2.bf16.msra.mxu0 %v1114
    %1167 = vmatprep.subr.bf16.mxu0 0
    %1168 = vmatpush2.bf16.msra.mxu0 %v1113
    %1169 = vmatprep.mubr.bf16.mxu0 %v1003
    %1170 = vmatmul.mubr.bf16.gmra.mxu0 %v1002
    %v1171 = vpop.f32.mrf.mxu0
    %v1172 = vadd.f32 %v1040, %v1171
    %v1173 = vpop.f32.mrf.mxu0
    %v1174 = vpop.f32.mrf.mxu0
    %v1175 = vadd.f32 %v1040, %v1174
    %v1176 = vpop.f32.mrf.mxu0
    %1177 = vdwg.mxu0
    %v1178 = vadd.f32 %v812, %v1172
    %v1179 = vadd.f32 %v813, %v1175
    %v1180 = vld [vmem:[%s5 + $0x7] sm:$0x1]
    %v1181 = vld [vmem:[%s5 + $0x8] sm:$0x1]
    %1182 = vadd.xlane.f32.xlu0 %v1178
    %v1183 = vpop.xlane.xlu0 %1182
    %1184 = vadd.xlane.f32.xlu0 %v1179
    %v1185 = vpop.xlane.xlu0 %1184
    %v1186 = vmul.f32 %v1183, %v207
    %v1187 = vmul.f32 %v1185, %v207
    %v1188 = vsub.f32 %v1178, %v1186
    %v1189 = vsub.f32 %v1179, %v1187
    %v1190 = vmul.f32 %v1188, %v1188
    %v1191 = vmul.f32 %v1189, %v1189
    %1192 = vadd.xlane.f32.xlu0 %v1190
    %v1193 = vpop.xlane.xlu0 %1192
    %1194 = vadd.xlane.f32.xlu0 %v1191
    %v1195 = vpop.xlane.xlu0 %1194
    %v1196 = vmul.f32 %v1193, %v207
    %v1197 = vmul.f32 %v1195, %v207
    %v1198 = vadd.f32 %v1196, 1e-12
    %v1199 = vadd.f32 %v1197, 1e-12
    %v1200 = vrsqrt.pop %v1198
    %v1201 = vrsqrt.pop %v1199
    %v1202 = vmul.f32 %v1188, %v1200
    %v1203 = vmul.f32 %v1189, %v1201
    %v1204 = vlaneseq
    %v1205 = vshrl.u32 %v1204, 7
    %v1206 = vsub.s32 0, %v1205
    %v1207 = vrot.slane %v1180, %v1206
    %v1208 = vmul.f32 %v1202, %v1207
    %v1209 = vmul.f32 %v1203, %v1207
    %v1210 = vlaneseq
    %v1211 = vshrl.u32 %v1210, 7
    %v1212 = vsub.s32 0, %v1211
    %v1213 = vrot.slane %v1181, %v1212
    %v1214 = vadd.f32 %v1208, %v1213
    %v1215 = vadd.f32 %v1209, %v1213
    %v1216 = vpack.c.bf16 %v1215, %v1214
    %s1217 = scalar_lea.vmem [#allocation10], 192
    %v1218 = vld [vmem:[%s1217] sm:$0xff]
    %v1219 = vld [vmem:[%s1217 + $0x8] sm:$0xf]
    %v1220 = vld [vmem:[%s1217 + $0xc] sm:$0xff]
    %v1221 = vld [vmem:[%s1217 + $0x14] sm:$0xf]
    %v1222 = vld [vmem:[%s1217 + $0x18] sm:$0xff]
    %v1223 = vld [vmem:[%s1217 + $0x20] sm:$0xf]
    %v1224 = vld [vmem:[%s1217 + $0x24] sm:$0xff]
    %v1225 = vld [vmem:[%s1217 + $0x2c] sm:$0xf]
    %v1226 = vld [vmem:[%s1217 + $0x30] sm:$0xff]
    %v1227 = vld [vmem:[%s1217 + $0x38] sm:$0xf]
    %v1228 = vld [vmem:[%s1217 + $0x3c] sm:$0xff]
    %v1229 = vld [vmem:[%s1217 + $0x44] sm:$0xf]
    %v1230 = vld [vmem:[%s1217 + $0x48] sm:$0xff]
    %v1231 = vld [vmem:[%s1217 + $0x50] sm:$0xf]
    %v1232 = vld [vmem:[%s1217 + $0x54] sm:$0xff]
    %v1233 = vld [vmem:[%s1217 + $0x5c] sm:$0xf]
    %v1234 = vld [vmem:[%s1217 + $0x60] sm:$0xff]
    %v1235 = vld [vmem:[%s1217 + $0x68] sm:$0xf]
    %v1236 = vld [vmem:[%s1217 + $0x6c] sm:$0xff]
    %v1237 = vld [vmem:[%s1217 + $0x74] sm:$0xf]
    %v1238 = vld [vmem:[%s1217 + $0x78] sm:$0xff]
    %v1239 = vld [vmem:[%s1217 + $0x80] sm:$0xf]
    %v1240 = vld [vmem:[%s1217 + $0x84] sm:$0xff]
    %v1241 = vld [vmem:[%s1217 + $0x8c] sm:$0xf]
    %v1242 = vld [vmem:[%s1217 + $0x90] sm:$0xff]
    %v1243 = vld [vmem:[%s1217 + $0x98] sm:$0xf]
    %v1244 = vld [vmem:[%s1217 + $0x9c] sm:$0xff]
    %v1245 = vld [vmem:[%s1217 + $0xa4] sm:$0xf]
    %v1246 = vld [vmem:[%s1217 + $0xa8] sm:$0xff]
    %v1247 = vld [vmem:[%s1217 + $0xb0] sm:$0xf]
    %v1248 = vld [vmem:[%s1217 + $0xb4] sm:$0xff]
    %v1249 = vld [vmem:[%s1217 + $0xbc] sm:$0xf]
    %v1282 = vunpack.c.l.b16 %v1218
    %v1283 = vunpack.c.h.b16 %v1218
    %v1284 = vunpack.c.l.b16 %v1219
    %v1285 = vunpack.c.l.b16 %v1220
    %v1286 = vunpack.c.h.b16 %v1220
    %v1287 = vunpack.c.l.b16 %v1221
    %v1288 = vunpack.c.l.b16 %v1222
    %v1289 = vunpack.c.h.b16 %v1222
    %v1290 = vunpack.c.l.b16 %v1223
    %v1291 = vunpack.c.l.b16 %v1224
    %v1292 = vunpack.c.h.b16 %v1224
    %v1293 = vunpack.c.l.b16 %v1225
    %v1294 = vunpack.c.l.b16 %v1226
    %v1295 = vunpack.c.h.b16 %v1226
    %v1296 = vunpack.c.l.b16 %v1227
    %v1297 = vunpack.c.l.b16 %v1228
    %v1298 = vunpack.c.h.b16 %v1228
    %v1299 = vunpack.c.l.b16 %v1229
    %v1300 = vunpack.c.l.b16 %v1230
    %v1301 = vunpack.c.h.b16 %v1230
    %v1302 = vunpack.c.l.b16 %v1231
    %v1303 = vunpack.c.l.b16 %v1232
    %v1304 = vunpack.c.h.b16 %v1232
    %v1305 = vunpack.c.l.b16 %v1233
    %v1306 = vunpack.c.l.b16 %v1234
    %v1307 = vunpack.c.h.b16 %v1234
    %v1308 = vunpack.c.l.b16 %v1235
    %v1309 = vunpack.c.l.b16 %v1236
    %v1310 = vunpack.c.h.b16 %v1236
    %v1311 = vunpack.c.l.b16 %v1237
    %v1312 = vunpack.c.l.b16 %v1238
    %v1313 = vunpack.c.h.b16 %v1238
    %v1314 = vunpack.c.l.b16 %v1239
    %v1315 = vunpack.c.l.b16 %v1240
    %v1316 = vunpack.c.h.b16 %v1240
    %v1317 = vunpack.c.l.b16 %v1241
    %v1318 = vunpack.c.l.b16 %v1242
    %v1319 = vunpack.c.h.b16 %v1242
    %v1320 = vunpack.c.l.b16 %v1243
    %v1321 = vunpack.c.l.b16 %v1244
    %v1322 = vunpack.c.h.b16 %v1244
    %v1323 = vunpack.c.l.b16 %v1245
    %v1324 = vunpack.c.l.b16 %v1246
    %v1325 = vunpack.c.h.b16 %v1246
    %v1326 = vunpack.c.l.b16 %v1247
    %v1327 = vunpack.c.l.b16 %v1248
    %v1328 = vunpack.c.h.b16 %v1248
    %v1329 = vunpack.c.l.b16 %v1249
    %v1330 = vpack.c.b16 %v1285, %v1282
    %v1331 = vpack.c.b16 %v1286, %v1283
    %v1332 = vpack.c.b16 %v1287, %v1284
    %v1333 = vpack.c.b16 %v1291, %v1288
    %v1334 = vpack.c.b16 %v1292, %v1289
    %v1335 = vpack.c.b16 %v1293, %v1290
    %v1336 = vpack.c.b16 %v1297, %v1294
    %v1337 = vpack.c.b16 %v1298, %v1295
    %v1338 = vpack.c.b16 %v1299, %v1296
    %v1339 = vpack.c.b16 %v1303, %v1300
    %v1340 = vpack.c.b16 %v1304, %v1301
    %v1341 = vpack.c.b16 %v1305, %v1302
    %v1342 = vpack.c.b16 %v1309, %v1306
    %v1343 = vpack.c.b16 %v1310, %v1307
    %v1344 = vpack.c.b16 %v1311, %v1308
    %v1345 = vpack.c.b16 %v1315, %v1312
    %v1346 = vpack.c.b16 %v1316, %v1313
    %v1347 = vpack.c.b16 %v1317, %v1314
    %v1348 = vpack.c.b16 %v1321, %v1318
    %v1349 = vpack.c.b16 %v1322, %v1319
    %v1350 = vpack.c.b16 %v1323, %v1320
    %v1351 = vpack.c.b16 %v1327, %v1324
    %v1352 = vpack.c.b16 %v1328, %v1325
    %v1353 = vpack.c.b16 %v1329, %v1326
    %1378 = vmatprep.subr.bf16.mxu0 %v1352
    %1379 = vmatpush1.bf16.msra.mxu0 %v1351
    %1380 = vmatprep.subr.bf16.mxu0 %v1349
    %1381 = vmatpush1.bf16.msra.mxu0 %v1348
    %1382 = vmatprep.subr.bf16.mxu0 %v1346
    %1383 = vmatpush1.bf16.msra.mxu0 %v1345
    %1384 = vmatprep.subr.bf16.mxu0 %v1343
    %1385 = vmatpush1.bf16.msra.mxu0 %v1342
    %1386 = vmatprep.subr.bf16.mxu0 %v1340
    %1387 = vmatpush1.bf16.msra.mxu0 %v1339
    %1388 = vmatprep.subr.bf16.mxu0 %v1337
    %1389 = vmatpush1.bf16.msra.mxu0 %v1336
    %1390 = vmatprep.subr.bf16.mxu0 %v1334
    %1391 = vmatpush1.bf16.msra.mxu0 %v1333
    %1392 = vmatprep.subr.bf16.mxu0 %v1331
    %1393 = vmatpush1.bf16.msra.mxu0 %v1330
    %1394 = vmatprep.subr.bf16.mxu0 0
    %1395 = vmatpush2.bf16.msra.mxu0 0
    %1396 = vmatprep.subr.bf16.mxu0 0
    %1397 = vmatpush2.bf16.msra.mxu0 0
    %1398 = vmatprep.subr.bf16.mxu0 0
    %1399 = vmatpush2.bf16.msra.mxu0 0
    %1400 = vmatprep.subr.bf16.mxu0 0
    %1401 = vmatpush2.bf16.msra.mxu0 0
    %1402 = vmatprep.subr.bf16.mxu0 0
    %1403 = vmatpush2.bf16.msra.mxu0 0
    %1404 = vmatprep.subr.bf16.mxu0 0
    %1405 = vmatpush2.bf16.msra.mxu0 0
    %1406 = vmatprep.subr.bf16.mxu0 0
    %1407 = vmatpush2.bf16.msra.mxu0 0
    %1408 = vmatprep.subr.bf16.mxu0 0
    %1409 = vmatpush2.bf16.msra.mxu0 0
    %1410 = vmatprep.mubr.bf16.mxu0 0
    %1411 = vmatmul.mubr.bf16.gmra.mxu0 %v1216
    %v1412 = vpop.f32.mrf.mxu0
    %v1413 = vadd.f32 0.0, %v1412
    %v1414 = vpop.f32.mrf.mxu0
    %v1415 = vadd.f32 0.0, %v1414
    %v1416 = vpop.f32.mrf.mxu0
    %v1417 = vadd.f32 0.0, %v1416
    %v1418 = vpop.f32.mrf.mxu0
    %v1419 = vadd.f32 0.0, %v1418
    %1420 = vdwg.mxu0
    %1421 = vmatprep.subr.bf16.mxu0 0
    %1422 = vmatpush1.bf16.msra.mxu0 %v1353
    %1423 = vmatprep.subr.bf16.mxu0 0
    %1424 = vmatpush1.bf16.msra.mxu0 %v1350
    %1425 = vmatprep.subr.bf16.mxu0 0
    %1426 = vmatpush1.bf16.msra.mxu0 %v1347
    %1427 = vmatprep.subr.bf16.mxu0 0
    %1428 = vmatpush1.bf16.msra.mxu0 %v1344
    %1429 = vmatprep.subr.bf16.mxu0 0
    %1430 = vmatpush1.bf16.msra.mxu0 %v1341
    %1431 = vmatprep.subr.bf16.mxu0 0
    %1432 = vmatpush1.bf16.msra.mxu0 %v1338
    %1433 = vmatprep.subr.bf16.mxu0 0
    %1434 = vmatpush1.bf16.msra.mxu0 %v1335
    %1435 = vmatprep.subr.bf16.mxu0 0
    %1436 = vmatpush1.bf16.msra.mxu0 %v1332
    %1437 = vmatprep.subr.bf16.mxu0 0
    %1438 = vmatpush2.bf16.msra.mxu0 0
    %1439 = vmatprep.subr.bf16.mxu0 0
    %1440 = vmatpush2.bf16.msra.mxu0 0
    %1441 = vmatprep.subr.bf16.mxu0 0
    %1442 = vmatpush2.bf16.msra.mxu0 0
    %1443 = vmatprep.subr.bf16.mxu0 0
    %1444 = vmatpush2.bf16.msra.mxu0 0
    %1445 = vmatprep.subr.bf16.mxu0 0
    %1446 = vmatpush2.bf16.msra.mxu0 0
    %1447 = vmatprep.subr.bf16.mxu0 0
    %1448 = vmatpush2.bf16.msra.mxu0 0
    %1449 = vmatprep.subr.bf16.mxu0 0
    %1450 = vmatpush2.bf16.msra.mxu0 0
    %1451 = vmatprep.subr.bf16.mxu0 0
    %1452 = vmatpush2.bf16.msra.mxu0 0
    %1453 = vmatprep.mubr.bf16.mxu0 0
    %1454 = vmatmul.mubr.bf16.gmra.mxu0 %v1216
    %v1455 = vpop.f32.mrf.mxu0
    %v1456 = vadd.f32 0.0, %v1455
    %v1457 = vpop.f32.mrf.mxu0
    %v1458 = vpop.f32.mrf.mxu0
    %v1459 = vadd.f32 0.0, %v1458
    %v1460 = vpop.f32.mrf.mxu0
    %1461 = vdwg.mxu0
    %s1462 = scalar_lea.vmem %s5, 16
    %v1463 = vld [vmem:[%s1462] sm:$0x1]
    %v1464 = vlaneseq
    %v1465 = vshrl.u32 %v1464, 7
    %v1466 = vsub.s32 0, %v1465
    %v1467 = vrot.slane %v1463, %v1466
    %v1468 = vadd.f32 %v1413, %v1467
    %v1469 = vadd.f32 %v1417, %v1467
    %v1470 = vpack.c.bf16 %v1469, %v1468
    %v1471 = vld [vmem:[%s1462 + $0x1] sm:$0x1]
    %v1472 = vlaneseq
    %v1473 = vshrl.u32 %v1472, 7
    %v1474 = vsub.s32 0, %v1473
    %v1475 = vrot.slane %v1471, %v1474
    %v1476 = vadd.f32 %v1415, %v1475
    %v1477 = vadd.f32 %v1419, %v1475
    %v1478 = vpack.c.bf16 %v1477, %v1476
    %v1479 = vld [vmem:[%s1462 + $0x2] sm:$0x1]
    %v1480 = vlaneseq
    %v1481 = vshrl.u32 %v1480, 7
    %v1482 = vsub.s32 0, %v1481
    %v1483 = vrot.slane %v1479, %v1482
    %v1484 = vadd.f32 %v1456, %v1483
    %v1485 = vadd.f32 %v1459, %v1483
    %v1486 = vpack.c.bf16 %v1485, %v1484
    %v1487 = vsel %vm509, %v1478, 0
    %v1488 = vsel %vm510, %v1478, 0
    %v1489 = vsel %vm511, %v1478, 0
    %v1490 = vsel %vm512, %v1478, 0
    %v1491 = vsel %vm509, %v1486, 0
    %v1492 = vsel %vm510, %v1486, 0
    %v1493 = vsel %vm511, %v1486, 0
    %v1494 = vsel %vm512, %v1486, 0
    %1495 = vmatprep.subr.bf16.mxu0 0
    %1496 = vmatpush1.bf16.xpose.msra.mxu0 0
    %1497 = vmatprep.subr.bf16.mxu0 0
    %1498 = vmatpush1.bf16.xpose.msra.mxu0 0
    %1499 = vmatprep.subr.bf16.mxu0 0
    %1500 = vmatpush1.bf16.xpose.msra.mxu0 0
    %1501 = vmatprep.subr.bf16.mxu0 0
    %1502 = vmatpush1.bf16.xpose.msra.mxu0 0
    %1503 = vmatprep.subr.bf16.mxu0 0
    %1504 = vmatpush1.bf16.xpose.msra.mxu0 %v1490
    %1505 = vmatprep.subr.bf16.mxu0 0
    %1506 = vmatpush1.bf16.xpose.msra.mxu0 %v1489
    %1507 = vmatprep.subr.bf16.mxu0 0
    %1508 = vmatpush1.bf16.xpose.msra.mxu0 %v1488
    %1509 = vmatprep.subr.bf16.mxu0 0
    %1510 = vmatpush1.bf16.xpose.msra.mxu0 %v1487
    %1511 = vmatprep.subr.bf16.mxu0 0
    %1512 = vmatpush2.bf16.xpose.msra.mxu0 0
    %1513 = vmatprep.subr.bf16.mxu0 0
    %1514 = vmatpush2.bf16.xpose.msra.mxu0 0
    %1515 = vmatprep.subr.bf16.mxu0 0
    %1516 = vmatpush2.bf16.xpose.msra.mxu0 0
    %1517 = vmatprep.subr.bf16.mxu0 0
    %1518 = vmatpush2.bf16.xpose.msra.mxu0 0
    %1519 = vmatprep.subr.bf16.mxu0 0
    %1520 = vmatpush2.bf16.xpose.msra.mxu0 0
    %1521 = vmatprep.subr.bf16.mxu0 0
    %1522 = vmatpush2.bf16.xpose.msra.mxu0 0
    %1523 = vmatprep.subr.bf16.mxu0 0
    %1524 = vmatpush2.bf16.xpose.msra.mxu0 0
    %1525 = vmatprep.subr.bf16.mxu0 0
    %1526 = vmatpush2.bf16.xpose.msra.mxu0 0
    %1527 = vmatprep.mubr.bf16.mxu0 0
    %1528 = vmatmul.mubr.bf16.gmra.mxu0 %v1470
    %v1529 = vpop.f32.mrf.mxu0
    %v1530 = vadd.f32 %v238, %v1529
    %v1531 = vpop.f32.mrf.mxu0
    %v1532 = vpop.f32.mrf.mxu0
    %v1533 = vadd.f32 %v239, %v1532
    %v1534 = vpop.f32.mrf.mxu0
    %1535 = vdwg.mxu0
    %v1536 = vsel %vm562, %v1530, -inf
    %1537 = vmax.xlane.f32.xlu0 %v1536
    %v1538 = vpop.xlane.xlu0 %1537
    %v1539 = vsel %vm562, %v1533, -inf
    %1540 = vmax.xlane.f32.xlu0 %v1539
    %v1541 = vpop.xlane.xlu0 %1540
    %v1542 = vsub.f32 %v1530, %v1538
    %v1543 = vsub.f32 %v1533, %v1541
    %v1544 = vmul.f32 %v1542, 1.442695
    %v1545 = vpow.pop %v1544
    %v1546 = vmul.f32 %v1543, 1.442695
    %v1547 = vpow.pop %v1546
    %v1548 = vpack.c.bf16 %v1547, %v1545
    %v1550 = vsel %vm562, %v1548, 0
    %1552 = vmatprep.subr.bf16.mxu0 0
    %1553 = vmatpush1.bf16.msra.mxu0 0
    %1554 = vmatprep.subr.bf16.mxu0 0
    %1555 = vmatpush1.bf16.msra.mxu0 0
    %1556 = vmatprep.subr.bf16.mxu0 0
    %1557 = vmatpush1.bf16.msra.mxu0 0
    %1558 = vmatprep.subr.bf16.mxu0 0
    %1559 = vmatpush1.bf16.msra.mxu0 0
    %1560 = vmatprep.subr.bf16.mxu0 0
    %1561 = vmatpush1.bf16.msra.mxu0 %v1494
    %1562 = vmatprep.subr.bf16.mxu0 0
    %1563 = vmatpush1.bf16.msra.mxu0 %v1493
    %1564 = vmatprep.subr.bf16.mxu0 0
    %1565 = vmatpush1.bf16.msra.mxu0 %v1492
    %1566 = vmatprep.subr.bf16.mxu0 0
    %1567 = vmatpush1.bf16.msra.mxu0 %v1491
    %1568 = vmatprep.subr.bf16.mxu0 0
    %1569 = vmatpush2.bf16.msra.mxu0 0
    %1570 = vmatprep.subr.bf16.mxu0 0
    %1571 = vmatpush2.bf16.msra.mxu0 0
    %1572 = vmatprep.subr.bf16.mxu0 0
    %1573 = vmatpush2.bf16.msra.mxu0 0
    %1574 = vmatprep.subr.bf16.mxu0 0
    %1575 = vmatpush2.bf16.msra.mxu0 0
    %1576 = vmatprep.subr.bf16.mxu0 0
    %1577 = vmatpush2.bf16.msra.mxu0 0
    %1578 = vmatprep.subr.bf16.mxu0 0
    %1579 = vmatpush2.bf16.msra.mxu0 0
    %1580 = vmatprep.subr.bf16.mxu0 0
    %1581 = vmatpush2.bf16.msra.mxu0 0
    %1582 = vmatprep.subr.bf16.mxu0 0
    %1583 = vmatpush2.bf16.msra.mxu0 0
    %1584 = vmatprep.mubr.bf16.mxu0 0
    %1585 = vmatmul.mubr.bf16.gmra.mxu0 %v1550
    %v1586 = vpop.f32.mrf.mxu0
    %v1587 = vadd.f32 0.0, %v1586
    %v1588 = vpop.f32.mrf.mxu0
    %v1589 = vpop.f32.mrf.mxu0
    %v1590 = vadd.f32 0.0, %v1589
    %v1591 = vpop.f32.mrf.mxu0
    %1592 = vdwg.mxu0
    %1593 = vmatprep.subr.bf16.mxu0 0
    %1594 = vmatpush1.bf16.msra.mxu0 0
    %1595 = vmatprep.subr.bf16.mxu0 0
    %1596 = vmatpush1.bf16.msra.mxu0 0
    %1597 = vmatprep.subr.bf16.mxu0 0
    %1598 = vmatpush1.bf16.msra.mxu0 0
    %1599 = vmatprep.subr.bf16.mxu0 0
    %1600 = vmatpush1.bf16.msra.mxu0 0
    %1601 = vmatprep.subr.bf16.mxu0 0
    %1602 = vmatpush1.bf16.msra.mxu0 %v198
    %1603 = vmatprep.subr.bf16.mxu0 0
    %1604 = vmatpush1.bf16.msra.mxu0 %v197
    %1605 = vmatprep.subr.bf16.mxu0 0
    %1606 = vmatpush1.bf16.msra.mxu0 %v196
    %1607 = vmatprep.subr.bf16.mxu0 0
    %1608 = vmatpush1.bf16.msra.mxu0 %v195
    %1609 = vmatprep.subr.bf16.mxu0 0
    %1610 = vmatpush2.bf16.msra.mxu0 0
    %1611 = vmatprep.subr.bf16.mxu0 0
    %1612 = vmatpush2.bf16.msra.mxu0 0
    %1613 = vmatprep.subr.bf16.mxu0 0
    %1614 = vmatpush2.bf16.msra.mxu0 0
    %1615 = vmatprep.subr.bf16.mxu0 0
    %1616 = vmatpush2.bf16.msra.mxu0 0
    %1617 = vmatprep.subr.bf16.mxu0 0
    %1618 = vmatpush2.bf16.msra.mxu0 0
    %1619 = vmatprep.subr.bf16.mxu0 0
    %1620 = vmatpush2.bf16.msra.mxu0 0
    %1621 = vmatprep.subr.bf16.mxu0 0
    %1622 = vmatpush2.bf16.msra.mxu0 0
    %1623 = vmatprep.subr.bf16.mxu0 0
    %1624 = vmatpush2.bf16.msra.mxu0 0
    %1625 = vmatprep.mubr.bf16.mxu0 0
    %1626 = vmatmul.mubr.bf16.gmra.mxu0 %v1550
    %v1627 = vpop.f32.mrf.mxu0
    %v1628 = vadd.f32 0.0, %v1627
    %v1629 = vpop.f32.mrf.mxu0
    %v1630 = vpop.f32.mrf.mxu0
    %v1631 = vadd.f32 0.0, %v1630
    %v1632 = vpop.f32.mrf.mxu0
    %1633 = vdwg.mxu0
    %v1634 = vrcp.pop %v1628
    %v1635 = vrcp.pop %v1631
    %v1636 = vmul.f32 %v1587, %v1634
    %v1637 = vmul.f32 %v1590, %v1635
    %v1638 = vpack.c.bf16 %v1637, %v1636
    %s1639 = scalar_lea.vmem [#allocation11], 64
    %v1640 = vld [vmem:[%s1639] sm:$0xf]
    %v1641 = vld [vmem:[%s1639 + $0x4] sm:$0xf]
    %v1642 = vld [vmem:[%s1639 + $0x8] sm:$0xf]
    %v1643 = vld [vmem:[%s1639 + $0xc] sm:$0xf]
    %v1644 = vld [vmem:[%s1639 + $0x10] sm:$0xf]
    %v1645 = vld [vmem:[%s1639 + $0x14] sm:$0xf]
    %v1646 = vld [vmem:[%s1639 + $0x18] sm:$0xf]
    %v1647 = vld [vmem:[%s1639 + $0x1c] sm:$0xf]
    %v1648 = vld [vmem:[%s1639 + $0x20] sm:$0xf]
    %v1649 = vld [vmem:[%s1639 + $0x24] sm:$0xf]
    %v1650 = vld [vmem:[%s1639 + $0x28] sm:$0xf]
    %v1651 = vld [vmem:[%s1639 + $0x2c] sm:$0xf]
    %v1652 = vld [vmem:[%s1639 + $0x30] sm:$0xf]
    %v1653 = vld [vmem:[%s1639 + $0x34] sm:$0xf]
    %v1654 = vld [vmem:[%s1639 + $0x38] sm:$0xf]
    %v1655 = vld [vmem:[%s1639 + $0x3c] sm:$0xf]
    %v1656 = vld [vmem:[%s1462 + $0x3] sm:$0x1]
    %v1657 = vlaneseq
    %v1658 = vshrl.u32 %v1657, 7
    %v1659 = vsub.s32 0, %v1658
    %v1660 = vrot.slane %v1656, %v1659
    %v1677 = vunpack.c.l.b16 %v1640
    %v1678 = vunpack.c.l.b16 %v1641
    %v1679 = vunpack.c.l.b16 %v1642
    %v1680 = vunpack.c.l.b16 %v1643
    %v1681 = vunpack.c.l.b16 %v1644
    %v1682 = vunpack.c.l.b16 %v1645
    %v1683 = vunpack.c.l.b16 %v1646
    %v1684 = vunpack.c.l.b16 %v1647
    %v1685 = vunpack.c.l.b16 %v1648
    %v1686 = vunpack.c.l.b16 %v1649
    %v1687 = vunpack.c.l.b16 %v1650
    %v1688 = vunpack.c.l.b16 %v1651
    %v1689 = vunpack.c.l.b16 %v1652
    %v1690 = vunpack.c.l.b16 %v1653
    %v1691 = vunpack.c.l.b16 %v1654
    %v1692 = vunpack.c.l.b16 %v1655
    %v1693 = vpack.c.b16 %v1678, %v1677
    %v1694 = vpack.c.b16 %v1680, %v1679
    %v1695 = vpack.c.b16 %v1682, %v1681
    %v1696 = vpack.c.b16 %v1684, %v1683
    %v1697 = vpack.c.b16 %v1686, %v1685
    %v1698 = vpack.c.b16 %v1688, %v1687
    %v1699 = vpack.c.b16 %v1690, %v1689
    %v1700 = vpack.c.b16 %v1692, %v1691
    %1709 = vmatprep.subr.bf16.mxu0 0
    %1710 = vmatpush1.bf16.msra.mxu0 %v1700
    %1711 = vmatprep.subr.bf16.mxu0 0
    %1712 = vmatpush1.bf16.msra.mxu0 %v1699
    %1713 = vmatprep.subr.bf16.mxu0 0
    %1714 = vmatpush1.bf16.msra.mxu0 %v1698
    %1715 = vmatprep.subr.bf16.mxu0 0
    %1716 = vmatpush1.bf16.msra.mxu0 %v1697
    %1717 = vmatprep.subr.bf16.mxu0 0
    %1718 = vmatpush1.bf16.msra.mxu0 %v1696
    %1719 = vmatprep.subr.bf16.mxu0 0
    %1720 = vmatpush1.bf16.msra.mxu0 %v1695
    %1721 = vmatprep.subr.bf16.mxu0 0
    %1722 = vmatpush1.bf16.msra.mxu0 %v1694
    %1723 = vmatprep.subr.bf16.mxu0 0
    %1724 = vmatpush1.bf16.msra.mxu0 %v1693
    %1725 = vmatprep.subr.bf16.mxu0 0
    %1726 = vmatpush2.bf16.msra.mxu0 0
    %1727 = vmatprep.subr.bf16.mxu0 0
    %1728 = vmatpush2.bf16.msra.mxu0 0
    %1729 = vmatprep.subr.bf16.mxu0 0
    %1730 = vmatpush2.bf16.msra.mxu0 0
    %1731 = vmatprep.subr.bf16.mxu0 0
    %1732 = vmatpush2.bf16.msra.mxu0 0
    %1733 = vmatprep.subr.bf16.mxu0 0
    %1734 = vmatpush2.bf16.msra.mxu0 0
    %1735 = vmatprep.subr.bf16.mxu0 0
    %1736 = vmatpush2.bf16.msra.mxu0 0
    %1737 = vmatprep.subr.bf16.mxu0 0
    %1738 = vmatpush2.bf16.msra.mxu0 0
    %1739 = vmatprep.subr.bf16.mxu0 0
    %1740 = vmatpush2.bf16.msra.mxu0 0
    %1741 = vmatprep.mubr.bf16.mxu0 0
    %1742 = vmatmul.mubr.bf16.gmra.mxu0 %v1638
    %v1743 = vpop.f32.mrf.mxu0
    %v1744 = vadd.f32 %v1660, %v1743
    %v1745 = vpop.f32.mrf.mxu0
    %v1746 = vpop.f32.mrf.mxu0
    %v1747 = vadd.f32 %v1660, %v1746
    %v1748 = vpop.f32.mrf.mxu0
    %1749 = vdwg.mxu0
    %v1750 = vadd.f32 %v1214, %v1744
    %v1751 = vadd.f32 %v1215, %v1747
    %v1752 = vld [vmem:[%s1462 + $0x4] sm:$0x1]
    %v1753 = vld [vmem:[%s1462 + $0x5] sm:$0x1]
    %1754 = vadd.xlane.f32.xlu0 %v1750
    %v1755 = vpop.xlane.xlu0 %1754
    %1756 = vadd.xlane.f32.xlu0 %v1751
    %v1757 = vpop.xlane.xlu0 %1756
    %v1758 = vmul.f32 %v1755, %v207
    %v1759 = vmul.f32 %v1757, %v207
    %v1760 = vsub.f32 %v1750, %v1758
    %v1761 = vsub.f32 %v1751, %v1759
    %v1762 = vmul.f32 %v1760, %v1760
    %v1763 = vmul.f32 %v1761, %v1761
    %1764 = vadd.xlane.f32.xlu0 %v1762
    %v1765 = vpop.xlane.xlu0 %1764
    %1766 = vadd.xlane.f32.xlu0 %v1763
    %v1767 = vpop.xlane.xlu0 %1766
    %v1768 = vmul.f32 %v1765, %v207
    %v1769 = vmul.f32 %v1767, %v207
    %v1770 = vadd.f32 %v1768, 1e-12
    %v1771 = vadd.f32 %v1769, 1e-12
    %v1772 = vrsqrt.pop %v1770
    %v1773 = vrsqrt.pop %v1771
    %v1774 = vmul.f32 %v1760, %v1772
    %v1775 = vmul.f32 %v1761, %v1773
    %v1776 = vlaneseq
    %v1777 = vshrl.u32 %v1776, 7
    %v1778 = vsub.s32 0, %v1777
    %v1779 = vrot.slane %v1752, %v1778
    %v1780 = vmul.f32 %v1774, %v1779
    %v1781 = vmul.f32 %v1775, %v1779
    %v1782 = vlaneseq
    %v1783 = vshrl.u32 %v1782, 7
    %v1784 = vsub.s32 0, %v1783
    %v1785 = vrot.slane %v1753, %v1784
    %v1786 = vadd.f32 %v1780, %v1785
    %v1787 = vadd.f32 %v1781, %v1785
    %v1788 = vpack.c.bf16 %v1787, %v1786
    %s1789 = scalar_lea.vmem [#allocation13], 128
    %v1790 = vld [vmem:[%s1789] sm:$0xff]
    %v1791 = vld [vmem:[%s1789 + $0x8] sm:$0xff]
    %v1792 = vld [vmem:[%s1789 + $0x10] sm:$0xff]
    %v1793 = vld [vmem:[%s1789 + $0x18] sm:$0xff]
    %v1794 = vld [vmem:[%s1789 + $0x20] sm:$0xff]
    %v1795 = vld [vmem:[%s1789 + $0x28] sm:$0xff]
    %v1796 = vld [vmem:[%s1789 + $0x30] sm:$0xff]
    %v1797 = vld [vmem:[%s1789 + $0x38] sm:$0xff]
    %v1798 = vld [vmem:[%s1789 + $0x40] sm:$0xff]
    %v1799 = vld [vmem:[%s1789 + $0x48] sm:$0xff]
    %v1800 = vld [vmem:[%s1789 + $0x50] sm:$0xff]
    %v1801 = vld [vmem:[%s1789 + $0x58] sm:$0xff]
    %v1802 = vld [vmem:[%s1789 + $0x60] sm:$0xff]
    %v1803 = vld [vmem:[%s1789 + $0x68] sm:$0xff]
    %v1804 = vld [vmem:[%s1789 + $0x70] sm:$0xff]
    %v1805 = vld [vmem:[%s1789 + $0x78] sm:$0xff]
    %s1806 = scalar_lea.vmem [#allocation14], 2
    %v1807 = vld [vmem:[%s1806] sm:$0x3]
    %v1809 = vlaneseq
    %v1810 = vshrl.u32 %v1809, 7
    %v1811 = vsub.s32 0, %v1810
    %v1812 = vrot.slane %v1807, %v1811
    %v1813 = vlaneseq
    %v1814 = vshrl.u32 %v1813, 7
    %v1815 = vsub.s32 1, %v1814
    %v1816 = vrot.slane %v1807, %v1815
    %v1835 = vunpack.c.l.b16 %v1790
    %v1836 = vunpack.c.h.b16 %v1790
    %v1837 = vunpack.c.l.b16 %v1791
    %v1838 = vunpack.c.h.b16 %v1791
    %v1839 = vunpack.c.l.b16 %v1792
    %v1840 = vunpack.c.h.b16 %v1792
    %v1841 = vunpack.c.l.b16 %v1793
    %v1842 = vunpack.c.h.b16 %v1793
    %v1843 = vunpack.c.l.b16 %v1794
    %v1844 = vunpack.c.h.b16 %v1794
    %v1845 = vunpack.c.l.b16 %v1795
    %v1846 = vunpack.c.h.b16 %v1795
    %v1847 = vunpack.c.l.b16 %v1796
    %v1848 = vunpack.c.h.b16 %v1796
    %v1849 = vunpack.c.l.b16 %v1797
    %v1850 = vunpack.c.h.b16 %v1797
    %v1851 = vunpack.c.l.b16 %v1798
    %v1852 = vunpack.c.h.b16 %v1798
    %v1853 = vunpack.c.l.b16 %v1799
    %v1854 = vunpack.c.h.b16 %v1799
    %v1855 = vunpack.c.l.b16 %v1800
    %v1856 = vunpack.c.h.b16 %v1800
    %v1857 = vunpack.c.l.b16 %v1801
    %v1858 = vunpack.c.h.b16 %v1801
    %v1859 = vunpack.c.l.b16 %v1802
    %v1860 = vunpack.c.h.b16 %v1802
    %v1861 = vunpack.c.l.b16 %v1803
    %v1862 = vunpack.c.h.b16 %v1803
    %v1863 = vunpack.c.l.b16 %v1804
    %v1864 = vunpack.c.h.b16 %v1804
    %v1865 = vunpack.c.l.b16 %v1805
    %v1866 = vunpack.c.h.b16 %v1805
    %v1867 = vpack.c.b16 %v1837, %v1835
    %v1868 = vpack.c.b16 %v1838, %v1836
    %v1869 = vpack.c.b16 %v1841, %v1839
    %v1870 = vpack.c.b16 %v1842, %v1840
    %v1871 = vpack.c.b16 %v1845, %v1843
    %v1872 = vpack.c.b16 %v1846, %v1844
    %v1873 = vpack.c.b16 %v1849, %v1847
    %v1874 = vpack.c.b16 %v1850, %v1848
    %v1875 = vpack.c.b16 %v1853, %v1851
    %v1876 = vpack.c.b16 %v1854, %v1852
    %v1877 = vpack.c.b16 %v1857, %v1855
    %v1878 = vpack.c.b16 %v1858, %v1856
    %v1879 = vpack.c.b16 %v1861, %v1859
    %v1880 = vpack.c.b16 %v1862, %v1860
    %v1881 = vpack.c.b16 %v1865, %v1863
    %v1882 = vpack.c.b16 %v1866, %v1864
    %1899 = vmatprep.subr.bf16.mxu0 %v1882
    %1900 = vmatpush1.bf16.msra.mxu0 %v1881
    %1901 = vmatprep.subr.bf16.mxu0 %v1880
    %1902 = vmatpush1.bf16.msra.mxu0 %v1879
    %1903 = vmatprep.subr.bf16.mxu0 %v1878
    %1904 = vmatpush1.bf16.msra.mxu0 %v1877
    %1905 = vmatprep.subr.bf16.mxu0 %v1876
    %1906 = vmatpush1.bf16.msra.mxu0 %v1875
    %1907 = vmatprep.subr.bf16.mxu0 %v1874
    %1908 = vmatpush1.bf16.msra.mxu0 %v1873
    %1909 = vmatprep.subr.bf16.mxu0 %v1872
    %1910 = vmatpush1.bf16.msra.mxu0 %v1871
    %1911 = vmatprep.subr.bf16.mxu0 %v1870
    %1912 = vmatpush1.bf16.msra.mxu0 %v1869
    %1913 = vmatprep.subr.bf16.mxu0 %v1868
    %1914 = vmatpush1.bf16.msra.mxu0 %v1867
    %1915 = vmatprep.subr.bf16.mxu0 0
    %1916 = vmatpush2.bf16.msra.mxu0 0
    %1917 = vmatprep.subr.bf16.mxu0 0
    %1918 = vmatpush2.bf16.msra.mxu0 0
    %1919 = vmatprep.subr.bf16.mxu0 0
    %1920 = vmatpush2.bf16.msra.mxu0 0
    %1921 = vmatprep.subr.bf16.mxu0 0
    %1922 = vmatpush2.bf16.msra.mxu0 0
    %1923 = vmatprep.subr.bf16.mxu0 0
    %1924 = vmatpush2.bf16.msra.mxu0 0
    %1925 = vmatprep.subr.bf16.mxu0 0
    %1926 = vmatpush2.bf16.msra.mxu0 0
    %1927 = vmatprep.subr.bf16.mxu0 0
    %1928 = vmatpush2.bf16.msra.mxu0 0
    %1929 = vmatprep.subr.bf16.mxu0 0
    %1930 = vmatpush2.bf16.msra.mxu0 0
    %1931 = vmatprep.mubr.bf16.mxu0 0
    %1932 = vmatmul.mubr.bf16.gmra.mxu0 %v1788
    %v1933 = vpop.f32.mrf.mxu0
    %v1934 = vadd.f32 %v1812, %v1933
    %v1935 = vpop.f32.mrf.mxu0
    %v1936 = vadd.f32 %v1816, %v1935
    %v1937 = vpop.f32.mrf.mxu0
    %v1938 = vadd.f32 %v1812, %v1937
    %v1939 = vpop.f32.mrf.mxu0
    %v1940 = vadd.f32 %v1816, %v1939
    %1941 = vdwg.mxu0
    %v1942 = vmul.f32 %v1934, 0.5
    %v1943 = vmul.f32 %v1936, 0.5
    %v1944 = vmul.f32 %v1938, 0.5
    %v1945 = vmul.f32 %v1940, 0.5
    %v1946 = vmul.f32 %v1934, 0.044715
    %v1947 = vmul.f32 %v1936, 0.044715
    %v1948 = vmul.f32 %v1938, 0.044715
    %v1949 = vmul.f32 %v1940, 0.044715
    %v1950 = vmul.f32 %v1946, %v1934
    %v1951 = vmul.f32 %v1947, %v1936
    %v1952 = vmul.f32 %v1948, %v1938
    %v1953 = vmul.f32 %v1949, %v1940
    %v1954 = vmul.f32 %v1950, %v1934
    %v1955 = vmul.f32 %v1951, %v1936
    %v1956 = vmul.f32 %v1952, %v1938
    %v1957 = vmul.f32 %v1953, %v1940
    %v1958 = vadd.f32 %v1934, %v1954
    %v1959 = vadd.f32 %v1936, %v1955
    %v1960 = vadd.f32 %v1938, %v1956
    %v1961 = vadd.f32 %v1940, %v1957
    %v1962 = vmul.f32 %v1958, 0.7978846
    %v1963 = vmul.f32 %v1959, 0.7978846
    %v1964 = vmul.f32 %v1960, 0.7978846
    %v1965 = vmul.f32 %v1961, 0.7978846
    %v1966 = vtanh.pop %v1962
    %v1967 = vtanh.pop %v1963
    %v1968 = vtanh.pop %v1964
    %v1969 = vtanh.pop %v1965
    %v1970 = vadd.f32 %v1966, 1.0
    %v1971 = vadd.f32 %v1967, 1.0
    %v1972 = vadd.f32 %v1968, 1.0
    %v1973 = vadd.f32 %v1969, 1.0
    %v1974 = vmul.f32 %v1942, %v1970
    %v1975 = vmul.f32 %v1943, %v1971
    %v1976 = vmul.f32 %v1944, %v1972
    %v1977 = vmul.f32 %v1945, %v1973
    %v1978 = vpack.c.bf16 %v1976, %v1974
    %v1979 = vpack.c.bf16 %v1977, %v1975
    %s1980 = scalar_lea.vmem [#allocation16], 128
    %v1981 = vld [vmem:[%s1980] sm:$0xf]
    %v1982 = vld [vmem:[%s1980 + $0x4] sm:$0xf]
    %v1983 = vld [vmem:[%s1980 + $0x8] sm:$0xf]
    %v1984 = vld [vmem:[%s1980 + $0xc] sm:$0xf]
    %v1985 = vld [vmem:[%s1980 + $0x10] sm:$0xf]
    %v1986 = vld [vmem:[%s1980 + $0x14] sm:$0xf]
    %v1987 = vld [vmem:[%s1980 + $0x18] sm:$0xf]
    %v1988 = vld [vmem:[%s1980 + $0x1c] sm:$0xf]
    %v1989 = vld [vmem:[%s1980 + $0x20] sm:$0xf]
    %v1990 = vld [vmem:[%s1980 + $0x24] sm:$0xf]
    %v1991 = vld [vmem:[%s1980 + $0x28] sm:$0xf]
    %v1992 = vld [vmem:[%s1980 + $0x2c] sm:$0xf]
    %v1993 = vld [vmem:[%s1980 + $0x30] sm:$0xf]
    %v1994 = vld [vmem:[%s1980 + $0x34] sm:$0xf]
    %v1995 = vld [vmem:[%s1980 + $0x38] sm:$0xf]
    %v1996 = vld [vmem:[%s1980 + $0x3c] sm:$0xf]
    %v1997 = vld [vmem:[%s1980 + $0x40] sm:$0xf]
    %v1998 = vld [vmem:[%s1980 + $0x44] sm:$0xf]
    %v1999 = vld [vmem:[%s1980 + $0x48] sm:$0xf]
    %v2000 = vld [vmem:[%s1980 + $0x4c] sm:$0xf]
    %v2001 = vld [vmem:[%s1980 + $0x50] sm:$0xf]
    %v2002 = vld [vmem:[%s1980 + $0x54] sm:$0xf]
    %v2003 = vld [vmem:[%s1980 + $0x58] sm:$0xf]
    %v2004 = vld [vmem:[%s1980 + $0x5c] sm:$0xf]
    %v2005 = vld [vmem:[%s1980 + $0x60] sm:$0xf]
    %v2006 = vld [vmem:[%s1980 + $0x64] sm:$0xf]
    %v2007 = vld [vmem:[%s1980 + $0x68] sm:$0xf]
    %v2008 = vld [vmem:[%s1980 + $0x6c] sm:$0xf]
    %v2009 = vld [vmem:[%s1980 + $0x70] sm:$0xf]
    %v2010 = vld [vmem:[%s1980 + $0x74] sm:$0xf]
    %v2011 = vld [vmem:[%s1980 + $0x78] sm:$0xf]
    %v2012 = vld [vmem:[%s1980 + $0x7c] sm:$0xf]
    %v2013 = vld [vmem:[%s1462 + $0x6] sm:$0x1]
    %v2014 = vlaneseq
    %v2015 = vshrl.u32 %v2014, 7
    %v2016 = vsub.s32 0, %v2015
    %v2017 = vrot.slane %v2013, %v2016
    %v2050 = vunpack.c.l.b16 %v1981
    %v2051 = vunpack.c.l.b16 %v1982
    %v2052 = vunpack.c.l.b16 %v1983
    %v2053 = vunpack.c.l.b16 %v1984
    %v2054 = vunpack.c.l.b16 %v1985
    %v2055 = vunpack.c.l.b16 %v1986
    %v2056 = vunpack.c.l.b16 %v1987
    %v2057 = vunpack.c.l.b16 %v1988
    %v2058 = vunpack.c.l.b16 %v1989
    %v2059 = vunpack.c.l.b16 %v1990
    %v2060 = vunpack.c.l.b16 %v1991
    %v2061 = vunpack.c.l.b16 %v1992
    %v2062 = vunpack.c.l.b16 %v1993
    %v2063 = vunpack.c.l.b16 %v1994
    %v2064 = vunpack.c.l.b16 %v1995
    %v2065 = vunpack.c.l.b16 %v1996
    %v2066 = vunpack.c.l.b16 %v1997
    %v2067 = vunpack.c.l.b16 %v1998
    %v2068 = vunpack.c.l.b16 %v1999
    %v2069 = vunpack.c.l.b16 %v2000
    %v2070 = vunpack.c.l.b16 %v2001
    %v2071 = vunpack.c.l.b16 %v2002
    %v2072 = vunpack.c.l.b16 %v2003
    %v2073 = vunpack.c.l.b16 %v2004
    %v2074 = vunpack.c.l.b16 %v2005
    %v2075 = vunpack.c.l.b16 %v2006
    %v2076 = vunpack.c.l.b16 %v2007
    %v2077 = vunpack.c.l.b16 %v2008
    %v2078 = vunpack.c.l.b16 %v2009
    %v2079 = vunpack.c.l.b16 %v2010
    %v2080 = vunpack.c.l.b16 %v2011
    %v2081 = vunpack.c.l.b16 %v2012
    %v2082 = vpack.c.b16 %v2051, %v2050
    %v2083 = vpack.c.b16 %v2053, %v2052
    %v2084 = vpack.c.b16 %v2055, %v2054
    %v2085 = vpack.c.b16 %v2057, %v2056
    %v2086 = vpack.c.b16 %v2059, %v2058
    %v2087 = vpack.c.b16 %v2061, %v2060
    %v2088 = vpack.c.b16 %v2063, %v2062
    %v2089 = vpack.c.b16 %v2065, %v2064
    %v2090 = vpack.c.b16 %v2067, %v2066
    %v2091 = vpack.c.b16 %v2069, %v2068
    %v2092 = vpack.c.b16 %v2071, %v2070
    %v2093 = vpack.c.b16 %v2073, %v2072
    %v2094 = vpack.c.b16 %v2075, %v2074
    %v2095 = vpack.c.b16 %v2077, %v2076
    %v2096 = vpack.c.b16 %v2079, %v2078
    %v2097 = vpack.c.b16 %v2081, %v2080
    %2114 = vmatprep.subr.bf16.mxu0 0
    %2115 = vmatpush1.bf16.msra.mxu0 %v2089
    %2116 = vmatprep.subr.bf16.mxu0 0
    %2117 = vmatpush1.bf16.msra.mxu0 %v2088
    %2118 = vmatprep.subr.bf16.mxu0 0
    %2119 = vmatpush1.bf16.msra.mxu0 %v2087
    %2120 = vmatprep.subr.bf16.mxu0 0
    %2121 = vmatpush1.bf16.msra.mxu0 %v2086
    %2122 = vmatprep.subr.bf16.mxu0 0
    %2123 = vmatpush1.bf16.msra.mxu0 %v2085
    %2124 = vmatprep.subr.bf16.mxu0 0
    %2125 = vmatpush1.bf16.msra.mxu0 %v2084
    %2126 = vmatprep.subr.bf16.mxu0 0
    %2127 = vmatpush1.bf16.msra.mxu0 %v2083
    %2128 = vmatprep.subr.bf16.mxu0 0
    %2129 = vmatpush1.bf16.msra.mxu0 %v2082
    %2130 = vmatprep.subr.bf16.mxu0 0
    %2131 = vmatpush2.bf16.msra.mxu0 %v2097
    %2132 = vmatprep.subr.bf16.mxu0 0
    %2133 = vmatpush2.bf16.msra.mxu0 %v2096
    %2134 = vmatprep.subr.bf16.mxu0 0
    %2135 = vmatpush2.bf16.msra.mxu0 %v2095
    %2136 = vmatprep.subr.bf16.mxu0 0
    %2137 = vmatpush2.bf16.msra.mxu0 %v2094
    %2138 = vmatprep.subr.bf16.mxu0 0
    %2139 = vmatpush2.bf16.msra.mxu0 %v2093
    %2140 = vmatprep.subr.bf16.mxu0 0
    %2141 = vmatpush2.bf16.msra.mxu0 %v2092
    %2142 = vmatprep.subr.bf16.mxu0 0
    %2143 = vmatpush2.bf16.msra.mxu0 %v2091
    %2144 = vmatprep.subr.bf16.mxu0 0
    %2145 = vmatpush2.bf16.msra.mxu0 %v2090
    %2146 = vmatprep.mubr.bf16.mxu0 %v1979
    %2147 = vmatmul.mubr.bf16.gmra.mxu0 %v1978
    %v2148 = vpop.f32.mrf.mxu0
    %v2149 = vadd.f32 %v2017, %v2148
    %v2150 = vpop.f32.mrf.mxu0
    %v2151 = vpop.f32.mrf.mxu0
    %v2152 = vadd.f32 %v2017, %v2151
    %v2153 = vpop.f32.mrf.mxu0
    %2154 = vdwg.mxu0
    %v2155 = vadd.f32 %v1786, %v2149
    %v2156 = vadd.f32 %v1787, %v2152
    %v2157 = vld [vmem:[%s1462 + $0x7] sm:$0x1]
    %v2158 = vld [vmem:[%s1462 + $0x8] sm:$0x1]
    %2159 = vadd.xlane.f32.xlu0 %v2155
    %v2160 = vpop.xlane.xlu0 %2159
    %2161 = vadd.xlane.f32.xlu0 %v2156
    %v2162 = vpop.xlane.xlu0 %2161
    %v2163 = vmul.f32 %v2160, %v207
    %v2164 = vmul.f32 %v2162, %v207
    %v2165 = vsub.f32 %v2155, %v2163
    %v2166 = vsub.f32 %v2156, %v2164
    %v2167 = vmul.f32 %v2165, %v2165
    %v2168 = vmul.f32 %v2166, %v2166
    %2169 = vadd.xlane.f32.xlu0 %v2167
    %v2170 = vpop.xlane.xlu0 %2169
    %2171 = vadd.xlane.f32.xlu0 %v2168
    %v2172 = vpop.xlane.xlu0 %2171
    %v2173 = vmul.f32 %v2170, %v207
    %v2174 = vmul.f32 %v2172, %v207
    %v2175 = vadd.f32 %v2173, 1e-12
    %v2176 = vadd.f32 %v2174, 1e-12
    %v2177 = vrsqrt.pop %v2175
    %v2178 = vrsqrt.pop %v2176
    %v2179 = vmul.f32 %v2165, %v2177
    %v2180 = vmul.f32 %v2166, %v2178
    %v2181 = vlaneseq
    %v2182 = vshrl.u32 %v2181, 7
    %v2183 = vsub.s32 0, %v2182
    %v2184 = vrot.slane %v2157, %v2183
    %v2185 = vmul.f32 %v2179, %v2184
    %v2186 = vmul.f32 %v2180, %v2184
    %v2187 = vlaneseq
    %v2188 = vshrl.u32 %v2187, 7
    %v2189 = vsub.s32 0, %v2188
    %v2190 = vrot.slane %v2158, %v2189
    %v2191 = vadd.f32 %v2185, %v2190
    %v2192 = vadd.f32 %v2186, %v2190
    %2193 = vst [vmem:[#allocation17] sm:$0xff] %v2191
    %2194 = vst [vmem:[#allocation17 + $0x8] sm:$0xff] %v2192
    %v2195 = vpack.c.bf16 %v2192, %v2191
    %v2196 = vld [vmem:[%s10] sm:$0xf]
    %v2197 = vld [vmem:[%s10 + $0x4] sm:$0xf]
    %v2198 = vld [vmem:[%s10 + $0x8] sm:$0xf]
    %v2199 = vld [vmem:[%s10 + $0xc] sm:$0xf]
    %v2200 = vld [vmem:[%s10 + $0x10] sm:$0xf]
    %v2201 = vld [vmem:[%s10 + $0x14] sm:$0xf]
    %v2202 = vld [vmem:[%s10 + $0x18] sm:$0xf]
    %v2203 = vld [vmem:[%s10 + $0x1c] sm:$0xf]
    %v2204 = vld [vmem:[%s10 + $0x20] sm:$0xf]
    %v2205 = vld [vmem:[%s10 + $0x24] sm:$0xf]
    %v2206 = vld [vmem:[%s10 + $0x28] sm:$0xf]
    %v2207 = vld [vmem:[%s10 + $0x2c] sm:$0xf]
    %v2208 = vld [vmem:[%s10 + $0x30] sm:$0xf]
    %v2209 = vld [vmem:[%s10 + $0x34] sm:$0xf]
    %v2210 = vld [vmem:[%s10 + $0x38] sm:$0xf]
    %v2211 = vld [vmem:[%s10 + $0x3c] sm:$0xf]
    %v2212 = vld [vmem:[%s3 + $0x2] sm:$0x1]
    %v2213 = vlaneseq
    %v2214 = vshrl.u32 %v2213, 7
    %v2215 = vsub.s32 0, %v2214
    %v2216 = vrot.slane %v2212, %v2215
    %v2233 = vunpack.c.l.b16 %v2196
    %v2234 = vunpack.c.l.b16 %v2197
    %v2235 = vunpack.c.l.b16 %v2198
    %v2236 = vunpack.c.l.b16 %v2199
    %v2237 = vunpack.c.l.b16 %v2200
    %v2238 = vunpack.c.l.b16 %v2201
    %v2239 = vunpack.c.l.b16 %v2202
    %v2240 = vunpack.c.l.b16 %v2203
    %v2241 = vunpack.c.l.b16 %v2204
    %v2242 = vunpack.c.l.b16 %v2205
    %v2243 = vunpack.c.l.b16 %v2206
    %v2244 = vunpack.c.l.b16 %v2207
    %v2245 = vunpack.c.l.b16 %v2208
    %v2246 = vunpack.c.l.b16 %v2209
    %v2247 = vunpack.c.l.b16 %v2210
    %v2248 = vunpack.c.l.b16 %v2211
    %v2249 = vpack.c.b16 %v2234, %v2233
    %v2250 = vpack.c.b16 %v2236, %v2235
    %v2251 = vpack.c.b16 %v2238, %v2237
    %v2252 = vpack.c.b16 %v2240, %v2239
    %v2253 = vpack.c.b16 %v2242, %v2241
    %v2254 = vpack.c.b16 %v2244, %v2243
    %v2255 = vpack.c.b16 %v2246, %v2245
    %v2256 = vpack.c.b16 %v2248, %v2247
    %2265 = vmatprep.subr.bf16.mxu0 0
    %2266 = vmatpush1.bf16.msra.mxu0 %v2256
    %2267 = vmatprep.subr.bf16.mxu0 0
    %2268 = vmatpush1.bf16.msra.mxu0 %v2255
    %2269 = vmatprep.subr.bf16.mxu0 0
    %2270 = vmatpush1.bf16.msra.mxu0 %v2254
    %2271 = vmatprep.subr.bf16.mxu0 0
    %2272 = vmatpush1.bf16.msra.mxu0 %v2253
    %2273 = vmatprep.subr.bf16.mxu0 0
    %2274 = vmatpush1.bf16.msra.mxu0 %v2252
    %2275 = vmatprep.subr.bf16.mxu0 0
    %2276 = vmatpush1.bf16.msra.mxu0 %v2251
    %2277 = vmatprep.subr.bf16.mxu0 0
    %2278 = vmatpush1.bf16.msra.mxu0 %v2250
    %2279 = vmatprep.subr.bf16.mxu0 0
    %2280 = vmatpush1.bf16.msra.mxu0 %v2249
    %2281 = vmatprep.subr.bf16.mxu0 0
    %2282 = vmatpush2.bf16.msra.mxu0 0
    %2283 = vmatprep.subr.bf16.mxu0 0
    %2284 = vmatpush2.bf16.msra.mxu0 0
    %2285 = vmatprep.subr.bf16.mxu0 0
    %2286 = vmatpush2.bf16.msra.mxu0 0
    %2287 = vmatprep.subr.bf16.mxu0 0
    %2288 = vmatpush2.bf16.msra.mxu0 0
    %2289 = vmatprep.subr.bf16.mxu0 0
    %2290 = vmatpush2.bf16.msra.mxu0 0
    %2291 = vmatprep.subr.bf16.mxu0 0
    %2292 = vmatpush2.bf16.msra.mxu0 0
    %2293 = vmatprep.subr.bf16.mxu0 0
    %2294 = vmatpush2.bf16.msra.mxu0 0
    %2295 = vmatprep.subr.bf16.mxu0 0
    %2296 = vmatpush2.bf16.msra.mxu0 0
    %2297 = vmatprep.mubr.bf16.mxu0 0
    %2298 = vmatmul.mubr.bf16.gmra.mxu0 %v2195
    %v2299 = vpop.f32.mrf.mxu0
    %v2300 = vadd.f32 %v2216, %v2299
    %v2301 = vpop.f32.mrf.mxu0
    %v2302 = vpop.f32.mrf.mxu0
    %v2303 = vadd.f32 %v2216, %v2302
    %v2304 = vpop.f32.mrf.mxu0
    %2305 = vdwg.mxu0
    %2306 = vst [vmem:[#allocation18] sm:$0xff] %v2300
    %2307 = vst [vmem:[#allocation18 + $0x8] sm:$0xff] %v2303
    %vm2308 = vcmp.lt.s32.totalorder %v161, 3
    %v2309 = vsel %vm2308, %v2300, -1e+30
    %v2310 = vsel %vm2308, %v2303, -1e+30
    %2311 = vmax.xlane.f32.xlu0 %v2309
    %v2312 = vpop.xlane.xlu0 %2311
    %2313 = vmax.xlane.f32.xlu0 %v2310
    %v2314 = vpop.xlane.xlu0 %2313
    %v2315 = vsub.f32 %v2309, %v2312
    %v2316 = vsub.f32 %v2310, %v2314
    %v2317 = vmul.f32 %v2315, 1.442695
    %v2318 = vpow.pop %v2317
    %v2319 = vmul.f32 %v2316, 1.442695
    %v2320 = vpow.pop %v2319
    %2321 = vadd.xlane.f32.xlu0 %v2318
    %v2322 = vpop.xlane.xlu0 %2321
    %2323 = vadd.xlane.f32.xlu0 %v2320
    %v2324 = vpop.xlane.xlu0 %2323
    %v2325 = vlog2.pop %v2322
    %v2326 = vmul.f32 %v2325, 0.6931472
    %v2327 = vlog2.pop %v2324
    %v2328 = vmul.f32 %v2327, 0.6931472
    %v2329 = vadd.f32 %v2312, %v2326
    %v2330 = vadd.f32 %v2314, %v2328
    %v2331 = vshra.s32 %v152, 3
    %v2332 = vshra.s32 %v153, 3
    %vm2333 = vcmp.eq.s32.totalorder %v2331, 0
    %vm2334 = vcmp.eq.s32.totalorder %v2332, 0
    %s2335 = sld [smem:[#allocation9]]
    %v2336 = vstv %s2335
    %v2337 = vsel %vm2333, %v2336, 0
    %v2338 = vsel %vm2334, %v2336, 0
    %vm2339 = vcmp.eq.s32.totalorder %v2331, 1
    %vm2340 = vcmp.eq.s32.totalorder %v2332, 1
    %s2341 = sld [smem:[#allocation9 + $0x1]]
    %v2342 = vstv %s2341
    %v2343 = vsel %vm2339, %v2342, %v2337
    %v2344 = vsel %vm2340, %v2342, %v2338
    %vm2345 = vcmp.eq.s32.totalorder %v161, %v2343
    %vm2346 = vcmp.eq.s32.totalorder %v161, %v2344
    %v2347 = vsel %vm2345, %v2300, 0.0
    %v2348 = vsel %vm2346, %v2303, 0.0
    %2349 = vadd.xlane.f32.xlu0 %v2347
    %v2350 = vpop.xlane.xlu0 %2349
    %2351 = vadd.xlane.f32.xlu0 %v2348
    %v2352 = vpop.xlane.xlu0 %2351
    %v2353 = vand.u32 %v152, 7
    %v2354 = vand.u32 %v153, 7
    %vm2355 = vcmp.eq.s32.totalorder %v2353, 0
    %vm2356 = vcmp.eq.s32.totalorder %v2354, 0
    %v2357 = vsel %vm2355, 1, 0
    %v2358 = vsel %vm2356, 1, 0
    %v2359 = vcvt.s32.f32 %v2357
    %v2360 = vcvt.s32.f32 %v2358
    %v2361 = vsub.f32 %v2329, %v2350
    %v2362 = vsub.f32 %v2330, %v2352
    %v2363 = vmul.f32 %v2361, %v2359
    %v2364 = vmul.f32 %v2362, %v2360
    %vm2365 = vcmask 7168
    %v2366 = vsel %vm2365, %v2363, 0.0
    %v2367 = vsel %vm2365, %v2364, 0.0
    %v2368 = vadd.f32 %v2366, %v2367
    %2369 = vadd.xlane.f32.xlu0 %v2368
    %v2370 = vpop.xlane.xlu0 %2369
    %v2371 = vrot.slane %v2370, 4
    %v2372 = vadd.f32 %v2370, %v2371
    %v2373 = vrot.slane %v2372, 2
    %v2374 = vadd.f32 %v2372, %v2373
    %v2375 = vrot.slane %v2374, 1
    %v2376 = vadd.f32 %v2374, %v2375
    %s2377 = vtos %v2376
    %s2378 = smul.f32 %s2377, 0.5
    %s2379 = scalar_lea.smem [#allocation20], 0
    %2380 = sst [smem:[%s2379]] %s2378
    // Predicated region
    $region78: #{tpu_custom_call.1} parent=1 // pred_check
      _
    $region79: #{tpu_custom_call.1} parent=1 // pred_check_branch
      %2382 = sbr.rel (0) target = $region81
    $region80: #{tpu_custom_call.1} parent=1 // pred_region
      %s2384 = ssub.s32 256, 256
      %2385 = vsyncadd [#allocation4], %s2384
      %s2386 = sshll.u32 [#allocation17], 4
      %s2387 = int_to_ptr.vmem [resolvable:$true] %s2386
      %2392 = dma.vmem_to_hbm [thread:$0]  %s2387, 256, %s11, [#allocation4], 128, 128, 8
    $region81: #{tpu_custom_call.1} parent=1 // pred_fallthru
      _
    // Predicated region
    $region82: #{tpu_custom_call.1} parent=1 // pred_check
      _
    $region83: #{tpu_custom_call.1} parent=1 // pred_check_branch
      %2394 = sbr.rel (0) target = $region85
    $region84: #{tpu_custom_call.1} parent=1 // pred_region
      %s2396 = ssub.s32 256, 256
      %2397 = vsyncadd [#allocation19], %s2396
      %s2398 = sshll.u32 [#allocation18], 4
      %s2399 = int_to_ptr.vmem [resolvable:$true] %s2398
      %2404 = dma.vmem_to_hbm [thread:$0]  %s2399, 256, %s12, [#allocation19], 128, 128, 8
    $region85: #{tpu_custom_call.1} parent=1 // pred_fallthru
      _
    // Predicated region
    $region86: #{tpu_custom_call.1} parent=1 // pred_check
      _
    $region87: #{tpu_custom_call.1} parent=1 // pred_check_branch
      %2406 = sbr.rel (0) target = $region89
    $region88: #{tpu_custom_call.1} parent=1 // pred_region
      %s2408 = ssub.s32 16, 16
      %2409 = vsyncadd [#allocation6], %s2408
      %2412 = dma.smem_to_hbm [#allocation20], 16, %s13, [#allocation6]
    $region89: #{tpu_custom_call.1} parent=1 // pred_fallthru
      _
    // Predicated region
    $region90: #{tpu_custom_call.1} parent=1 // pred_check
      _
    $region91: #{tpu_custom_call.1} parent=1 // pred_check_branch
      %2414 = sbr.rel (0) target = $region93
    $region92: #{tpu_custom_call.1} parent=1 // pred_region
      %2415 = dma.done [#allocation4], 256
    $region93: #{tpu_custom_call.1} parent=1 // pred_fallthru
      _
    // Predicated region
    $region94: #{tpu_custom_call.1} parent=1 // pred_check
      _
    $region95: #{tpu_custom_call.1} parent=1 // pred_check_branch
      %2417 = sbr.rel (0) target = $region97
    $region96: #{tpu_custom_call.1} parent=1 // pred_region
      %2418 = dma.done [#allocation19], 256
    $region97: #{tpu_custom_call.1} parent=1 // pred_fallthru
      _
    // Predicated region
    $region98: #{tpu_custom_call.1} parent=1 // pred_check
      _
    $region99: #{tpu_custom_call.1} parent=1 // pred_check_branch
      %2420 = sbr.rel (0) target = $region101
    $region100: #{tpu_custom_call.1} parent=1 // pred_region
      %2421 = dma.done [#allocation6], 16
    $region101: #{tpu_custom_call.1} parent=1 // pred_fallthru
      _
    %2422 = sfence
    %2423 = vsyncpa [#allocation3], 1
    %2424 = vsyncpa [#allocation8], 1
    %2425 = vsyncpa [#allocation12], 1
    %2426 = vsyncpa [#allocation15], 1
    %2427 = vsyncpa [#allocation4], 1
    %2428 = vsyncpa [#allocation19], 1
    %2429 = vsyncpa [#allocation5], 1
    %2430 = vsyncpa [#allocation6], 1

</llo_original>
